<compile_context>
chip_gen: v6e
topology: v6e:2x2x1
jax: 0.10.0
libtpu: 0.0.40
codegen_flags: <defaults>
</compile_context>

<pallas_src>
import functools
import math

import jax
import jax.numpy as jnp
from jax import lax
from jax.experimental import pallas as pl
from jax.experimental.pallas import tpu as pltpu

LN_EPS = 1e-5  # torch.nn.LayerNorm default


def _round_up(x, m):
    return ((x + m - 1) // m) * m


def _layernorm(x, w, b):
    # f32 statistics (x is f32 here).
    mu = jnp.mean(x, axis=-1, keepdims=True)
    var = jnp.mean((x - mu) ** 2, axis=-1, keepdims=True)
    return (x - mu) * lax.rsqrt(var + LN_EPS) * w + b


# ---------------------------------------------------------------------------
# Kernel A: patch embedding (Conv2d with kernel=stride=patch  ==  matmul)
# ---------------------------------------------------------------------------
def _patch_embed_kernel(p_ref, w_ref, b_ref, o_ref):
    o_ref[...] = (
        jnp.dot(p_ref[...].astype(jnp.bfloat16), w_ref[...],
                preferred_element_type=jnp.float32)
        + b_ref[...]
    )


def patch_embed(patches, w, b):
    # patches: (B*N, K) f32, w: (K, E) bf16, b: (1, E) f32  -> (B*N, E) f32
    bn, k = patches.shape
    e = w.shape[1]

    row_tile = 256 if bn >= 256 else _round_up(bn, 8)
    bn_pad = _round_up(bn, row_tile)
    if bn_pad != bn:
        patches = jnp.pad(patches, ((0, bn_pad - bn), (0, 0)))

    out = pl.pallas_call(
        _patch_embed_kernel,
        grid=(bn_pad // row_tile,),
        in_specs=[
            pl.BlockSpec((row_tile, k), lambda i: (i, 0)),
            pl.BlockSpec((k, e), lambda i: (0, 0)),
            pl.BlockSpec((1, e), lambda i: (0, 0)),
        ],
        out_specs=pl.BlockSpec((row_tile, e), lambda i: (i, 0)),
        out_shape=jax.ShapeDtypeStruct((bn_pad, e), jnp.float32),
        compiler_params=pltpu.CompilerParams(
            dimension_semantics=("parallel",)),
    )(patches, w, b)
    return out[:bn]


# ---------------------------------------------------------------------------
# Kernel B: full encoder. grid = (batch, depth); depth innermost ("arbitrary"),
# batch "parallel" (shards across TensorCores on megacore parts).
# The (S, E) activation lives in a VMEM scratch across all depth steps.
# ---------------------------------------------------------------------------
def _encoder_kernel(num_heads,
                    x_ref, ln1w, ln1b, wqkv, bqkv, wo, bo,
                    ln2w, ln2b, w1, b1, w2, b2,
                    o_ref, acc_ref):
    s_len, e = acc_ref.shape
    dh = e // num_heads
    d = pl.program_id(1)

    @pl.when(d == 0)
    def _():
        acc_ref[...] = x_ref[0]          # load activation once per batch item

    x = acc_ref[...]                     # (S, E) f32, resident across depth

    # ---- LN1 (f32) + fused QKV projection (one wide bf16 matmul) ----
    xn = _layernorm(x, ln1w[0], ln1b[0])
    qkv = jnp.dot(xn.astype(jnp.bfloat16), wqkv[0],
                  preferred_element_type=jnp.float32) + bqkv[0]   # (S, 3E) f32

    q = qkv[:, :e].reshape(s_len, num_heads, dh)
    k = qkv[:, e:2 * e].reshape(s_len, num_heads, dh)
    v = qkv[:, 2 * e:].reshape(s_len, num_heads, dh)

    # ---- head-batched attention (batched dot_general, no per-head loop) ----
    scale = 1.0 / math.sqrt(dh)
    s = jnp.einsum('qhd,khd->hqk',
                   q.astype(jnp.bfloat16), k.astype(jnp.bfloat16),
                   preferred_element_type=jnp.float32) * scale    # (H, S, S)
    s = s - jnp.max(s, axis=-1, keepdims=True)                    # f32 softmax
    p = jnp.exp(s)
    p = p * pl.reciprocal(jnp.sum(p, axis=-1, keepdims=True), approx=True)
    ctx = jnp.einsum('hqk,khd->qhd',
                     p.astype(jnp.bfloat16), v.astype(jnp.bfloat16),
                     preferred_element_type=jnp.float32)          # (S, H, dh)
    ctx = ctx.reshape(s_len, e)

    attn = jnp.dot(ctx.astype(jnp.bfloat16), wo[0],
                   preferred_element_type=jnp.float32) + bo[0]
    x = x + attn                                                  # residual 1

    # ---- LN2 (f32) + MLP: Linear -> GELU(exact) -> Linear ----
    xn2 = _layernorm(x, ln2w[0], ln2b[0])
    h1 = jnp.dot(xn2.astype(jnp.bfloat16), w1[0],
                 preferred_element_type=jnp.float32) + b1[0]
    h1 = 0.5 * h1 * (1.0 + lax.erf(h1 * (1.0 / math.sqrt(2.0))))  # exact GELU
    h2 = jnp.dot(h1.astype(jnp.bfloat16), w2[0],
                 preferred_element_type=jnp.float32) + b2[0]

    out = x + h2                                                  # residual 2
    acc_ref[...] = out

    @pl.when(d == pl.num_programs(1) - 1)
    def _():
        o_ref[0] = out


_BLOCK_KEYS = ("ln1_w", "ln1_b", "wqkv", "bqkv", "wo", "bo",
               "ln2_w", "ln2_b", "w1", "b1", "w2", "b2")


def transformer_encoder(x, blocks, num_heads):
    """x: (B, S, E) f32. blocks[name]: stacked along leading depth axis."""
    b, s, e = x.shape
    depth = blocks["wqkv"].shape[0]
    weights = [blocks[kk] for kk in _BLOCK_KEYS]

    def wspec(arr):
        nd = arr.ndim
        # one layer's slab per depth step; trailing dims == full array dims
        return pl.BlockSpec((1,) + arr.shape[1:],
                            lambda bb, dd, _nd=nd: (dd,) + (0,) * (_nd - 1))

    in_specs = [pl.BlockSpec((1, s, e), lambda bb, dd: (bb, 0, 0))] + \
               [wspec(w) for w in weights]
    out_specs = pl.BlockSpec((1, s, e), lambda bb, dd: (bb, 0, 0))

    return pl.pallas_call(
        functools.partial(_encoder_kernel, num_heads),
        grid=(b, depth),
        in_specs=in_specs,
        out_specs=out_specs,
        out_shape=jax.ShapeDtypeStruct((b, s, e), jnp.float32),
        scratch_shapes=[pltpu.VMEM((s, e), jnp.float32)],
        compiler_params=pltpu.CompilerParams(
            dimension_semantics=("parallel", "arbitrary"),
            vmem_limit_bytes=32 * 1024 * 1024),
    )(x, *weights)


# ---------------------------------------------------------------------------
# Kernel C: final LayerNorm on CLS token + classification head (128-lane pad)
# ---------------------------------------------------------------------------
def _head_kernel(x_ref, lnw, lnb, wh, bh, o_ref):
    xn = _layernorm(x_ref[...], lnw[...], lnb[...])
    o_ref[...] = (
        jnp.dot(xn.astype(jnp.bfloat16), wh[...],
                preferred_element_type=jnp.float32)
        + bh[...]
    )


def classifier_head(cls, ln_w, ln_b, wh, bh, num_classes):
    b = cls.shape[0]
    nc_pad = wh.shape[1]
    out = pl.pallas_call(
        _head_kernel,
        out_shape=jax.ShapeDtypeStruct((b, nc_pad), jnp.float32),
    )(cls, ln_w, ln_b, wh, bh)
    return out[:, :num_classes]


# ---------------------------------------------------------------------------
# Parameter construction (deterministic; shapes match the PyTorch module:
# Linear/Conv weights ~ N(0, 0.02), biases = 0, LN weight = 1, bias = 0).
# Matmul weights stored in bf16; biases / LN params / embeddings in f32.
# ---------------------------------------------------------------------------
def init_params(key, *, in_channels, patch_size, embed_dim, depth, num_heads,
                mlp_ratio, num_classes, num_patches):
    del num_heads
    counter = [0]

    def nrm(shape):
        counter[0] += 1
        return 0.02 * jax.random.normal(
            jax.random.fold_in(key, counter[0]), shape, jnp.float32)

    e = embed_dim
    k_dim = in_channels * patch_size * patch_size
    mh = int(embed_dim * mlp_ratio)
    nc_pad = _round_up(max(num_classes, 1), 128)

    # head weight, zero-padded to a 128-multiple lane width
    head_w = nrm((num_classes, e)).T                          # (E, nc)
    head_w = jnp.pad(head_w, ((0, 0), (0, nc_pad - num_classes)))

    params = {
        # conv weight (E, C, P, P) flattened & transposed to (K, E)
        "patch_w": nrm((e, k_dim)).T.astype(jnp.bfloat16),
        "patch_b": jnp.zeros((1, e), jnp.float32),
        "cls_token": nrm((1, 1, e)),
        "pos_embed": nrm((1, num_patches + 1, e)),
        "ln_w": jnp.ones((1, e), jnp.float32),
        "ln_b": jnp.zeros((1, e), jnp.float32),
        "head_w": head_w.astype(jnp.bfloat16),                # (E, nc_pad)
        "head_b": jnp.zeros((1, nc_pad), jnp.float32),
    }

    wqkv_l, wo_l, w1_l, w2_l = [], [], [], []
    for _ in range(depth):
        # nn.Linear stores (out, in); pre-transpose to (in, out) for x @ W
        wq = nrm((e, e)).T
        wk = nrm((e, e)).T
        wv = nrm((e, e)).T
        wqkv_l.append(jnp.concatenate([wq, wk, wv], axis=1))  # (E, 3E)
        wo_l.append(nrm((e, e)).T)
        w1_l.append(nrm((mh, e)).T)                           # (E, MH)
        w2_l.append(nrm((e, mh)).T)                           # (MH, E)

    params["blocks"] = {
        "ln1_w": jnp.ones((depth, 1, e), jnp.float32),
        "ln1_b": jnp.zeros((depth, 1, e), jnp.float32),
        "wqkv": jnp.stack(wqkv_l).astype(jnp.bfloat16),       # (D, E, 3E)
        "bqkv": jnp.zeros((depth, 1, 3 * e), jnp.float32),
        "wo": jnp.stack(wo_l).astype(jnp.bfloat16),           # (D, E, E)
        "bo": jnp.zeros((depth, 1, e), jnp.float32),
        "ln2_w": jnp.ones((depth, 1, e), jnp.float32),
        "ln2_b": jnp.zeros((depth, 1, e), jnp.float32),
        "w1": jnp.stack(w1_l).astype(jnp.bfloat16),           # (D, E, MH)
        "b1": jnp.zeros((depth, 1, mh), jnp.float32),
        "w2": jnp.stack(w2_l).astype(jnp.bfloat16),           # (D, MH, E)
        "b2": jnp.zeros((depth, 1, e), jnp.float32),
    }
    return params


# ---------------------------------------------------------------------------
# Full forward pass (glue in plain JAX, compute in the Pallas kernels above)
# ---------------------------------------------------------------------------
def vit_forward(x_img, params, *, patch_size, num_heads, num_classes):
    b, c, hh, ww = x_img.shape
    p = patch_size
    nh, nw = hh // p, ww // p
    # NCHW -> patches [B*N, C*P*P], flattened in (C, pH, pW) order (Conv2d order)
    patches = (
        x_img.reshape(b, c, nh, p, nw, p)
             .transpose(0, 2, 4, 1, 3, 5)
             .reshape(b * nh * nw, c * p * p)
    )
    emb = patch_embed(patches, params["patch_w"], params["patch_b"])
    emb = emb.reshape(b, nh * nw, -1)                          # [B, N, E]

    cls = jnp.broadcast_to(params["cls_token"], (b, 1, emb.shape[-1]))
    x = jnp.concatenate([cls, emb], axis=1) + params["pos_embed"]  # [B, N+1, E]
    # dropout_rate = 0.0 -> identity (inference semantics)

    x = transformer_encoder(x, params["blocks"], num_heads)

    logits = classifier_head(
        x[:, 0, :], params["ln_w"], params["ln_b"],
        params["head_w"], params["head_b"], num_classes)
    return logits


if __name__ == "__main__":
    # small config consistent with the module's constructor
    cfg = dict(img_size=16, patch_size=4, in_channels=4, num_classes=16,
               embed_dim=32, depth=2, num_heads=4, mlp_ratio=4.0)
    num_patches = (cfg["img_size"] // cfg["patch_size"]) ** 2  # 16 -> seq = 17

    key = jax.random.PRNGKey(0)
    k_par, k_inp = jax.random.split(key)
    params = init_params(
        k_par,
        in_channels=cfg["in_channels"], patch_size=cfg["patch_size"],
        embed_dim=cfg["embed_dim"], depth=cfg["depth"],
        num_heads=cfg["num_heads"], mlp_ratio=cfg["mlp_ratio"],
        num_classes=cfg["num_classes"], num_patches=num_patches)

    x = jax.random.normal(
        k_inp,
        (2, cfg["in_channels"], cfg["img_size"], cfg["img_size"]),
        jnp.float32)

    fwd = jax.jit(functools.partial(
        vit_forward,
        patch_size=cfg["patch_size"],
        num_heads=cfg["num_heads"],
        num_classes=cfg["num_classes"]))

    logits = fwd(x, params)
    logits = jax.block_until_ready(logits)
    assert logits.shape == (2, cfg["num_classes"])
    assert bool(jnp.all(jnp.isfinite(logits)))
    print("KERNEL_OK")
</pallas_src>

<mosaic_0001>
module attributes {stable_mosaic.version = 11 : i64} {
  func.func @_patch_embed_kernel(%arg0: i32, %arg1: memref<32x64xf32, #tpu.memory_space<vmem>>, %arg2: memref<64x32xbf16, #tpu.memory_space<vmem>>, %arg3: memref<1x32xf32, #tpu.memory_space<vmem>>, %arg4: memref<32x32xf32, #tpu.memory_space<vmem>>) attributes {dimension_semantics = [#tpu.dimension_semantics<parallel>], iteration_bounds = array<i64: 1>, scalar_prefetch = 0 : i64, scratch_operands = 0 : i64, tpu.core_type = #tpu.core_type<tc>, window_params = [{transform_indices = @transform_0, window_bounds = array<i64: 32, 64>}, {pipeline_mode = #tpu.pipeline_mode<synchronous>, transform_indices = @transform_1, window_bounds = array<i64: 64, 32>}, {pipeline_mode = #tpu.pipeline_mode<synchronous>, transform_indices = @transform_2, window_bounds = array<i64: 1, 32>}, {transform_indices = @transform_3, window_bounds = array<i64: 32, 32>}]} {
    %c0 = arith.constant 0 : index
    %c0_0 = arith.constant 0 : index
    %0 = vector.load %arg1[%c0, %c0_0] : memref<32x64xf32, #tpu.memory_space<vmem>>, vector<32x64xf32>
    %1 = arith.truncf %0 : vector<32x64xf32> to vector<32x64xbf16>
    %c0_1 = arith.constant 0 : index
    %c0_2 = arith.constant 0 : index
    %2 = vector.load %arg2[%c0_1, %c0_2] : memref<64x32xbf16, #tpu.memory_space<vmem>>, vector<64x32xbf16>
    %cst = arith.constant dense<0.000000e+00> : vector<32x32xf32>
    %3 = tpu.matmul %1, %2, %cst {dimension_numbers = #tpu.dot_dimension_numbers<[1], [0], [0], [1], [0, 0, 1, 1], [], []>} : vector<32x64xbf16>, vector<64x32xbf16>, vector<32x32xf32> -> vector<32x32xf32>
    %c0_3 = arith.constant 0 : index
    %c0_4 = arith.constant 0 : index
    %4 = vector.load %arg3[%c0_3, %c0_4] : memref<1x32xf32, #tpu.memory_space<vmem>>, vector<1x32xf32>
    %5 = vector.broadcast %4 : vector<1x32xf32> to vector<32x32xf32>
    %6 = arith.addf %3, %5 : vector<32x32xf32>
    %c0_5 = arith.constant 0 : index
    %c0_6 = arith.constant 0 : index
    %7 = vector.load %arg4[%c0_5, %c0_6] : memref<32x32xf32, #tpu.memory_space<vmem>>, vector<32x32xf32>
    tpu.vector_store %arg4[%c0_5, %c0_6], %6 {strides = array<i32>} : memref<32x32xf32, #tpu.memory_space<vmem>>, vector<32x32xf32>,
    return
  }
  func.func @transform_0(%arg0: i32) -> (i32, i32) {
    %c0_i32 = arith.constant 0 : i32
    %c0_i32_0 = arith.constant 0 : i32
    return %arg0, %c0_i32 : i32, i32
  }
  func.func @transform_1(%arg0: i32) -> (i32, i32) {
    %c0_i32 = arith.constant 0 : i32
    %c0_i32_0 = arith.constant 0 : i32
    %c0_i32_1 = arith.constant 0 : i32
    return %c0_i32, %c0_i32_0 : i32, i32
  }
  func.func @transform_2(%arg0: i32) -> (i32, i32) {
    %c0_i32 = arith.constant 0 : i32
    %c0_i32_0 = arith.constant 0 : i32
    %c0_i32_1 = arith.constant 0 : i32
    return %c0_i32, %c0_i32_0 : i32, i32
  }
  func.func @transform_3(%arg0: i32) -> (i32, i32) {
    %c0_i32 = arith.constant 0 : i32
    %c0_i32_0 = arith.constant 0 : i32
    return %arg0, %c0_i32 : i32, i32
  }
}

module attributes {stable_mosaic.version = 11 : i64} {
  func.func @_encoder_kernel(%arg0: i32, %arg1: i32, %arg2: memref<1x17x32xf32, #tpu.memory_space<vmem>>, %arg3: memref<1x1x32xf32, #tpu.memory_space<vmem>>, %arg4: memref<1x1x32xf32, #tpu.memory_space<vmem>>, %arg5: memref<1x32x96xbf16, #tpu.memory_space<vmem>>, %arg6: memref<1x1x96xf32, #tpu.memory_space<vmem>>, %arg7: memref<1x32x32xbf16, #tpu.memory_space<vmem>>, %arg8: memref<1x1x32xf32, #tpu.memory_space<vmem>>, %arg9: memref<1x1x32xf32, #tpu.memory_space<vmem>>, %arg10: memref<1x1x32xf32, #tpu.memory_space<vmem>>, %arg11: memref<1x32x128xbf16, #tpu.memory_space<vmem>>, %arg12: memref<1x1x128xf32, #tpu.memory_space<vmem>>, %arg13: memref<1x128x32xbf16, #tpu.memory_space<vmem>>, %arg14: memref<1x1x32xf32, #tpu.memory_space<vmem>>, %arg15: memref<1x17x32xf32, #tpu.memory_space<vmem>>, %arg16: memref<17x32xf32, #tpu.memory_space<vmem>>) attributes {dimension_semantics = [#tpu.dimension_semantics<parallel>, #tpu.dimension_semantics<arbitrary>], iteration_bounds = array<i64: 2, 2>, scalar_prefetch = 0 : i64, scratch_operands = 1 : i64, tpu.core_type = #tpu.core_type<tc>, window_params = [{transform_indices = @transform_0, window_bounds = array<i64: 1, 17, 32>}, {transform_indices = @transform_1, window_bounds = array<i64: 1, 1, 32>}, {transform_indices = @transform_2, window_bounds = array<i64: 1, 1, 32>}, {transform_indices = @transform_3, window_bounds = array<i64: 1, 32, 96>}, {transform_indices = @transform_4, window_bounds = array<i64: 1, 1, 96>}, {transform_indices = @transform_5, window_bounds = array<i64: 1, 32, 32>}, {transform_indices = @transform_6, window_bounds = array<i64: 1, 1, 32>}, {transform_indices = @transform_7, window_bounds = array<i64: 1, 1, 32>}, {transform_indices = @transform_8, window_bounds = array<i64: 1, 1, 32>}, {transform_indices = @transform_9, window_bounds = array<i64: 1, 32, 128>}, {transform_indices = @transform_10, window_bounds = array<i64: 1, 1, 128>}, {transform_indices = @transform_11, window_bounds = array<i64: 1, 128, 32>}, {transform_indices = @transform_12, window_bounds = array<i64: 1, 1, 32>}, {transform_indices = @transform_13, window_bounds = array<i64: 1, 17, 32>}]} {
    %c0_i32 = arith.constant 0 : i32
    %0 = arith.cmpi eq, %arg1, %c0_i32 : i32
    %1 = arith.extui %0 : i1 to i32
    %c0_i32_0 = arith.constant 0 : i32
    %2 = arith.cmpi ne, %1, %c0_i32_0 : i32
    scf.if %2 {
      %c0_62 = arith.constant 0 : index
      %c0_63 = arith.constant 0 : index
      %c0_64 = arith.constant 0 : index
      %128 = vector.load %arg2[%c0_62, %c0_63, %c0_64] : memref<1x17x32xf32, #tpu.memory_space<vmem>>, vector<1x17x32xf32>
      %129 = vector.shape_cast %128 : vector<1x17x32xf32> to vector<17x32xf32>
      %c0_65 = arith.constant 0 : index
      %c0_66 = arith.constant 0 : index
      %130 = vector.load %arg16[%c0_65, %c0_66] : memref<17x32xf32, #tpu.memory_space<vmem>>, vector<17x32xf32>
      tpu.vector_store %arg16[%c0_65, %c0_66], %129 {strides = array<i32>} : memref<17x32xf32, #tpu.memory_space<vmem>>, vector<17x32xf32>,
    } else {
    }
    %c0 = arith.constant 0 : index
    %c0_1 = arith.constant 0 : index
    %3 = vector.load %arg16[%c0, %c0_1] : memref<17x32xf32, #tpu.memory_space<vmem>>, vector<17x32xf32>
    %c0_2 = arith.constant 0 : index
    %c0_3 = arith.constant 0 : index
    %c0_4 = arith.constant 0 : index
    %4 = vector.load %arg3[%c0_2, %c0_3, %c0_4] : memref<1x1x32xf32, #tpu.memory_space<vmem>>, vector<1x1x32xf32>
    %5 = vector.shape_cast %4 : vector<1x1x32xf32> to vector<1x32xf32>
    %c0_5 = arith.constant 0 : index
    %c0_6 = arith.constant 0 : index
    %c0_7 = arith.constant 0 : index
    %6 = vector.load %arg4[%c0_5, %c0_6, %c0_7] : memref<1x1x32xf32, #tpu.memory_space<vmem>>, vector<1x1x32xf32>
    %7 = vector.shape_cast %6 : vector<1x1x32xf32> to vector<1x32xf32>
    %cst = arith.constant dense<0.000000e+00> : vector<17xf32>
    %8 = vector.multi_reduction <add>, %3, %cst [1] : vector<17x32xf32> to vector<17xf32>
    %9 = vector.shape_cast %8 : vector<17xf32> to vector<17x1xf32>
    %cst_8 = arith.constant 3.200000e+01 : f32
    %10 = vector.broadcast %cst_8 : f32 to vector<17x1xf32>
    %11 = arith.divf %9, %10 : vector<17x1xf32>
    %12 = vector.broadcast %11 : vector<17x1xf32> to vector<17x32xf32>
    %13 = arith.subf %3, %12 : vector<17x32xf32>
    %14 = arith.mulf %13, %13 : vector<17x32xf32>
    %cst_9 = arith.constant dense<0.000000e+00> : vector<17xf32>
    %15 = vector.multi_reduction <add>, %14, %cst_9 [1] : vector<17x32xf32> to vector<17xf32>
    %16 = vector.shape_cast %15 : vector<17xf32> to vector<17x1xf32>
    %cst_10 = arith.constant 3.200000e+01 : f32
    %17 = vector.broadcast %cst_10 : f32 to vector<17x1xf32>
    %18 = arith.divf %16, %17 : vector<17x1xf32>
    %19 = vector.broadcast %11 : vector<17x1xf32> to vector<17x32xf32>
    %20 = arith.subf %3, %19 : vector<17x32xf32>
    %cst_11 = arith.constant 9.99999974E-6 : f32
    %21 = vector.broadcast %cst_11 : f32 to vector<17x1xf32>
    %22 = arith.addf %18, %21 : vector<17x1xf32>
    %23 = math.rsqrt %22 : vector<17x1xf32>
    %24 = vector.broadcast %23 : vector<17x1xf32> to vector<17x32xf32>
    %25 = arith.mulf %20, %24 : vector<17x32xf32>
    %26 = vector.broadcast %5 : vector<1x32xf32> to vector<17x32xf32>
    %27 = arith.mulf %25, %26 : vector<17x32xf32>
    %28 = vector.broadcast %7 : vector<1x32xf32> to vector<17x32xf32>
    %29 = arith.addf %27, %28 : vector<17x32xf32>
    %30 = arith.truncf %29 : vector<17x32xf32> to vector<17x32xbf16>
    %c0_12 = arith.constant 0 : index
    %c0_13 = arith.constant 0 : index
    %c0_14 = arith.constant 0 : index
    %31 = vector.load %arg5[%c0_12, %c0_13, %c0_14] : memref<1x32x96xbf16, #tpu.memory_space<vmem>>, vector<1x32x96xbf16>
    %32 = vector.shape_cast %31 : vector<1x32x96xbf16> to vector<32x96xbf16>
    %cst_15 = arith.constant dense<0.000000e+00> : vector<17x96xf32>
    %33 = tpu.matmul %30, %32, %cst_15 {dimension_numbers = #tpu.dot_dimension_numbers<[1], [0], [0], [1], [0, 0, 1, 1], [], []>} : vector<17x32xbf16>, vector<32x96xbf16>, vector<17x96xf32> -> vector<17x96xf32>
    %c0_16 = arith.constant 0 : index
    %c0_17 = arith.constant 0 : index
    %c0_18 = arith.constant 0 : index
    %34 = vector.load %arg6[%c0_16, %c0_17, %c0_18] : memref<1x1x96xf32, #tpu.memory_space<vmem>>, vector<1x1x96xf32>
    %35 = vector.shape_cast %34 : vector<1x1x96xf32> to vector<1x96xf32>
    %36 = vector.broadcast %35 : vector<1x96xf32> to vector<17x96xf32>
    %37 = arith.addf %33, %36 : vector<17x96xf32>
    %38 = vector.extract_strided_slice %37 {offsets = [0, 0], sizes = [17, 32], strides = [1, 1]} : vector<17x96xf32> to vector<17x32xf32>
    %39 = vector.shape_cast %38 : vector<17x32xf32> to vector<17x4x8xf32>
    %40 = vector.extract_strided_slice %37 {offsets = [0, 32], sizes = [17, 32], strides = [1, 1]} : vector<17x96xf32> to vector<17x32xf32>
    %41 = vector.shape_cast %40 : vector<17x32xf32> to vector<17x4x8xf32>
    %42 = vector.extract_strided_slice %37 {offsets = [0, 64], sizes = [17, 32], strides = [1, 1]} : vector<17x96xf32> to vector<17x32xf32>
    %43 = vector.shape_cast %42 : vector<17x32xf32> to vector<17x4x8xf32>
    %44 = arith.truncf %39 : vector<17x4x8xf32> to vector<17x4x8xbf16>
    %45 = arith.truncf %41 : vector<17x4x8xf32> to vector<17x4x8xbf16>
    "tpu.trace_start"() <{level = 10 : i32, message = "qhd,khd->hqk"}> : () -> ()
    %cst_19 = arith.constant dense<0.000000e+00> : vector<4x17x17xf32>
    %46 = tpu.matmul %44, %45, %cst_19 {dimension_numbers = #tpu.dot_dimension_numbers<[2], [2], [0], [0], [0, 1, 0, 0, 1, 0], [1], [1]>} : vector<17x4x8xbf16>, vector<17x4x8xbf16>, vector<4x17x17xf32> -> vector<4x17x17xf32>
    "tpu.trace_stop"() : () -> ()
    %cst_20 = arith.constant 0.353553385 : f32
    %47 = vector.broadcast %cst_20 : f32 to vector<4x17x17xf32>
    %48 = arith.mulf %46, %47 : vector<4x17x17xf32>
    %cst_21 = arith.constant dense<0xFF800000> : vector<4x17xf32>
    %49 = vector.multi_reduction <maximumf>, %48, %cst_21 [2] : vector<4x17x17xf32> to vector<4x17xf32>
    %50 = vector.shape_cast %49 : vector<4x17xf32> to vector<4x17x1xf32>
    %51 = vector.broadcast %50 : vector<4x17x1xf32> to vector<4x17x17xf32>
    %52 = arith.subf %48, %51 : vector<4x17x17xf32>
    %53 = math.exp %52 : vector<4x17x17xf32>
    %cst_22 = arith.constant dense<0.000000e+00> : vector<4x17xf32>
    %54 = vector.multi_reduction <add>, %53, %cst_22 [2] : vector<4x17x17xf32> to vector<4x17xf32>
    %55 = vector.shape_cast %54 : vector<4x17xf32> to vector<4x17x1xf32>
    %56 = tpu.reciprocal %55 {approx = true} : vector<4x17x1xf32> -> vector<4x17x1xf32>
    %57 = vector.broadcast %56 : vector<4x17x1xf32> to vector<4x17x17xf32>
    %58 = arith.mulf %53, %57 : vector<4x17x17xf32>
    %59 = arith.truncf %58 : vector<4x17x17xf32> to vector<4x17x17xbf16>
    %60 = arith.truncf %43 : vector<17x4x8xf32> to vector<17x4x8xbf16>
    "tpu.trace_start"() <{level = 10 : i32, message = "hqk,khd->qhd"}> : () -> ()
    %cst_23 = arith.constant dense<0.000000e+00> : vector<4x8x17xf32>
    %61 = tpu.matmul %60, %59, %cst_23 {dimension_numbers = #tpu.dot_dimension_numbers<[0], [2], [2], [1], [0, 1, 0, 2, 1, 1], [1], [0]>} : vector<17x4x8xbf16>, vector<4x17x17xbf16>, vector<4x8x17xf32> -> vector<4x8x17xf32>
    %62 = tpu.transpose %61, [2, 0, 1] : vector<4x8x17xf32> -> vector<17x4x8xf32>
    "tpu.trace_stop"() : () -> ()
    %63 = vector.shape_cast %62 : vector<17x4x8xf32> to vector<17x32xf32>
    %64 = arith.truncf %63 : vector<17x32xf32> to vector<17x32xbf16>
    %c0_24 = arith.constant 0 : index
    %c0_25 = arith.constant 0 : index
    %c0_26 = arith.constant 0 : index
    %65 = vector.load %arg7[%c0_24, %c0_25, %c0_26] : memref<1x32x32xbf16, #tpu.memory_space<vmem>>, vector<1x32x32xbf16>
    %66 = vector.shape_cast %65 : vector<1x32x32xbf16> to vector<32x32xbf16>
    %cst_27 = arith.constant dense<0.000000e+00> : vector<17x32xf32>
    %67 = tpu.matmul %64, %66, %cst_27 {dimension_numbers = #tpu.dot_dimension_numbers<[1], [0], [0], [1], [0, 0, 1, 1], [], []>} : vector<17x32xbf16>, vector<32x32xbf16>, vector<17x32xf32> -> vector<17x32xf32>
    %c0_28 = arith.constant 0 : index
    %c0_29 = arith.constant 0 : index
    %c0_30 = arith.constant 0 : index
    %68 = vector.load %arg8[%c0_28, %c0_29, %c0_30] : memref<1x1x32xf32, #tpu.memory_space<vmem>>, vector<1x1x32xf32>
    %69 = vector.shape_cast %68 : vector<1x1x32xf32> to vector<1x32xf32>
    %70 = vector.broadcast %69 : vector<1x32xf32> to vector<17x32xf32>
    %71 = arith.addf %67, %70 : vector<17x32xf32>
    %72 = arith.addf %3, %71 : vector<17x32xf32>
    %c0_31 = arith.constant 0 : index
    %c0_32 = arith.constant 0 : index
    %c0_33 = arith.constant 0 : index
    %73 = vector.load %arg9[%c0_31, %c0_32, %c0_33] : memref<1x1x32xf32, #tpu.memory_space<vmem>>, vector<1x1x32xf32>
    %74 = vector.shape_cast %73 : vector<1x1x32xf32> to vector<1x32xf32>
    %c0_34 = arith.constant 0 : index
    %c0_35 = arith.constant 0 : index
    %c0_36 = arith.constant 0 : index
    %75 = vector.load %arg10[%c0_34, %c0_35, %c0_36] : memref<1x1x32xf32, #tpu.memory_space<vmem>>, vector<1x1x32xf32>
    %76 = vector.shape_cast %75 : vector<1x1x32xf32> to vector<1x32xf32>
    %cst_37 = arith.constant dense<0.000000e+00> : vector<17xf32>
    %77 = vector.multi_reduction <add>, %72, %cst_37 [1] : vector<17x32xf32> to vector<17xf32>
    %78 = vector.shape_cast %77 : vector<17xf32> to vector<17x1xf32>
    %cst_38 = arith.constant 3.200000e+01 : f32
    %79 = vector.broadcast %cst_38 : f32 to vector<17x1xf32>
    %80 = arith.divf %78, %79 : vector<17x1xf32>
    %81 = vector.broadcast %80 : vector<17x1xf32> to vector<17x32xf32>
    %82 = arith.subf %72, %81 : vector<17x32xf32>
    %83 = arith.mulf %82, %82 : vector<17x32xf32>
    %cst_39 = arith.constant dense<0.000000e+00> : vector<17xf32>
    %84 = vector.multi_reduction <add>, %83, %cst_39 [1] : vector<17x32xf32> to vector<17xf32>
    %85 = vector.shape_cast %84 : vector<17xf32> to vector<17x1xf32>
    %cst_40 = arith.constant 3.200000e+01 : f32
    %86 = vector.broadcast %cst_40 : f32 to vector<17x1xf32>
    %87 = arith.divf %85, %86 : vector<17x1xf32>
    %88 = vector.broadcast %80 : vector<17x1xf32> to vector<17x32xf32>
    %89 = arith.subf %72, %88 : vector<17x32xf32>
    %cst_41 = arith.constant 9.99999974E-6 : f32
    %90 = vector.broadcast %cst_41 : f32 to vector<17x1xf32>
    %91 = arith.addf %87, %90 : vector<17x1xf32>
    %92 = math.rsqrt %91 : vector<17x1xf32>
    %93 = vector.broadcast %92 : vector<17x1xf32> to vector<17x32xf32>
    %94 = arith.mulf %89, %93 : vector<17x32xf32>
    %95 = vector.broadcast %74 : vector<1x32xf32> to vector<17x32xf32>
    %96 = arith.mulf %94, %95 : vector<17x32xf32>
    %97 = vector.broadcast %76 : vector<1x32xf32> to vector<17x32xf32>
    %98 = arith.addf %96, %97 : vector<17x32xf32>
    %99 = arith.truncf %98 : vector<17x32xf32> to vector<17x32xbf16>
    %c0_42 = arith.constant 0 : index
    %c0_43 = arith.constant 0 : index
    %c0_44 = arith.constant 0 : index
    %100 = vector.load %arg11[%c0_42, %c0_43, %c0_44] : memref<1x32x128xbf16, #tpu.memory_space<vmem>>, vector<1x32x128xbf16>
    %101 = vector.shape_cast %100 : vector<1x32x128xbf16> to vector<32x128xbf16>
    %cst_45 = arith.constant dense<0.000000e+00> : vector<17x128xf32>
    %102 = tpu.matmul %99, %101, %cst_45 {dimension_numbers = #tpu.dot_dimension_numbers<[1], [0], [0], [1], [0, 0, 1, 1], [], []>} : vector<17x32xbf16>, vector<32x128xbf16>, vector<17x128xf32> -> vector<17x128xf32>
    %c0_46 = arith.constant 0 : index
    %c0_47 = arith.constant 0 : index
    %c0_48 = arith.constant 0 : index
    %103 = vector.load %arg12[%c0_46, %c0_47, %c0_48] : memref<1x1x128xf32, #tpu.memory_space<vmem>>, vector<1x1x128xf32>
    %104 = vector.shape_cast %103 : vector<1x1x128xf32> to vector<1x128xf32>
    %105 = vector.broadcast %104 : vector<1x128xf32> to vector<17x128xf32>
    %106 = arith.addf %102, %105 : vector<17x128xf32>
    %cst_49 = arith.constant 5.000000e-01 : f32
    %107 = vector.broadcast %cst_49 : f32 to vector<17x128xf32>
    %108 = arith.mulf %107, %106 : vector<17x128xf32>
    %cst_50 = arith.constant 0.707106769 : f32
    %109 = vector.broadcast %cst_50 : f32 to vector<17x128xf32>
    %110 = arith.mulf %106, %109 : vector<17x128xf32>
    %111 = math.erf %110 : vector<17x128xf32>
    %cst_51 = arith.constant 1.000000e+00 : f32
    %112 = vector.broadcast %cst_51 : f32 to vector<17x128xf32>
    %113 = arith.addf %112, %111 : vector<17x128xf32>
    %114 = arith.mulf %108, %113 : vector<17x128xf32>
    %115 = arith.truncf %114 : vector<17x128xf32> to vector<17x128xbf16>
    %c0_52 = arith.constant 0 : index
    %c0_53 = arith.constant 0 : index
    %c0_54 = arith.constant 0 : index
    %116 = vector.load %arg13[%c0_52, %c0_53, %c0_54] : memref<1x128x32xbf16, #tpu.memory_space<vmem>>, vector<1x128x32xbf16>
    %117 = vector.shape_cast %116 : vector<1x128x32xbf16> to vector<128x32xbf16>
    %cst_55 = arith.constant dense<0.000000e+00> : vector<17x32xf32>
    %118 = tpu.matmul %115, %117, %cst_55 {dimension_numbers = #tpu.dot_dimension_numbers<[1], [0], [0], [1], [0, 0, 1, 1], [], []>} : vector<17x128xbf16>, vector<128x32xbf16>, vector<17x32xf32> -> vector<17x32xf32>
    %c0_56 = arith.constant 0 : index
    %c0_57 = arith.constant 0 : index
    %c0_58 = arith.constant 0 : index
    %119 = vector.load %arg14[%c0_56, %c0_57, %c0_58] : memref<1x1x32xf32, #tpu.memory_space<vmem>>, vector<1x1x32xf32>
    %120 = vector.shape_cast %119 : vector<1x1x32xf32> to vector<1x32xf32>
    %121 = vector.broadcast %120 : vector<1x32xf32> to vector<17x32xf32>
    %122 = arith.addf %118, %121 : vector<17x32xf32>
    %123 = arith.addf %72, %122 : vector<17x32xf32>
    %c0_59 = arith.constant 0 : index
    %c0_60 = arith.constant 0 : index
    %124 = vector.load %arg16[%c0_59, %c0_60] : memref<17x32xf32, #tpu.memory_space<vmem>>, vector<17x32xf32>
    tpu.vector_store %arg16[%c0_59, %c0_60], %123 {strides = array<i32>} : memref<17x32xf32, #tpu.memory_space<vmem>>, vector<17x32xf32>,
    %c1_i32 = arith.constant 1 : i32
    %125 = arith.cmpi eq, %arg1, %c1_i32 : i32
    %126 = arith.extui %125 : i1 to i32
    %c0_i32_61 = arith.constant 0 : i32
    %127 = arith.cmpi ne, %126, %c0_i32_61 : i32
    scf.if %127 {
      %c0_62 = arith.constant 0 : index
      %c0_63 = arith.constant 0 : index
      %c0_64 = arith.constant 0 : index
      %128 = vector.load %arg15[%c0_62, %c0_63, %c0_64] : memref<1x17x32xf32, #tpu.memory_space<vmem>>, vector<1x17x32xf32>
      %129 = vector.shape_cast %128 : vector<1x17x32xf32> to vector<17x32xf32>
      %130 = vector.shape_cast %123 : vector<17x32xf32> to vector<1x17x32xf32>
      tpu.vector_store %arg15[%c0_62, %c0_63, %c0_64], %130 {strides = array<i32>} : memref<1x17x32xf32, #tpu.memory_space<vmem>>, vector<1x17x32xf32>,
    } else {
    }
    return
  }
  func.func @transform_0(%arg0: i32, %arg1: i32) -> (i32, i32, i32) {
    %c0_i32 = arith.constant 0 : i32
    %c0_i32_0 = arith.constant 0 : i32
    %c0_i32_1 = arith.constant 0 : i32
    return %arg0, %c0_i32, %c0_i32_0 : i32, i32, i32
  }
  func.func @transform_1(%arg0: i32, %arg1: i32) -> (i32, i32, i32) {
    %c0_i32 = arith.constant 0 : i32
    %c0_i32_0 = arith.constant 0 : i32
    %c0_i32_1 = arith.constant 0 : i32
    return %arg1, %c0_i32, %c0_i32_0 : i32, i32, i32
  }
  func.func @transform_2(%arg0: i32, %arg1: i32) -> (i32, i32, i32) {
    %c0_i32 = arith.constant 0 : i32
    %c0_i32_0 = arith.constant 0 : i32
    %c0_i32_1 = arith.constant 0 : i32
    return %arg1, %c0_i32, %c0_i32_0 : i32, i32, i32
  }
  func.func @transform_3(%arg0: i32, %arg1: i32) -> (i32, i32, i32) {
    %c0_i32 = arith.constant 0 : i32
    %c0_i32_0 = arith.constant 0 : i32
    %c0_i32_1 = arith.constant 0 : i32
    return %arg1, %c0_i32, %c0_i32_0 : i32, i32, i32
  }
  func.func @transform_4(%arg0: i32, %arg1: i32) -> (i32, i32, i32) {
    %c0_i32 = arith.constant 0 : i32
    %c0_i32_0 = arith.constant 0 : i32
    %c0_i32_1 = arith.constant 0 : i32
    return %arg1, %c0_i32, %c0_i32_0 : i32, i32, i32
  }
  func.func @transform_5(%arg0: i32, %arg1: i32) -> (i32, i32, i32) {
    %c0_i32 = arith.constant 0 : i32
    %c0_i32_0 = arith.constant 0 : i32
    %c0_i32_1 = arith.constant 0 : i32
    return %arg1, %c0_i32, %c0_i32_0 : i32, i32, i32
  }
  func.func @transform_6(%arg0: i32, %arg1: i32) -> (i32, i32, i32) {
    %c0_i32 = arith.constant 0 : i32
    %c0_i32_0 = arith.constant 0 : i32
    %c0_i32_1 = arith.constant 0 : i32
    return %arg1, %c0_i32, %c0_i32_0 : i32, i32, i32
  }
  func.func @transform_7(%arg0: i32, %arg1: i32) -> (i32, i32, i32) {
    %c0_i32 = arith.constant 0 : i32
    %c0_i32_0 = arith.constant 0 : i32
    %c0_i32_1 = arith.constant 0 : i32
    return %arg1, %c0_i32, %c0_i32_0 : i32, i32, i32
  }
  func.func @transform_8(%arg0: i32, %arg1: i32) -> (i32, i32, i32) {
    %c0_i32 = arith.constant 0 : i32
    %c0_i32_0 = arith.constant 0 : i32
    %c0_i32_1 = arith.constant 0 : i32
    return %arg1, %c0_i32, %c0_i32_0 : i32, i32, i32
  }
  func.func @transform_9(%arg0: i32, %arg1: i32) -> (i32, i32, i32) {
    %c0_i32 = arith.constant 0 : i32
    %c0_i32_0 = arith.constant 0 : i32
    %c0_i32_1 = arith.constant 0 : i32
    return %arg1, %c0_i32, %c0_i32_0 : i32, i32, i32
  }
  func.func @transform_10(%arg0: i32, %arg1: i32) -> (i32, i32, i32) {
    %c0_i32 = arith.constant 0 : i32
    %c0_i32_0 = arith.constant 0 : i32
    %c0_i32_1 = arith.constant 0 : i32
    return %arg1, %c0_i32, %c0_i32_0 : i32, i32, i32
  }
  func.func @transform_11(%arg0: i32, %arg1: i32) -> (i32, i32, i32) {
    %c0_i32 = arith.constant 0 : i32
    %c0_i32_0 = arith.constant 0 : i32
    %c0_i32_1 = arith.constant 0 : i32
    return %arg1, %c0_i32, %c0_i32_0 : i32, i32, i32
  }
  func.func @transform_12(%arg0: i32, %arg1: i32) -> (i32, i32, i32) {
    %c0_i32 = arith.constant 0 : i32
    %c0_i32_0 = arith.constant 0 : i32
    %c0_i32_1 = arith.constant 0 : i32
    return %arg1, %c0_i32, %c0_i32_0 : i32, i32, i32
  }
  func.func @transform_13(%arg0: i32, %arg1: i32) -> (i32, i32, i32) {
    %c0_i32 = arith.constant 0 : i32
    %c0_i32_0 = arith.constant 0 : i32
    %c0_i32_1 = arith.constant 0 : i32
    return %arg0, %c0_i32, %c0_i32_0 : i32, i32, i32
  }
}

module attributes {stable_mosaic.version = 11 : i64} {
  func.func @_head_kernel(%arg0: memref<2x32xf32, #tpu.memory_space<vmem>>, %arg1: memref<1x32xf32, #tpu.memory_space<vmem>>, %arg2: memref<1x32xf32, #tpu.memory_space<vmem>>, %arg3: memref<32x128xbf16, #tpu.memory_space<vmem>>, %arg4: memref<1x128xf32, #tpu.memory_space<vmem>>, %arg5: memref<2x128xf32, #tpu.memory_space<vmem>>) attributes {dimension_semantics = [], scalar_prefetch = 0 : i64, scratch_operands = 0 : i64, tpu.core_type = #tpu.core_type<tc>} {
    %c0 = arith.constant 0 : index
    %c0_0 = arith.constant 0 : index
    %0 = vector.load %arg0[%c0, %c0_0] : memref<2x32xf32, #tpu.memory_space<vmem>>, vector<2x32xf32>
    %c0_1 = arith.constant 0 : index
    %c0_2 = arith.constant 0 : index
    %1 = vector.load %arg1[%c0_1, %c0_2] : memref<1x32xf32, #tpu.memory_space<vmem>>, vector<1x32xf32>
    %c0_3 = arith.constant 0 : index
    %c0_4 = arith.constant 0 : index
    %2 = vector.load %arg2[%c0_3, %c0_4] : memref<1x32xf32, #tpu.memory_space<vmem>>, vector<1x32xf32>
    %cst = arith.constant dense<0.000000e+00> : vector<2xf32>
    %3 = vector.multi_reduction <add>, %0, %cst [1] : vector<2x32xf32> to vector<2xf32>
    %4 = vector.shape_cast %3 : vector<2xf32> to vector<2x1xf32>
    %cst_5 = arith.constant 3.200000e+01 : f32
    %5 = vector.broadcast %cst_5 : f32 to vector<2x1xf32>
    %6 = arith.divf %4, %5 : vector<2x1xf32>
    %7 = vector.broadcast %6 : vector<2x1xf32> to vector<2x32xf32>
    %8 = arith.subf %0, %7 : vector<2x32xf32>
    %9 = arith.mulf %8, %8 : vector<2x32xf32>
    %cst_6 = arith.constant dense<0.000000e+00> : vector<2xf32>
    %10 = vector.multi_reduction <add>, %9, %cst_6 [1] : vector<2x32xf32> to vector<2xf32>
    %11 = vector.shape_cast %10 : vector<2xf32> to vector<2x1xf32>
    %cst_7 = arith.constant 3.200000e+01 : f32
    %12 = vector.broadcast %cst_7 : f32 to vector<2x1xf32>
    %13 = arith.divf %11, %12 : vector<2x1xf32>
    %14 = vector.broadcast %6 : vector<2x1xf32> to vector<2x32xf32>
    %15 = arith.subf %0, %14 : vector<2x32xf32>
    %cst_8 = arith.constant 9.99999974E-6 : f32
    %16 = vector.broadcast %cst_8 : f32 to vector<2x1xf32>
    %17 = arith.addf %13, %16 : vector<2x1xf32>
    %18 = math.rsqrt %17 : vector<2x1xf32>
    %19 = vector.broadcast %18 : vector<2x1xf32> to vector<2x32xf32>
    %20 = arith.mulf %15, %19 : vector<2x32xf32>
    %21 = vector.broadcast %1 : vector<1x32xf32> to vector<2x32xf32>
    %22 = arith.mulf %20, %21 : vector<2x32xf32>
    %23 = vector.broadcast %2 : vector<1x32xf32> to vector<2x32xf32>
    %24 = arith.addf %22, %23 : vector<2x32xf32>
    %25 = arith.truncf %24 : vector<2x32xf32> to vector<2x32xbf16>
    %c0_9 = arith.constant 0 : index
    %c0_10 = arith.constant 0 : index
    %26 = vector.load %arg3[%c0_9, %c0_10] : memref<32x128xbf16, #tpu.memory_space<vmem>>, vector<32x128xbf16>
    %cst_11 = arith.constant dense<0.000000e+00> : vector<2x128xf32>
    %27 = tpu.matmul %25, %26, %cst_11 {dimension_numbers = #tpu.dot_dimension_numbers<[1], [0], [0], [1], [0, 0, 1, 1], [], []>} : vector<2x32xbf16>, vector<32x128xbf16>, vector<2x128xf32> -> vector<2x128xf32>
    %c0_12 = arith.constant 0 : index
    %c0_13 = arith.constant 0 : index
    %28 = vector.load %arg4[%c0_12, %c0_13] : memref<1x128xf32, #tpu.memory_space<vmem>>, vector<1x128xf32>
    %29 = vector.broadcast %28 : vector<1x128xf32> to vector<2x128xf32>
    %30 = arith.addf %27, %29 : vector<2x128xf32>
    %c0_14 = arith.constant 0 : index
    %c0_15 = arith.constant 0 : index
    %31 = vector.load %arg5[%c0_14, %c0_15] : memref<2x128xf32, #tpu.memory_space<vmem>>, vector<2x128xf32>
    tpu.vector_store %arg5[%c0_14, %c0_15], %30 {strides = array<i32>} : memref<2x128xf32, #tpu.memory_space<vmem>>, vector<2x128xf32>,
    return
  }
}

</mosaic_0001>

<llo_original>
// kernel: vit_forward.3
$region0: #{vit_forward.3}
  #allocation0 [shape = 'u32[]', space=smem, size = 0x4, offset = 0x4, fixed_abs, tag = 'smem constant byte address 0x4 - core index']
  #allocation1 [shape = 'u32[144,128]{1,0:T(1,128)}', space=vmem, size = 0x12000, scoped, tag = 'internal scratch']
  %s0 = inlined_call_operand.vmem [shape: f32[32,64], index: 0, kind: input, shape index: {}]
  %s1 = inlined_call_operand.vmem [shape: bf16[64,32], index: 1, kind: input, shape index: {}]
  %s2 = inlined_call_operand.vmem [shape: f32[1,32], index: 2, kind: input, shape index: {}]
  %s3 = inlined_call_operand.vmem [shape: f32[32,32], index: 3, kind: output, shape index: {}]
  %s4 = sld [smem:[#allocation0]]
  $region22: #{vit_forward.3} parent=0
    _
  %s6 = ssub.s32 1, %s4
  %s7 = scalar_select 0, %s6, %s4
  // Predicated region
  $region2: #{vit_forward.3} parent=0 // pred_check
    _
  $region3: #{vit_forward.3} parent=0 // pred_check_branch
    %9 = sbr.rel (0) target = $region5
  $region4: #{vit_forward.3} parent=0 // pred_region
    _
  $region5: #{vit_forward.3} parent=0 // pred_fallthru
    _
  // Predicated region
  $region6: #{vit_forward.3} parent=0 // pred_check
    _
  $region7: #{vit_forward.3} parent=0 // pred_check_branch
    %11 = sbr.rel (0) target = $region9
  $region8: #{vit_forward.3} parent=0 // pred_region
    _
  $region9: #{vit_forward.3} parent=0 // pred_fallthru
    _
  // Predicated region
  $region10: #{vit_forward.3} parent=0 // pred_check
    _
  $region11: #{vit_forward.3} parent=0 // pred_check_branch
    %13 = sbr.rel (0) target = $region13
  $region12: #{vit_forward.3} parent=0 // pred_region
    _
  $region13: #{vit_forward.3} parent=0 // pred_fallthru
    _
  %v15 = vld [vmem:[%s0] sm:$0xff]
  %v16 = vld [vmem:[%s0 + $0x8] sm:$0xff]
  %v17 = vld [vmem:[%s0 + $0x10] sm:$0xff]
  %v18 = vld [vmem:[%s0 + $0x18] sm:$0xff]
  %v19 = vpack.c.bf16 %v16, %v15
  %v20 = vpack.c.bf16 %v18, %v17
  %v21 = vld [vmem:[%s1] sm:$0xf]
  %v22 = vld [vmem:[%s1 + $0x4] sm:$0xf]
  %v23 = vld [vmem:[%s1 + $0x8] sm:$0xf]
  %v24 = vld [vmem:[%s1 + $0xc] sm:$0xf]
  %v25 = vld [vmem:[%s1 + $0x10] sm:$0xf]
  %v26 = vld [vmem:[%s1 + $0x14] sm:$0xf]
  %v27 = vld [vmem:[%s1 + $0x18] sm:$0xf]
  %v28 = vld [vmem:[%s1 + $0x1c] sm:$0xf]
  %v29 = vld [vmem:[%s2] sm:$0x1]
  %v31 = vlaneseq
  %v32 = vshrl.u32 %v31, 7
  %v33 = vsub.s32 0, %v32
  %v34 = vrot.slane %v29, %v33
  %v44 = vunpack.c.l.b16 %v21
  %v45 = vunpack.c.l.b16 %v22
  %v46 = vunpack.c.l.b16 %v23
  %v47 = vunpack.c.l.b16 %v24
  %v48 = vunpack.c.l.b16 %v25
  %v49 = vunpack.c.l.b16 %v26
  %v50 = vunpack.c.l.b16 %v27
  %v51 = vunpack.c.l.b16 %v28
  %v52 = vpack.c.b16 %v45, %v44
  %v53 = vpack.c.b16 %v47, %v46
  %v54 = vpack.c.b16 %v49, %v48
  %v55 = vpack.c.b16 %v51, %v50
  %vm60 = vcmask 523264
  %v62 = vsel %vm60, %v19, 0
  %v65 = vsel %vm60, %v20, 0
  %67 = vmatprep.subr.bf16.mxu0 0
  %68 = vmatpush1.bf16.msra.mxu0 0
  %69 = vmatprep.subr.bf16.mxu0 0
  %70 = vmatpush1.bf16.msra.mxu0 0
  %71 = vmatprep.subr.bf16.mxu0 0
  %72 = vmatpush1.bf16.msra.mxu0 0
  %73 = vmatprep.subr.bf16.mxu0 0
  %74 = vmatpush1.bf16.msra.mxu0 0
  %75 = vmatprep.subr.bf16.mxu0 0
  %76 = vmatpush1.bf16.msra.mxu0 %v55
  %77 = vmatprep.subr.bf16.mxu0 0
  %78 = vmatpush1.bf16.msra.mxu0 %v54
  %79 = vmatprep.subr.bf16.mxu0 0
  %80 = vmatpush1.bf16.msra.mxu0 %v53
  %81 = vmatprep.subr.bf16.mxu0 0
  %82 = vmatpush1.bf16.msra.mxu0 %v52
  %83 = vmatprep.subr.bf16.mxu0 0
  %84 = vmatpush2.bf16.msra.mxu0 0
  %85 = vmatprep.subr.bf16.mxu0 0
  %86 = vmatpush2.bf16.msra.mxu0 0
  %87 = vmatprep.subr.bf16.mxu0 0
  %88 = vmatpush2.bf16.msra.mxu0 0
  %89 = vmatprep.subr.bf16.mxu0 0
  %90 = vmatpush2.bf16.msra.mxu0 0
  %91 = vmatprep.subr.bf16.mxu0 0
  %92 = vmatpush2.bf16.msra.mxu0 0
  %93 = vmatprep.subr.bf16.mxu0 0
  %94 = vmatpush2.bf16.msra.mxu0 0
  %95 = vmatprep.subr.bf16.mxu0 0
  %96 = vmatpush2.bf16.msra.mxu0 0
  %97 = vmatprep.subr.bf16.mxu0 0
  %98 = vmatpush2.bf16.msra.mxu0 0
  %99 = vmatprep.mubr.bf16.mxu0 0
  %100 = vmatmul.mubr.bf16.gmra.mxu0 %v62
  %v101 = vpop.f32.mrf.mxu0
  %v102 = vadd.f32 %v34, %v101
  %v103 = vpop.f32.mrf.mxu0
  %v104 = vpop.f32.mrf.mxu0
  %v105 = vadd.f32 %v34, %v104
  %v106 = vpop.f32.mrf.mxu0
  %107 = vmatprep.mubr.bf16.mxu0 0
  %108 = vmatmul.mubr.bf16.gmra.mxu0 %v65
  %v109 = vpop.f32.mrf.mxu0
  %v110 = vadd.f32 %v34, %v109
  %v111 = vpop.f32.mrf.mxu0
  %v112 = vpop.f32.mrf.mxu0
  %v113 = vadd.f32 %v34, %v112
  %v114 = vpop.f32.mrf.mxu0
  %115 = vdwg.mxu0
  %vm116 = vcmask 261120
  %117 = vst.msk [vmem:[%s3] sm:$0xff] %vm116, %v102
  %118 = vst.msk [vmem:[%s3 + $0x8] sm:$0xff] %vm116, %v105
  %119 = vst.msk [vmem:[%s3 + $0x10] sm:$0xff] %vm116, %v110
  %120 = vst.msk [vmem:[%s3 + $0x18] sm:$0xff] %vm116, %v113
  // Predicated region
  $region14: #{vit_forward.3} parent=0 // pred_check
    _
  $region15: #{vit_forward.3} parent=0 // pred_check_branch
    %122 = sbr.rel (0) target = $region17
  $region16: #{vit_forward.3} parent=0 // pred_region
    _
  $region17: #{vit_forward.3} parent=0 // pred_fallthru
    _
  // Predicated region
  $region18: #{vit_forward.3} parent=0 // pred_check
    _
  $region19: #{vit_forward.3} parent=0 // pred_check_branch
    %124 = sbr.rel (0) target = $region21
  $region20: #{vit_forward.3} parent=0 // pred_region
    _
  $region21: #{vit_forward.3} parent=0 // pred_fallthru
    _

// kernel: vit_forward.5
$region0: #{vit_forward.5}
  #allocation0 [shape = 'u32[]', space=smem, size = 0x4, offset = 0x4, fixed_abs, tag = 'smem constant byte address 0x4 - core index']
  #allocation1 [shape = 'u32[144,128]{1,0:T(1,128)}', space=vmem, size = 0x12000, scoped, tag = 'internal scratch']
  %s0 = inlined_call_operand.vmem [shape: f32[2,32], index: 0, kind: input, shape index: {}]
  %s1 = inlined_call_operand.vmem [shape: f32[1,32], index: 1, kind: input, shape index: {}]
  %s2 = inlined_call_operand.vmem [shape: f32[1,32], index: 2, kind: input, shape index: {}]
  %s3 = inlined_call_operand.vmem [shape: bf16[32,128], index: 3, kind: input, shape index: {}]
  %s4 = inlined_call_operand.vmem [shape: f32[1,128], index: 4, kind: input, shape index: {}]
  %s5 = inlined_call_operand.hbm [shape: f32[2,128], index: 5, kind: output, shape index: {}]
  %s6 = sld [smem:[#allocation0]]
  $region30: #{vit_forward.5} parent=0
    _
  %s8 = ssub.s32 1, %s6
  %s9 = scalar_select 0, %s8, %s6
  $region1: #{vit_forward.5} parent=0
    #allocation2 [shape = 'u8[1024]{0}', space=vmem, size = 0x400, scoped, tag = 'output window, operand 0, single buffered']
    #allocation3 [shape = 's32[1]{0}', space=sflag, size = 0x4, scoped, tag = 'scoped memory for vit_forward.5']
    %10 = vsyncpa [#allocation3], 0
    // Predicated region
    $region2: #{vit_forward.5} parent=1 // pred_check
      _
    $region3: #{vit_forward.5} parent=1 // pred_check_branch
      %12 = sbr.rel (0) target = $region5
    $region4: #{vit_forward.5} parent=1 // pred_region
      _
    $region5: #{vit_forward.5} parent=1 // pred_fallthru
      _
    // Predicated region
    $region6: #{vit_forward.5} parent=1 // pred_check
      _
    $region7: #{vit_forward.5} parent=1 // pred_check_branch
      %14 = sbr.rel (0) target = $region9
    $region8: #{vit_forward.5} parent=1 // pred_region
      _
    $region9: #{vit_forward.5} parent=1 // pred_fallthru
      _
    // Predicated region
    $region10: #{vit_forward.5} parent=1 // pred_check
      _
    $region11: #{vit_forward.5} parent=1 // pred_check_branch
      %16 = sbr.rel (0) target = $region13
    $region12: #{vit_forward.5} parent=1 // pred_region
      _
    $region13: #{vit_forward.5} parent=1 // pred_fallthru
      _
    // Predicated region
    $region14: #{vit_forward.5} parent=1 // pred_check
      _
    $region15: #{vit_forward.5} parent=1 // pred_check_branch
      %18 = sbr.rel (0) target = $region17
    $region16: #{vit_forward.5} parent=1 // pred_region
      _
    $region17: #{vit_forward.5} parent=1 // pred_fallthru
      _
    // Predicated region
    $region18: #{vit_forward.5} parent=1 // pred_check
      _
    $region19: #{vit_forward.5} parent=1 // pred_check_branch
      %20 = sbr.rel (0) target = $region21
    $region20: #{vit_forward.5} parent=1 // pred_region
      _
    $region21: #{vit_forward.5} parent=1 // pred_fallthru
      _
    %v22 = vld [vmem:[%s0] sm:$0x3]
    %v23 = vld [vmem:[%s1] sm:$0x1]
    %v24 = vld [vmem:[%s2] sm:$0x1]
    %vm25 = vcmask 254976
    %v26 = vsel %vm25, %v22, 0.0
    %27 = vadd.xlane.f32.xlu0 %v26
    %v28 = vpop.xlane.xlu0 %27
    %v29 = vrcp.pop 32.0
    %v30 = vmul.f32 %v28, %v29
    %v31 = vsub.f32 %v22, %v30
    %v32 = vmul.f32 %v31, %v31
    %v33 = vsel %vm25, %v32, 0.0
    %34 = vadd.xlane.f32.xlu0 %v33
    %v35 = vpop.xlane.xlu0 %34
    %v36 = vmul.f32 %v35, %v29
    %v37 = vadd.f32 %v36, 1e-05
    %v38 = vrsqrt.pop %v37
    %v39 = vmul.f32 %v31, %v38
    %v41 = vlaneseq
    %v42 = vshrl.u32 %v41, 7
    %v43 = vsub.s32 0, %v42
    %v44 = vrot.slane %v23, %v43
    %v46 = vmul.f32 %v39, %v44
    %v48 = vlaneseq
    %v49 = vshrl.u32 %v48, 7
    %v50 = vsub.s32 0, %v49
    %v51 = vrot.slane %v24, %v50
    %v53 = vadd.f32 %v46, %v51
    %v54 = vpack.c.bf16 %v53, %v53
    %v55 = vld [vmem:[%s3] sm:$0xf]
    %v56 = vld [vmem:[%s3 + $0x4] sm:$0xf]
    %v57 = vld [vmem:[%s3 + $0x8] sm:$0xf]
    %v58 = vld [vmem:[%s3 + $0xc] sm:$0xf]
    %v59 = vld [vmem:[%s4] sm:$0x1]
    %v61 = vlaneseq
    %v62 = vshrl.u32 %v61, 7
    %v63 = vsub.s32 0, %v62
    %v64 = vrot.slane %v59, %v63
    %v70 = vunpack.c.l.b16 %v55
    %v71 = vunpack.c.l.b16 %v56
    %v72 = vunpack.c.l.b16 %v57
    %v73 = vunpack.c.l.b16 %v58
    %v74 = vpack.c.b16 %v71, %v70
    %v75 = vpack.c.b16 %v73, %v72
    %vm78 = vcmask 261120
    %v80 = vsel %vm78, %v54, 0
    %82 = vmatprep.subr.bf16.mxu0 0
    %83 = vmatpush1.bf16.msra.mxu0 0
    %84 = vmatprep.subr.bf16.mxu0 0
    %85 = vmatpush1.bf16.msra.mxu0 0
    %86 = vmatprep.subr.bf16.mxu0 0
    %87 = vmatpush1.bf16.msra.mxu0 0
    %88 = vmatprep.subr.bf16.mxu0 0
    %89 = vmatpush1.bf16.msra.mxu0 0
    %90 = vmatprep.subr.bf16.mxu0 0
    %91 = vmatpush1.bf16.msra.mxu0 0
    %92 = vmatprep.subr.bf16.mxu0 0
    %93 = vmatpush1.bf16.msra.mxu0 0
    %94 = vmatprep.subr.bf16.mxu0 0
    %95 = vmatpush1.bf16.msra.mxu0 %v75
    %96 = vmatprep.subr.bf16.mxu0 0
    %97 = vmatpush1.bf16.msra.mxu0 %v74
    %98 = vmatprep.subr.bf16.mxu0 0
    %99 = vmatpush2.bf16.msra.mxu0 0
    %100 = vmatprep.subr.bf16.mxu0 0
    %101 = vmatpush2.bf16.msra.mxu0 0
    %102 = vmatprep.subr.bf16.mxu0 0
    %103 = vmatpush2.bf16.msra.mxu0 0
    %104 = vmatprep.subr.bf16.mxu0 0
    %105 = vmatpush2.bf16.msra.mxu0 0
    %106 = vmatprep.subr.bf16.mxu0 0
    %107 = vmatpush2.bf16.msra.mxu0 0
    %108 = vmatprep.subr.bf16.mxu0 0
    %109 = vmatpush2.bf16.msra.mxu0 0
    %110 = vmatprep.subr.bf16.mxu0 0
    %111 = vmatpush2.bf16.msra.mxu0 0
    %112 = vmatprep.subr.bf16.mxu0 0
    %113 = vmatpush2.bf16.msra.mxu0 0
    %114 = vmatprep.mubr.bf16.mxu0 0
    %115 = vmatmul.mubr.bf16.gmra.mxu0 %v80
    %v116 = vpop.f32.mrf.mxu0
    %v117 = vadd.f32 %v64, %v116
    %v118 = vpop.f32.mrf.mxu0
    %v119 = vpop.f32.mrf.mxu0
    %v120 = vpop.f32.mrf.mxu0
    %121 = vdwg.mxu0
    %122 = vst [vmem:[#allocation2] sm:$0x3] %v117
    // Predicated region
    $region22: #{vit_forward.5} parent=1 // pred_check
      _
    $region23: #{vit_forward.5} parent=1 // pred_check_branch
      %124 = sbr.rel (0) target = $region25
    $region24: #{vit_forward.5} parent=1 // pred_region
      %s126 = ssub.s32 32, 32
      %127 = vsyncadd [#allocation3], %s126
      %s129 = sshll.u32 [#allocation2], 4
      %s130 = int_to_ptr.vmem [resolvable:$true] %s129
      %132 = dma.vmem_to_hbm [thread:$0]  %s130, 32, %s5, [#allocation3]
    $region25: #{vit_forward.5} parent=1 // pred_fallthru
      _
    // Predicated region
    $region26: #{vit_forward.5} parent=1 // pred_check
      _
    $region27: #{vit_forward.5} parent=1 // pred_check_branch
      %134 = sbr.rel (0) target = $region29
    $region28: #{vit_forward.5} parent=1 // pred_region
      %135 = dma.done [#allocation3], 32
    $region29: #{vit_forward.5} parent=1 // pred_fallthru
      _
    %136 = vsyncpa [#allocation3], 1

// kernel: vit_forward.4
$region0: #{vit_forward.4}
  #allocation0 [shape = 'u32[]', space=smem, size = 0x4, offset = 0x4, fixed_abs, tag = 'smem constant byte address 0x4 - core index']
  #allocation1 [shape = 'u32[144,128]{1,0:T(1,128)}', space=vmem, size = 0x12000, scoped, tag = 'internal scratch']
  #allocation2 [shape = 'f32[17,32]{1,0:T(8,128)}', space=vmem, size = 0x3000, scoped, tag = 'scratch operand']
  %s0 = inlined_call_operand.vmem [shape: f32[2,17,32], index: 0, kind: input, shape index: {}]
  %s1 = inlined_call_operand.vmem [shape: f32[2,1,32], index: 1, kind: input, shape index: {}]
  %s2 = inlined_call_operand.vmem [shape: f32[2,1,32], index: 2, kind: input, shape index: {}]
  %s3 = inlined_call_operand.vmem [shape: bf16[2,32,96], index: 3, kind: input, shape index: {}]
  %s4 = inlined_call_operand.vmem [shape: f32[2,1,96], index: 4, kind: input, shape index: {}]
  %s5 = inlined_call_operand.vmem [shape: bf16[2,32,32], index: 5, kind: input, shape index: {}]
  %s6 = inlined_call_operand.vmem [shape: f32[2,1,32], index: 6, kind: input, shape index: {}]
  %s7 = inlined_call_operand.vmem [shape: f32[2,1,32], index: 7, kind: input, shape index: {}]
  %s8 = inlined_call_operand.vmem [shape: f32[2,1,32], index: 8, kind: input, shape index: {}]
  %s9 = inlined_call_operand.vmem [shape: bf16[2,32,128], index: 9, kind: input, shape index: {}]
  %s10 = inlined_call_operand.vmem [shape: f32[2,1,128], index: 10, kind: input, shape index: {}]
  %s11 = inlined_call_operand.vmem [shape: bf16[2,128,32], index: 11, kind: input, shape index: {}]
  %s12 = inlined_call_operand.vmem [shape: f32[2,1,32], index: 12, kind: input, shape index: {}]
  %s13 = inlined_call_operand.vmem [shape: f32[2,17,32], index: 13, kind: output, shape index: {}]
  %s14 = sld [smem:[#allocation0]]
  $region93: #{vit_forward.4} parent=0
    _
  %s16 = ssub.s32 1, %s14
  %s17 = scalar_select 0, %s16, %s14
  loop: start=0, step=1, limit=6
  $region2: #{vit_forward.4} parent=0 // loop_pre_header
    _
  $region3: #{vit_forward.4} parent=0 // loop_header
    %s19 = sphi 0, %s23
    %p20 = scmp.ge.s32.totalorder %s19, 6
    %s26 = sphi 0, %s38
    %s27 = sphi 0, %s34
    %s28 = sphi 0, %s26
    %s29 = sphi 0, %s27
    %s30 = sphi 0, %s28
    %s31 = sphi 0, %s29
    %s41 = sphi 0, %s43
    %s44 = sphi 0, %s41
    %s45 = sphi 0, %s44
    %s61 = sphi 0, %s45
    %s67 = sphi 0, %s69
    %s70 = sphi 0, %s67
    %s71 = sphi 0, %s70
    %s87 = sphi 0, %s71
    %s93 = sphi 0, %s95
    %s96 = sphi 0, %s93
    %s97 = sphi 0, %s96
    %s113 = sphi 0, %s97
    %s119 = sphi 0, %s121
    %s122 = sphi 0, %s119
    %s123 = sphi 0, %s122
    %s139 = sphi 0, %s123
    %s145 = sphi 0, %s147
    %s148 = sphi 0, %s145
    %s149 = sphi 0, %s148
    %s165 = sphi 0, %s149
    %s171 = sphi 0, %s173
    %s174 = sphi 0, %s171
    %s175 = sphi 0, %s174
    %s191 = sphi 0, %s175
    %s197 = sphi 0, %s199
    %s200 = sphi 0, %s197
    %s201 = sphi 0, %s200
    %s217 = sphi 0, %s201
    %s223 = sphi 0, %s225
    %s226 = sphi 0, %s223
    %s227 = sphi 0, %s226
    %s243 = sphi 0, %s227
    %s249 = sphi 0, %s251
    %s252 = sphi 0, %s249
    %s253 = sphi 0, %s252
    %s269 = sphi 0, %s253
    %s275 = sphi 0, %s277
    %s278 = sphi 0, %s275
    %s279 = sphi 0, %s278
    %s295 = sphi 0, %s279
    %s301 = sphi 0, %s303
    %s304 = sphi 0, %s301
    %s305 = sphi 0, %s304
    %s321 = sphi 0, %s305
    %s327 = sphi 0, %s329
    %s330 = sphi 0, %s327
    %s331 = sphi 0, %s330
    %s347 = sphi 0, %s331
    %s353 = sphi 0, %s355
    %s356 = sphi 0, %s353
    %s357 = sphi 0, %s356
    %s373 = sphi 0, %s357
    %s379 = sphi 0, %s381
    %s382 = sphi 0, %s379
    %s383 = sphi 0, %s382
    %s399 = sphi 0, %s383
  $region4: #{vit_forward.4} parent=0 // loop_header_branch
    %22 = sbr.rel (%p20) target = $region8
  $region5: #{vit_forward.4} parent=0 // loop_body
    %s24 = ssub.s32 %s19, 1
    %s25 = ssub.s32 %s19, 2
    %s32 = sadd.s32 1, %s27
    %p33 = scmp.ge.s32.totalorder %s32, 2
    %s34 = scalar_select %p33, 0, %s32
    %s35 = sadd.s32 1, %s26
    %s36 = scalar_select %p33, %s35, %s26
    %p37 = scmp.ge.s32.totalorder %s36, 2
    %s38 = scalar_select %p37, 0, %s36
    %s39 = ssub.s32 %s26, %s38
    %p40 = scmp.eq.s32.totalorder %s39, 0
    %s42 = sadd.s32 %s41, 1
    %s43 = scalar_select %p40, %s41, %s42
    %p46 = pneg %p40
    %p47 = scmp.eq.s32.totalorder %s19, 3
    %p48 = por %p46, %p47
    %p49 = scmp.ne.s32.totalorder %s41, %s44
    %p50 = scmp.eq.s32.totalorder %s19, 0
    %p51 = por %p49, %p50
    %p52 = scmp.ne.s32.totalorder %s41, %s44
    %p53 = scmp.eq.s32.totalorder %s24, 3
    %p54 = por %p52, %p53
    %p55 = scmp.ne.s32.totalorder %s44, %s45
    %p56 = scmp.eq.s32.totalorder %s24, 0
    %p57 = por %p55, %p56
    %p58 = scmp.ne.s32.totalorder %s44, %s45
    %p59 = scmp.eq.s32.totalorder %s25, 3
    %p60 = por %p58, %p59
    %p62 = scmp.ne.s32.totalorder %s45, %s61
    %p63 = scmp.eq.s32.totalorder %s25, 0
    %p64 = por %p62, %p63
    %s65 = ssub.s32 %s27, %s34
    %p66 = scmp.eq.s32.totalorder %s65, 0
    %s68 = sadd.s32 %s67, 1
    %s69 = scalar_select %p66, %s67, %s68
    %p72 = pneg %p66
    %p73 = scmp.eq.s32.totalorder %s19, 3
    %p74 = por %p72, %p73
    %p75 = scmp.ne.s32.totalorder %s67, %s70
    %p76 = scmp.eq.s32.totalorder %s19, 0
    %p77 = por %p75, %p76
    %p78 = scmp.ne.s32.totalorder %s67, %s70
    %p79 = scmp.eq.s32.totalorder %s24, 3
    %p80 = por %p78, %p79
    %p81 = scmp.ne.s32.totalorder %s70, %s71
    %p82 = scmp.eq.s32.totalorder %s24, 0
    %p83 = por %p81, %p82
    %p84 = scmp.ne.s32.totalorder %s70, %s71
    %p85 = scmp.eq.s32.totalorder %s25, 3
    %p86 = por %p84, %p85
    %p88 = scmp.ne.s32.totalorder %s71, %s87
    %p89 = scmp.eq.s32.totalorder %s25, 0
    %p90 = por %p88, %p89
    %s91 = ssub.s32 %s27, %s34
    %p92 = scmp.eq.s32.totalorder %s91, 0
    %s94 = sadd.s32 %s93, 1
    %s95 = scalar_select %p92, %s93, %s94
    %p98 = pneg %p92
    %p99 = scmp.eq.s32.totalorder %s19, 3
    %p100 = por %p98, %p99
    %p101 = scmp.ne.s32.totalorder %s93, %s96
    %p102 = scmp.eq.s32.totalorder %s19, 0
    %p103 = por %p101, %p102
    %p104 = scmp.ne.s32.totalorder %s93, %s96
    %p105 = scmp.eq.s32.totalorder %s24, 3
    %p106 = por %p104, %p105
    %p107 = scmp.ne.s32.totalorder %s96, %s97
    %p108 = scmp.eq.s32.totalorder %s24, 0
    %p109 = por %p107, %p108
    %p110 = scmp.ne.s32.totalorder %s96, %s97
    %p111 = scmp.eq.s32.totalorder %s25, 3
    %p112 = por %p110, %p111
    %p114 = scmp.ne.s32.totalorder %s97, %s113
    %p115 = scmp.eq.s32.totalorder %s25, 0
    %p116 = por %p114, %p115
    %s117 = ssub.s32 %s27, %s34
    %p118 = scmp.eq.s32.totalorder %s117, 0
    %s120 = sadd.s32 %s119, 1
    %s121 = scalar_select %p118, %s119, %s120
    %p124 = pneg %p118
    %p125 = scmp.eq.s32.totalorder %s19, 3
    %p126 = por %p124, %p125
    %p127 = scmp.ne.s32.totalorder %s119, %s122
    %p128 = scmp.eq.s32.totalorder %s19, 0
    %p129 = por %p127, %p128
    %p130 = scmp.ne.s32.totalorder %s119, %s122
    %p131 = scmp.eq.s32.totalorder %s24, 3
    %p132 = por %p130, %p131
    %p133 = scmp.ne.s32.totalorder %s122, %s123
    %p134 = scmp.eq.s32.totalorder %s24, 0
    %p135 = por %p133, %p134
    %p136 = scmp.ne.s32.totalorder %s122, %s123
    %p137 = scmp.eq.s32.totalorder %s25, 3
    %p138 = por %p136, %p137
    %p140 = scmp.ne.s32.totalorder %s123, %s139
    %p141 = scmp.eq.s32.totalorder %s25, 0
    %p142 = por %p140, %p141
    %s143 = ssub.s32 %s27, %s34
    %p144 = scmp.eq.s32.totalorder %s143, 0
    %s146 = sadd.s32 %s145, 1
    %s147 = scalar_select %p144, %s145, %s146
    %p150 = pneg %p144
    %p151 = scmp.eq.s32.totalorder %s19, 3
    %p152 = por %p150, %p151
    %p153 = scmp.ne.s32.totalorder %s145, %s148
    %p154 = scmp.eq.s32.totalorder %s19, 0
    %p155 = por %p153, %p154
    %p156 = scmp.ne.s32.totalorder %s145, %s148
    %p157 = scmp.eq.s32.totalorder %s24, 3
    %p158 = por %p156, %p157
    %p159 = scmp.ne.s32.totalorder %s148, %s149
    %p160 = scmp.eq.s32.totalorder %s24, 0
    %p161 = por %p159, %p160
    %p162 = scmp.ne.s32.totalorder %s148, %s149
    %p163 = scmp.eq.s32.totalorder %s25, 3
    %p164 = por %p162, %p163
    %p166 = scmp.ne.s32.totalorder %s149, %s165
    %p167 = scmp.eq.s32.totalorder %s25, 0
    %p168 = por %p166, %p167
    %s169 = ssub.s32 %s27, %s34
    %p170 = scmp.eq.s32.totalorder %s169, 0
    %s172 = sadd.s32 %s171, 1
    %s173 = scalar_select %p170, %s171, %s172
    %p176 = pneg %p170
    %p177 = scmp.eq.s32.totalorder %s19, 3
    %p178 = por %p176, %p177
    %p179 = scmp.ne.s32.totalorder %s171, %s174
    %p180 = scmp.eq.s32.totalorder %s19, 0
    %p181 = por %p179, %p180
    %p182 = scmp.ne.s32.totalorder %s171, %s174
    %p183 = scmp.eq.s32.totalorder %s24, 3
    %p184 = por %p182, %p183
    %p185 = scmp.ne.s32.totalorder %s174, %s175
    %p186 = scmp.eq.s32.totalorder %s24, 0
    %p187 = por %p185, %p186
    %p188 = scmp.ne.s32.totalorder %s174, %s175
    %p189 = scmp.eq.s32.totalorder %s25, 3
    %p190 = por %p188, %p189
    %p192 = scmp.ne.s32.totalorder %s175, %s191
    %p193 = scmp.eq.s32.totalorder %s25, 0
    %p194 = por %p192, %p193
    %s195 = ssub.s32 %s27, %s34
    %p196 = scmp.eq.s32.totalorder %s195, 0
    %s198 = sadd.s32 %s197, 1
    %s199 = scalar_select %p196, %s197, %s198
    %p202 = pneg %p196
    %p203 = scmp.eq.s32.totalorder %s19, 3
    %p204 = por %p202, %p203
    %p205 = scmp.ne.s32.totalorder %s197, %s200
    %p206 = scmp.eq.s32.totalorder %s19, 0
    %p207 = por %p205, %p206
    %p208 = scmp.ne.s32.totalorder %s197, %s200
    %p209 = scmp.eq.s32.totalorder %s24, 3
    %p210 = por %p208, %p209
    %p211 = scmp.ne.s32.totalorder %s200, %s201
    %p212 = scmp.eq.s32.totalorder %s24, 0
    %p213 = por %p211, %p212
    %p214 = scmp.ne.s32.totalorder %s200, %s201
    %p215 = scmp.eq.s32.totalorder %s25, 3
    %p216 = por %p214, %p215
    %p218 = scmp.ne.s32.totalorder %s201, %s217
    %p219 = scmp.eq.s32.totalorder %s25, 0
    %p220 = por %p218, %p219
    %s221 = ssub.s32 %s27, %s34
    %p222 = scmp.eq.s32.totalorder %s221, 0
    %s224 = sadd.s32 %s223, 1
    %s225 = scalar_select %p222, %s223, %s224
    %p228 = pneg %p222
    %p229 = scmp.eq.s32.totalorder %s19, 3
    %p230 = por %p228, %p229
    %p231 = scmp.ne.s32.totalorder %s223, %s226
    %p232 = scmp.eq.s32.totalorder %s19, 0
    %p233 = por %p231, %p232
    %p234 = scmp.ne.s32.totalorder %s223, %s226
    %p235 = scmp.eq.s32.totalorder %s24, 3
    %p236 = por %p234, %p235
    %p237 = scmp.ne.s32.totalorder %s226, %s227
    %p238 = scmp.eq.s32.totalorder %s24, 0
    %p239 = por %p237, %p238
    %p240 = scmp.ne.s32.totalorder %s226, %s227
    %p241 = scmp.eq.s32.totalorder %s25, 3
    %p242 = por %p240, %p241
    %p244 = scmp.ne.s32.totalorder %s227, %s243
    %p245 = scmp.eq.s32.totalorder %s25, 0
    %p246 = por %p244, %p245
    %s247 = ssub.s32 %s27, %s34
    %p248 = scmp.eq.s32.totalorder %s247, 0
    %s250 = sadd.s32 %s249, 1
    %s251 = scalar_select %p248, %s249, %s250
    %p254 = pneg %p248
    %p255 = scmp.eq.s32.totalorder %s19, 3
    %p256 = por %p254, %p255
    %p257 = scmp.ne.s32.totalorder %s249, %s252
    %p258 = scmp.eq.s32.totalorder %s19, 0
    %p259 = por %p257, %p258
    %p260 = scmp.ne.s32.totalorder %s249, %s252
    %p261 = scmp.eq.s32.totalorder %s24, 3
    %p262 = por %p260, %p261
    %p263 = scmp.ne.s32.totalorder %s252, %s253
    %p264 = scmp.eq.s32.totalorder %s24, 0
    %p265 = por %p263, %p264
    %p266 = scmp.ne.s32.totalorder %s252, %s253
    %p267 = scmp.eq.s32.totalorder %s25, 3
    %p268 = por %p266, %p267
    %p270 = scmp.ne.s32.totalorder %s253, %s269
    %p271 = scmp.eq.s32.totalorder %s25, 0
    %p272 = por %p270, %p271
    %s273 = ssub.s32 %s27, %s34
    %p274 = scmp.eq.s32.totalorder %s273, 0
    %s276 = sadd.s32 %s275, 1
    %s277 = scalar_select %p274, %s275, %s276
    %p280 = pneg %p274
    %p281 = scmp.eq.s32.totalorder %s19, 3
    %p282 = por %p280, %p281
    %p283 = scmp.ne.s32.totalorder %s275, %s278
    %p284 = scmp.eq.s32.totalorder %s19, 0
    %p285 = por %p283, %p284
    %p286 = scmp.ne.s32.totalorder %s275, %s278
    %p287 = scmp.eq.s32.totalorder %s24, 3
    %p288 = por %p286, %p287
    %p289 = scmp.ne.s32.totalorder %s278, %s279
    %p290 = scmp.eq.s32.totalorder %s24, 0
    %p291 = por %p289, %p290
    %p292 = scmp.ne.s32.totalorder %s278, %s279
    %p293 = scmp.eq.s32.totalorder %s25, 3
    %p294 = por %p292, %p293
    %p296 = scmp.ne.s32.totalorder %s279, %s295
    %p297 = scmp.eq.s32.totalorder %s25, 0
    %p298 = por %p296, %p297
    %s299 = ssub.s32 %s27, %s34
    %p300 = scmp.eq.s32.totalorder %s299, 0
    %s302 = sadd.s32 %s301, 1
    %s303 = scalar_select %p300, %s301, %s302
    %p306 = pneg %p300
    %p307 = scmp.eq.s32.totalorder %s19, 3
    %p308 = por %p306, %p307
    %p309 = scmp.ne.s32.totalorder %s301, %s304
    %p310 = scmp.eq.s32.totalorder %s19, 0
    %p311 = por %p309, %p310
    %p312 = scmp.ne.s32.totalorder %s301, %s304
    %p313 = scmp.eq.s32.totalorder %s24, 3
    %p314 = por %p312, %p313
    %p315 = scmp.ne.s32.totalorder %s304, %s305
    %p316 = scmp.eq.s32.totalorder %s24, 0
    %p317 = por %p315, %p316
    %p318 = scmp.ne.s32.totalorder %s304, %s305
    %p319 = scmp.eq.s32.totalorder %s25, 3
    %p320 = por %p318, %p319
    %p322 = scmp.ne.s32.totalorder %s305, %s321
    %p323 = scmp.eq.s32.totalorder %s25, 0
    %p324 = por %p322, %p323
    %s325 = ssub.s32 %s27, %s34
    %p326 = scmp.eq.s32.totalorder %s325, 0
    %s328 = sadd.s32 %s327, 1
    %s329 = scalar_select %p326, %s327, %s328
    %p332 = pneg %p326
    %p333 = scmp.eq.s32.totalorder %s19, 3
    %p334 = por %p332, %p333
    %p335 = scmp.ne.s32.totalorder %s327, %s330
    %p336 = scmp.eq.s32.totalorder %s19, 0
    %p337 = por %p335, %p336
    %p338 = scmp.ne.s32.totalorder %s327, %s330
    %p339 = scmp.eq.s32.totalorder %s24, 3
    %p340 = por %p338, %p339
    %p341 = scmp.ne.s32.totalorder %s330, %s331
    %p342 = scmp.eq.s32.totalorder %s24, 0
    %p343 = por %p341, %p342
    %p344 = scmp.ne.s32.totalorder %s330, %s331
    %p345 = scmp.eq.s32.totalorder %s25, 3
    %p346 = por %p344, %p345
    %p348 = scmp.ne.s32.totalorder %s331, %s347
    %p349 = scmp.eq.s32.totalorder %s25, 0
    %p350 = por %p348, %p349
    %s351 = ssub.s32 %s27, %s34
    %p352 = scmp.eq.s32.totalorder %s351, 0
    %s354 = sadd.s32 %s353, 1
    %s355 = scalar_select %p352, %s353, %s354
    %p358 = pneg %p352
    %p359 = scmp.eq.s32.totalorder %s19, 3
    %p360 = por %p358, %p359
    %p361 = scmp.ne.s32.totalorder %s353, %s356
    %p362 = scmp.eq.s32.totalorder %s19, 0
    %p363 = por %p361, %p362
    %p364 = scmp.ne.s32.totalorder %s353, %s356
    %p365 = scmp.eq.s32.totalorder %s24, 3
    %p366 = por %p364, %p365
    %p367 = scmp.ne.s32.totalorder %s356, %s357
    %p368 = scmp.eq.s32.totalorder %s24, 0
    %p369 = por %p367, %p368
    %p370 = scmp.ne.s32.totalorder %s356, %s357
    %p371 = scmp.eq.s32.totalorder %s25, 3
    %p372 = por %p370, %p371
    %p374 = scmp.ne.s32.totalorder %s357, %s373
    %p375 = scmp.eq.s32.totalorder %s25, 0
    %p376 = por %p374, %p375
    %s377 = ssub.s32 %s26, %s38
    %p378 = scmp.eq.s32.totalorder %s377, 0
    %s380 = sadd.s32 %s379, 1
    %s381 = scalar_select %p378, %s379, %s380
    %p384 = pneg %p378
    %p385 = scmp.eq.s32.totalorder %s19, 3
    %p386 = por %p384, %p385
    %p387 = scmp.ne.s32.totalorder %s379, %s382
    %p388 = scmp.eq.s32.totalorder %s19, 0
    %p389 = por %p387, %p388
    %p390 = scmp.ne.s32.totalorder %s379, %s382
    %p391 = scmp.eq.s32.totalorder %s24, 3
    %p392 = por %p390, %p391
    %p393 = scmp.ne.s32.totalorder %s382, %s383
    %p394 = scmp.eq.s32.totalorder %s24, 0
    %p395 = por %p393, %p394
    %p396 = scmp.ne.s32.totalorder %s382, %s383
    %p397 = scmp.eq.s32.totalorder %s25, 3
    %p398 = por %p396, %p397
    %p400 = scmp.ne.s32.totalorder %s383, %s399
    %p401 = scmp.eq.s32.totalorder %s25, 0
    %p402 = por %p400, %p401
    %p403 = scmp.le.s32.totalorder 1, %s19
    %p404 = scmp.lt.s32.totalorder %s19, 5
    %p405 = pnand %p403, %p404
    %p406 = pneg %p405
    // Predicated region
    $region9: #{vit_forward.4} parent=5 // pred_check
      _
    $region10: #{vit_forward.4} parent=5 // pred_check_branch
      %408 = sbr.rel (%p405) target = $region12
    $region11: #{vit_forward.4} parent=5 // pred_region
      %s409 = ssub.s32 %s19, 1
    $region12: #{vit_forward.4} parent=5 // pred_fallthru
      _
    %p410 = scmp.lt.s32.totalorder %s19, 4
    // Predicated region
    $region13: #{vit_forward.4} parent=5 // pred_check
      %p411 = pneg %p410
    $region14: #{vit_forward.4} parent=5 // pred_check_branch
      %413 = sbr.rel (%p411) target = $region16
    $region15: #{vit_forward.4} parent=5 // pred_region
      // Predicated region
      $region17: #{vit_forward.4} parent=15 // pred_check
        %p414 = pneg %p51
      $region18: #{vit_forward.4} parent=15 // pred_check_branch
        %416 = sbr.rel (%p414) target = $region20
      $region19: #{vit_forward.4} parent=15 // pred_region
        %p417 = scmp.lt.s32.totalorder %s26, 1
        %s418 = scalar_select %p417, %s26, 1
        %s419 = smul.addr %s418, 3
        %s420 = smul.addr %s419, 8
        %s421 = scalar_lea.vmem %s0, %s420
      $region20: #{vit_forward.4} parent=15 // pred_fallthru
        _
      // Predicated region
      $region21: #{vit_forward.4} parent=15 // pred_check
        %p422 = pneg %p77
      $region22: #{vit_forward.4} parent=15 // pred_check_branch
        %424 = sbr.rel (%p422) target = $region24
      $region23: #{vit_forward.4} parent=15 // pred_region
        %p425 = scmp.lt.s32.totalorder %s27, 1
        %s426 = scalar_select %p425, %s27, 1
        %s427 = scalar_lea.vmem %s1, %s426
      $region24: #{vit_forward.4} parent=15 // pred_fallthru
        _
      // Predicated region
      $region25: #{vit_forward.4} parent=15 // pred_check
        %p428 = pneg %p103
      $region26: #{vit_forward.4} parent=15 // pred_check_branch
        %430 = sbr.rel (%p428) target = $region28
      $region27: #{vit_forward.4} parent=15 // pred_region
        %p431 = scmp.lt.s32.totalorder %s27, 1
        %s432 = scalar_select %p431, %s27, 1
        %s433 = scalar_lea.vmem %s2, %s432
      $region28: #{vit_forward.4} parent=15 // pred_fallthru
        _
      // Predicated region
      $region29: #{vit_forward.4} parent=15 // pred_check
        %p434 = pneg %p129
      $region30: #{vit_forward.4} parent=15 // pred_check_branch
        %436 = sbr.rel (%p434) target = $region32
      $region31: #{vit_forward.4} parent=15 // pred_region
        %p437 = scmp.lt.s32.totalorder %s27, 1
        %s438 = scalar_select %p437, %s27, 1
        %s439 = smul.addr %s438, 4
        %s440 = smul.addr %s439, 4
        %s441 = scalar_lea.vmem %s3, %s440
      $region32: #{vit_forward.4} parent=15 // pred_fallthru
        _
      // Predicated region
      $region33: #{vit_forward.4} parent=15 // pred_check
        %p442 = pneg %p155
      $region34: #{vit_forward.4} parent=15 // pred_check_branch
        %444 = sbr.rel (%p442) target = $region36
      $region35: #{vit_forward.4} parent=15 // pred_region
        %p445 = scmp.lt.s32.totalorder %s27, 1
        %s446 = scalar_select %p445, %s27, 1
        %s447 = scalar_lea.vmem %s4, %s446
      $region36: #{vit_forward.4} parent=15 // pred_fallthru
        _
      // Predicated region
      $region37: #{vit_forward.4} parent=15 // pred_check
        %p448 = pneg %p181
      $region38: #{vit_forward.4} parent=15 // pred_check_branch
        %450 = sbr.rel (%p448) target = $region40
      $region39: #{vit_forward.4} parent=15 // pred_region
        %p451 = scmp.lt.s32.totalorder %s27, 1
        %s452 = scalar_select %p451, %s27, 1
        %s453 = smul.addr %s452, 4
        %s454 = smul.addr %s453, 4
        %s455 = scalar_lea.vmem %s5, %s454
      $region40: #{vit_forward.4} parent=15 // pred_fallthru
        _
      // Predicated region
      $region41: #{vit_forward.4} parent=15 // pred_check
        %p456 = pneg %p207
      $region42: #{vit_forward.4} parent=15 // pred_check_branch
        %458 = sbr.rel (%p456) target = $region44
      $region43: #{vit_forward.4} parent=15 // pred_region
        %p459 = scmp.lt.s32.totalorder %s27, 1
        %s460 = scalar_select %p459, %s27, 1
        %s461 = scalar_lea.vmem %s6, %s460
      $region44: #{vit_forward.4} parent=15 // pred_fallthru
        _
      // Predicated region
      $region45: #{vit_forward.4} parent=15 // pred_check
        %p462 = pneg %p233
      $region46: #{vit_forward.4} parent=15 // pred_check_branch
        %464 = sbr.rel (%p462) target = $region48
      $region47: #{vit_forward.4} parent=15 // pred_region
        %p465 = scmp.lt.s32.totalorder %s27, 1
        %s466 = scalar_select %p465, %s27, 1
        %s467 = scalar_lea.vmem %s7, %s466
      $region48: #{vit_forward.4} parent=15 // pred_fallthru
        _
      // Predicated region
      $region49: #{vit_forward.4} parent=15 // pred_check
        %p468 = pneg %p259
      $region50: #{vit_forward.4} parent=15 // pred_check_branch
        %470 = sbr.rel (%p468) target = $region52
      $region51: #{vit_forward.4} parent=15 // pred_region
        %p471 = scmp.lt.s32.totalorder %s27, 1
        %s472 = scalar_select %p471, %s27, 1
        %s473 = scalar_lea.vmem %s8, %s472
      $region52: #{vit_forward.4} parent=15 // pred_fallthru
        _
      // Predicated region
      $region53: #{vit_forward.4} parent=15 // pred_check
        %p474 = pneg %p285
      $region54: #{vit_forward.4} parent=15 // pred_check_branch
        %476 = sbr.rel (%p474) target = $region56
      $region55: #{vit_forward.4} parent=15 // pred_region
        %p477 = scmp.lt.s32.totalorder %s27, 1
        %s478 = scalar_select %p477, %s27, 1
        %s479 = smul.addr %s478, 4
        %s480 = smul.addr %s479, 4
        %s481 = scalar_lea.vmem %s9, %s480
      $region56: #{vit_forward.4} parent=15 // pred_fallthru
        _
      // Predicated region
      $region57: #{vit_forward.4} parent=15 // pred_check
        %p482 = pneg %p311
      $region58: #{vit_forward.4} parent=15 // pred_check_branch
        %484 = sbr.rel (%p482) target = $region60
      $region59: #{vit_forward.4} parent=15 // pred_region
        %p485 = scmp.lt.s32.totalorder %s27, 1
        %s486 = scalar_select %p485, %s27, 1
        %s487 = scalar_lea.vmem %s10, %s486
      $region60: #{vit_forward.4} parent=15 // pred_fallthru
        _
      // Predicated region
      $region61: #{vit_forward.4} parent=15 // pred_check
        %p488 = pneg %p337
      $region62: #{vit_forward.4} parent=15 // pred_check_branch
        %490 = sbr.rel (%p488) target = $region64
      $region63: #{vit_forward.4} parent=15 // pred_region
        %p491 = scmp.lt.s32.totalorder %s27, 1
        %s492 = scalar_select %p491, %s27, 1
        %s493 = smul.addr %s492, 16
        %s494 = smul.addr %s493, 4
        %s495 = scalar_lea.vmem %s11, %s494
      $region64: #{vit_forward.4} parent=15 // pred_fallthru
        _
      // Predicated region
      $region65: #{vit_forward.4} parent=15 // pred_check
        %p496 = pneg %p363
      $region66: #{vit_forward.4} parent=15 // pred_check_branch
        %498 = sbr.rel (%p496) target = $region68
      $region67: #{vit_forward.4} parent=15 // pred_region
        %p499 = scmp.lt.s32.totalorder %s27, 1
        %s500 = scalar_select %p499, %s27, 1
        %s501 = scalar_lea.vmem %s12, %s500
      $region68: #{vit_forward.4} parent=15 // pred_fallthru
        _
    $region16: #{vit_forward.4} parent=5 // pred_fallthru
      _
    %p502 = scmp.le.s32.totalorder 1, %s19
    %p503 = scmp.lt.s32.totalorder %s19, 5
    %p504 = pnand %p502, %p503
    %p505 = pneg %p504
    // Predicated region
    $region69: #{vit_forward.4} parent=5 // pred_check
      _
    $region70: #{vit_forward.4} parent=5 // pred_check_branch
      %507 = sbr.rel (%p504) target = $region72
    $region71: #{vit_forward.4} parent=5 // pred_region
      %s508 = ssub.s32 %s19, 1
      %p509 = scmp.lt.s32.totalorder %s28, 1
      %s510 = scalar_select %p509, %s28, 1
      %s511 = smul.addr %s510, 3
      %s512 = smul.addr %s511, 8
      %s513 = scalar_lea.vmem %s0, %s512
      %p514 = pneg %p57
      %p515 = pneg %p54
      %p516 = scmp.lt.s32.totalorder %s29, 1
      %s517 = scalar_select %p516, %s29, 1
      %s518 = scalar_lea.vmem %s1, %s517
      %p519 = pneg %p83
      %p520 = pneg %p80
      %p521 = scmp.lt.s32.totalorder %s29, 1
      %s522 = scalar_select %p521, %s29, 1
      %s523 = scalar_lea.vmem %s2, %s522
      %p524 = pneg %p109
      %p525 = pneg %p106
      %p526 = scmp.lt.s32.totalorder %s29, 1
      %s527 = scalar_select %p526, %s29, 1
      %s528 = smul.addr %s527, 4
      %s529 = smul.addr %s528, 4
      %s530 = scalar_lea.vmem %s3, %s529
      %p531 = pneg %p135
      %p532 = pneg %p132
      %p533 = scmp.lt.s32.totalorder %s29, 1
      %s534 = scalar_select %p533, %s29, 1
      %s535 = scalar_lea.vmem %s4, %s534
      %p536 = pneg %p161
      %p537 = pneg %p158
      %p538 = scmp.lt.s32.totalorder %s29, 1
      %s539 = scalar_select %p538, %s29, 1
      %s540 = smul.addr %s539, 4
      %s541 = smul.addr %s540, 4
      %s542 = scalar_lea.vmem %s5, %s541
      %p543 = pneg %p187
      %p544 = pneg %p184
      %p545 = scmp.lt.s32.totalorder %s29, 1
      %s546 = scalar_select %p545, %s29, 1
      %s547 = scalar_lea.vmem %s6, %s546
      %p548 = pneg %p213
      %p549 = pneg %p210
      %p550 = scmp.lt.s32.totalorder %s29, 1
      %s551 = scalar_select %p550, %s29, 1
      %s552 = scalar_lea.vmem %s7, %s551
      %p553 = pneg %p239
      %p554 = pneg %p236
      %p555 = scmp.lt.s32.totalorder %s29, 1
      %s556 = scalar_select %p555, %s29, 1
      %s557 = scalar_lea.vmem %s8, %s556
      %p558 = pneg %p265
      %p559 = pneg %p262
      %p560 = scmp.lt.s32.totalorder %s29, 1
      %s561 = scalar_select %p560, %s29, 1
      %s562 = smul.addr %s561, 4
      %s563 = smul.addr %s562, 4
      %s564 = scalar_lea.vmem %s9, %s563
      %p565 = pneg %p291
      %p566 = pneg %p288
      %p567 = scmp.lt.s32.totalorder %s29, 1
      %s568 = scalar_select %p567, %s29, 1
      %s569 = scalar_lea.vmem %s10, %s568
      %p570 = pneg %p317
      %p571 = pneg %p314
      %p572 = scmp.lt.s32.totalorder %s29, 1
      %s573 = scalar_select %p572, %s29, 1
      %s574 = smul.addr %s573, 16
      %s575 = smul.addr %s574, 4
      %s576 = scalar_lea.vmem %s11, %s575
      %p577 = pneg %p343
      %p578 = pneg %p340
      %p579 = scmp.lt.s32.totalorder %s29, 1
      %s580 = scalar_select %p579, %s29, 1
      %s581 = scalar_lea.vmem %s12, %s580
      %p582 = pneg %p369
      %p583 = pneg %p366
      %p584 = pneg %p395
      %p585 = pneg %p392
      %p586 = scmp.lt.s32.totalorder %s28, 1
      %s587 = scalar_select %p586, %s28, 1
      %s588 = smul.addr %s587, 3
      %s589 = smul.addr %s588, 8
      %s590 = scalar_lea.vmem %s13, %s589
      %p591 = scmp.lt.s32.totalorder %s28, 1
      %s592 = scalar_select %p591, %s28, 1
      %s593 = smul.addr %s592, 3
      %s594 = smul.addr %s593, 8
      %s595 = scalar_lea.vmem %s0, %s594
      %p596 = scmp.lt.s32.totalorder %s29, 1
      %s597 = scalar_select %p596, %s29, 1
      %s598 = scalar_lea.vmem %s1, %s597
      %p599 = scmp.lt.s32.totalorder %s29, 1
      %s600 = scalar_select %p599, %s29, 1
      %s601 = scalar_lea.vmem %s2, %s600
      %p602 = scmp.lt.s32.totalorder %s29, 1
      %s603 = scalar_select %p602, %s29, 1
      %s604 = smul.addr %s603, 4
      %s605 = smul.addr %s604, 4
      %s606 = scalar_lea.vmem %s3, %s605
      %p607 = scmp.lt.s32.totalorder %s29, 1
      %s608 = scalar_select %p607, %s29, 1
      %s609 = scalar_lea.vmem %s4, %s608
      %p610 = scmp.lt.s32.totalorder %s29, 1
      %s611 = scalar_select %p610, %s29, 1
      %s612 = smul.addr %s611, 4
      %s613 = smul.addr %s612, 4
      %s614 = scalar_lea.vmem %s5, %s613
      %p615 = scmp.lt.s32.totalorder %s29, 1
      %s616 = scalar_select %p615, %s29, 1
      %s617 = scalar_lea.vmem %s6, %s616
      %p618 = scmp.lt.s32.totalorder %s29, 1
      %s619 = scalar_select %p618, %s29, 1
      %s620 = scalar_lea.vmem %s7, %s619
      %p621 = scmp.lt.s32.totalorder %s29, 1
      %s622 = scalar_select %p621, %s29, 1
      %s623 = scalar_lea.vmem %s8, %s622
      %p624 = scmp.lt.s32.totalorder %s29, 1
      %s625 = scalar_select %p624, %s29, 1
      %s626 = smul.addr %s625, 4
      %s627 = smul.addr %s626, 4
      %s628 = scalar_lea.vmem %s9, %s627
      %p629 = scmp.lt.s32.totalorder %s29, 1
      %s630 = scalar_select %p629, %s29, 1
      %s631 = scalar_lea.vmem %s10, %s630
      %p632 = scmp.lt.s32.totalorder %s29, 1
      %s633 = scalar_select %p632, %s29, 1
      %s634 = smul.addr %s633, 16
      %s635 = smul.addr %s634, 4
      %s636 = scalar_lea.vmem %s11, %s635
      %p637 = scmp.lt.s32.totalorder %s29, 1
      %s638 = scalar_select %p637, %s29, 1
      %s639 = scalar_lea.vmem %s12, %s638
      %p640 = scmp.lt.s32.totalorder %s28, 1
      %s641 = scalar_select %p640, %s28, 1
      %s642 = smul.addr %s641, 3
      %s643 = smul.addr %s642, 8
      %s644 = scalar_lea.vmem %s13, %s643
      %p646 = scmp.eq.s32.totalorder %s29, 0
      // Predicated region
      $region73: #{vit_forward.4} parent=71 // pred_check
        %p647 = pneg %p646
      $region74: #{vit_forward.4} parent=71 // pred_check_branch
        %649 = sbr.rel (%p647) target = $region76
      $region75: #{vit_forward.4} parent=71 // pred_region
        %v650 = vld [vmem:[%s595] sm:$0xff]
        %v651 = vld [vmem:[%s595 + $0x8] sm:$0xff]
        %v652 = vld [vmem:[%s595 + $0x10] sm:$0x1]
        %vm653 = vcmask 261120
        %654 = vst.msk [vmem:[#allocation2] sm:$0xff] %vm653, %v650
        %655 = vst.msk [vmem:[#allocation2 + $0x8] sm:$0xff] %vm653, %v651
        %vm656 = vcmask 253952
        %657 = vst.msk [vmem:[#allocation2 + $0x10] sm:$0x1] %vm656, %v652
      $region76: #{vit_forward.4} parent=71 // pred_fallthru
        _
      %v658 = vld [vmem:[#allocation2] sm:$0xff]
      %v659 = vld [vmem:[#allocation2 + $0x8] sm:$0xff]
      %v660 = vld [vmem:[#allocation2 + $0x10] sm:$0x1]
      %v661 = vld [vmem:[%s598] sm:$0x1]
      %v662 = vld [vmem:[%s601] sm:$0x1]
      %vm663 = vcmask 261120
      %v664 = vsel %vm663, %v658, 0.0
      %665 = vadd.xlane.f32.xlu0 %v664
      %v666 = vpop.xlane.xlu0 %665
      %v667 = vsel %vm663, %v659, 0.0
      %668 = vadd.xlane.f32.xlu0 %v667
      %v669 = vpop.xlane.xlu0 %668
      %vm670 = vcmask 253952
      %v671 = vsel %vm670, %v660, 0.0
      %672 = vadd.xlane.f32.xlu0 %v671
      %v673 = vpop.xlane.xlu0 %672
      %v674 = vrcp.pop 32.0
      %v675 = vmul.f32 %v666, %v674
      %v676 = vmul.f32 %v669, %v674
      %v677 = vmul.f32 %v673, %v674
      %v678 = vsub.f32 %v658, %v675
      %v679 = vsub.f32 %v659, %v676
      %v680 = vsub.f32 %v660, %v677
      %v681 = vmul.f32 %v678, %v678
      %v682 = vmul.f32 %v679, %v679
      %v683 = vmul.f32 %v680, %v680
      %v684 = vsel %vm663, %v681, 0.0
      %685 = vadd.xlane.f32.xlu0 %v684
      %v686 = vpop.xlane.xlu0 %685
      %v687 = vsel %vm663, %v682, 0.0
      %688 = vadd.xlane.f32.xlu0 %v687
      %v689 = vpop.xlane.xlu0 %688
      %v690 = vsel %vm670, %v683, 0.0
      %691 = vadd.xlane.f32.xlu0 %v690
      %v692 = vpop.xlane.xlu0 %691
      %v693 = vmul.f32 %v686, %v674
      %v694 = vmul.f32 %v689, %v674
      %v695 = vmul.f32 %v692, %v674
      %v696 = vadd.f32 %v693, 1e-05
      %v697 = vadd.f32 %v694, 1e-05
      %v698 = vadd.f32 %v695, 1e-05
      %v699 = vrsqrt.pop %v696
      %v700 = vrsqrt.pop %v697
      %v701 = vrsqrt.pop %v698
      %v702 = vmul.f32 %v678, %v699
      %v703 = vmul.f32 %v679, %v700
      %v704 = vmul.f32 %v680, %v701
      %v706 = vlaneseq
      %v707 = vshrl.u32 %v706, 7
      %v708 = vsub.s32 0, %v707
      %v709 = vrot.slane %v661, %v708
      %v711 = vmul.f32 %v702, %v709
      %v712 = vmul.f32 %v703, %v709
      %v713 = vmul.f32 %v704, %v709
      %v715 = vlaneseq
      %v716 = vshrl.u32 %v715, 7
      %v717 = vsub.s32 0, %v716
      %v718 = vrot.slane %v662, %v717
      %v720 = vadd.f32 %v711, %v718
      %v721 = vadd.f32 %v712, %v718
      %v722 = vadd.f32 %v713, %v718
      %v723 = vpack.c.bf16 %v721, %v720
      %v724 = vpack.c.bf16 %v722, %v722
      %v725 = vld [vmem:[%s606] sm:$0xf]
      %v726 = vld [vmem:[%s606 + $0x4] sm:$0xf]
      %v727 = vld [vmem:[%s606 + $0x8] sm:$0xf]
      %v728 = vld [vmem:[%s606 + $0xc] sm:$0xf]
      %v729 = vld [vmem:[%s609] sm:$0x1]
      %v731 = vlaneseq
      %v732 = vshrl.u32 %v731, 7
      %v733 = vsub.s32 0, %v732
      %v734 = vrot.slane %v729, %v733
      %v740 = vunpack.c.l.b16 %v725
      %v741 = vunpack.c.l.b16 %v726
      %v742 = vunpack.c.l.b16 %v727
      %v743 = vunpack.c.l.b16 %v728
      %v744 = vpack.c.b16 %v741, %v740
      %v745 = vpack.c.b16 %v743, %v742
      %v749 = vsel %vm663, %v723, 0
      %v752 = vsel %vm663, %v724, 0
      %754 = vmatprep.subr.bf16.mxu0 0
      %755 = vmatpush1.bf16.msra.mxu0 0
      %756 = vmatprep.subr.bf16.mxu0 0
      %757 = vmatpush1.bf16.msra.mxu0 0
      %758 = vmatprep.subr.bf16.mxu0 0
      %759 = vmatpush1.bf16.msra.mxu0 0
      %760 = vmatprep.subr.bf16.mxu0 0
      %761 = vmatpush1.bf16.msra.mxu0 0
      %762 = vmatprep.subr.bf16.mxu0 0
      %763 = vmatpush1.bf16.msra.mxu0 0
      %764 = vmatprep.subr.bf16.mxu0 0
      %765 = vmatpush1.bf16.msra.mxu0 0
      %766 = vmatprep.subr.bf16.mxu0 0
      %767 = vmatpush1.bf16.msra.mxu0 %v745
      %768 = vmatprep.subr.bf16.mxu0 0
      %769 = vmatpush1.bf16.msra.mxu0 %v744
      %770 = vmatprep.subr.bf16.mxu0 0
      %771 = vmatpush2.bf16.msra.mxu0 0
      %772 = vmatprep.subr.bf16.mxu0 0
      %773 = vmatpush2.bf16.msra.mxu0 0
      %774 = vmatprep.subr.bf16.mxu0 0
      %775 = vmatpush2.bf16.msra.mxu0 0
      %776 = vmatprep.subr.bf16.mxu0 0
      %777 = vmatpush2.bf16.msra.mxu0 0
      %778 = vmatprep.subr.bf16.mxu0 0
      %779 = vmatpush2.bf16.msra.mxu0 0
      %780 = vmatprep.subr.bf16.mxu0 0
      %781 = vmatpush2.bf16.msra.mxu0 0
      %782 = vmatprep.subr.bf16.mxu0 0
      %783 = vmatpush2.bf16.msra.mxu0 0
      %784 = vmatprep.subr.bf16.mxu0 0
      %785 = vmatpush2.bf16.msra.mxu0 0
      %786 = vmatprep.mubr.bf16.mxu0 0
      %787 = vmatmul.mubr.bf16.gmra.mxu0 %v749
      %v788 = vpop.f32.mrf.mxu0
      %v789 = vadd.f32 %v734, %v788
      %v790 = vpop.f32.mrf.mxu0
      %v791 = vpop.f32.mrf.mxu0
      %v792 = vadd.f32 %v734, %v791
      %v793 = vpop.f32.mrf.mxu0
      %794 = vmatprep.mubr.bf16.mxu0 0
      %795 = vmatmul.mubr.bf16.gmra.mxu0 %v752
      %v796 = vpop.f32.mrf.mxu0
      %v797 = vadd.f32 %v734, %v796
      %v798 = vpop.f32.mrf.mxu0
      %v799 = vpop.f32.mrf.mxu0
      %v800 = vpop.f32.mrf.mxu0
      %801 = vdwg.mxu0
      %805 = vrot.lane.b32.xlu0 %v789, 120
      %v806 = vpop.permute.xlu0 %805
      %807 = vrot.lane.b32.xlu0 %v792, 120
      %v808 = vpop.permute.xlu0 %807
      %809 = vrot.lane.b32.xlu0 %v797, 120
      %v810 = vpop.permute.xlu0 %809
      %814 = vrot.lane.b32.xlu0 %v789, 112
      %v815 = vpop.permute.xlu0 %814
      %816 = vrot.lane.b32.xlu0 %v792, 112
      %v817 = vpop.permute.xlu0 %816
      %818 = vrot.lane.b32.xlu0 %v797, 112
      %v819 = vpop.permute.xlu0 %818
      %823 = vrot.lane.b32.xlu0 %v789, 104
      %v824 = vpop.permute.xlu0 %823
      %825 = vrot.lane.b32.xlu0 %v792, 104
      %v826 = vpop.permute.xlu0 %825
      %827 = vrot.lane.b32.xlu0 %v797, 104
      %v828 = vpop.permute.xlu0 %827
      %v832 = vcombine.low %v789, %v815
      %v833 = vcombine.high %v789, %v815
      %v835 = vunpack.c.l.s4 1983009808
      %v836 = vunpack.c.0.s8 %v835
      %v837 = vlaneseq
      %v838 = vshrl.u32 %v837, 7
      %v839 = vsub.s32 %v836, %v838
      %v840 = vrot.slane %v832, %v839
      %v842 = vunpack.c.l.s4 1983009808
      %v843 = vunpack.c.0.s8 %v842
      %v844 = vlaneseq
      %v845 = vshrl.u32 %v844, 7
      %v846 = vsub.s32 %v843, %v845
      %v847 = vrot.slane %v833, %v846
      %v848 = vcombine.low %v806, %v824
      %v849 = vcombine.high %v806, %v824
      %v851 = vunpack.c.l.s4 1983009808
      %v852 = vunpack.c.0.s8 %v851
      %v853 = vlaneseq
      %v854 = vshrl.u32 %v853, 7
      %v855 = vsub.s32 %v852, %v854
      %v856 = vrot.slane %v848, %v855
      %v858 = vunpack.c.l.s4 1983009808
      %v859 = vunpack.c.0.s8 %v858
      %v860 = vlaneseq
      %v861 = vshrl.u32 %v860, 7
      %v862 = vsub.s32 %v859, %v861
      %v863 = vrot.slane %v849, %v862
      %v864 = vcombine.low %v840, %v856
      %v865 = vcombine.high %v840, %v856
      %v867 = vunpack.c.l.s4 1934713408
      %v868 = vunpack.c.0.s8 %v867
      %v869 = vlaneseq
      %v870 = vshrl.u32 %v869, 7
      %v871 = vsub.s32 %v868, %v870
      %v872 = vrot.slane %v864, %v871
      %v874 = vunpack.c.l.s4 1934713408
      %v875 = vunpack.c.0.s8 %v874
      %v876 = vlaneseq
      %v877 = vshrl.u32 %v876, 7
      %v878 = vsub.s32 %v875, %v877
      %v879 = vrot.slane %v865, %v878
      %v880 = vcombine.low %v847, %v863
      %v881 = vcombine.high %v847, %v863
      %v883 = vunpack.c.l.s4 1934713408
      %v884 = vunpack.c.0.s8 %v883
      %v885 = vlaneseq
      %v886 = vshrl.u32 %v885, 7
      %v887 = vsub.s32 %v884, %v886
      %v888 = vrot.slane %v880, %v887
      %v890 = vunpack.c.l.s4 1934713408
      %v891 = vunpack.c.0.s8 %v890
      %v892 = vlaneseq
      %v893 = vshrl.u32 %v892, 7
      %v894 = vsub.s32 %v891, %v893
      %v895 = vrot.slane %v881, %v894
      %v896 = vcombine.high %v872, 0.0
      %v897 = vcombine.high %v879, 0.0
      %v898 = vcombine.high %v888, 0.0
      %v899 = vcombine.high %v895, 0.0
      %v900 = vcombine.low %v792, %v817
      %v901 = vcombine.high %v792, %v817
      %v903 = vunpack.c.l.s4 1983009808
      %v904 = vunpack.c.0.s8 %v903
      %v905 = vlaneseq
      %v906 = vshrl.u32 %v905, 7
      %v907 = vsub.s32 %v904, %v906
      %v908 = vrot.slane %v900, %v907
      %v910 = vunpack.c.l.s4 1983009808
      %v911 = vunpack.c.0.s8 %v910
      %v912 = vlaneseq
      %v913 = vshrl.u32 %v912, 7
      %v914 = vsub.s32 %v911, %v913
      %v915 = vrot.slane %v901, %v914
      %v916 = vcombine.low %v808, %v826
      %v917 = vcombine.high %v808, %v826
      %v919 = vunpack.c.l.s4 1983009808
      %v920 = vunpack.c.0.s8 %v919
      %v921 = vlaneseq
      %v922 = vshrl.u32 %v921, 7
      %v923 = vsub.s32 %v920, %v922
      %v924 = vrot.slane %v916, %v923
      %v926 = vunpack.c.l.s4 1983009808
      %v927 = vunpack.c.0.s8 %v926
      %v928 = vlaneseq
      %v929 = vshrl.u32 %v928, 7
      %v930 = vsub.s32 %v927, %v929
      %v931 = vrot.slane %v917, %v930
      %v932 = vcombine.low %v908, %v924
      %v933 = vcombine.high %v908, %v924
      %v935 = vunpack.c.l.s4 1934713408
      %v936 = vunpack.c.0.s8 %v935
      %v937 = vlaneseq
      %v938 = vshrl.u32 %v937, 7
      %v939 = vsub.s32 %v936, %v938
      %v940 = vrot.slane %v932, %v939
      %v942 = vunpack.c.l.s4 1934713408
      %v943 = vunpack.c.0.s8 %v942
      %v944 = vlaneseq
      %v945 = vshrl.u32 %v944, 7
      %v946 = vsub.s32 %v943, %v945
      %v947 = vrot.slane %v933, %v946
      %v948 = vcombine.low %v915, %v931
      %v949 = vcombine.high %v915, %v931
      %v951 = vunpack.c.l.s4 1934713408
      %v952 = vunpack.c.0.s8 %v951
      %v953 = vlaneseq
      %v954 = vshrl.u32 %v953, 7
      %v955 = vsub.s32 %v952, %v954
      %v956 = vrot.slane %v948, %v955
      %v958 = vunpack.c.l.s4 1934713408
      %v959 = vunpack.c.0.s8 %v958
      %v960 = vlaneseq
      %v961 = vshrl.u32 %v960, 7
      %v962 = vsub.s32 %v959, %v961
      %v963 = vrot.slane %v949, %v962
      %v964 = vcombine.high %v940, 0.0
      %v965 = vcombine.high %v947, 0.0
      %v966 = vcombine.high %v956, 0.0
      %v967 = vcombine.high %v963, 0.0
      %v968 = vcombine.low %v797, %v819
      %v970 = vunpack.c.l.s4 1983009808
      %v971 = vunpack.c.0.s8 %v970
      %v972 = vlaneseq
      %v973 = vshrl.u32 %v972, 7
      %v974 = vsub.s32 %v971, %v973
      %v975 = vrot.slane %v968, %v974
      %v976 = vcombine.low %v810, %v828
      %v978 = vunpack.c.l.s4 1983009808
      %v979 = vunpack.c.0.s8 %v978
      %v980 = vlaneseq
      %v981 = vshrl.u32 %v980, 7
      %v982 = vsub.s32 %v979, %v981
      %v983 = vrot.slane %v976, %v982
      %v984 = vcombine.low %v975, %v983
      %v986 = vunpack.c.l.s4 1934713408
      %v987 = vunpack.c.0.s8 %v986
      %v988 = vlaneseq
      %v989 = vshrl.u32 %v988, 7
      %v990 = vsub.s32 %v987, %v989
      %v991 = vrot.slane %v984, %v990
      %992 = vrot.lane.b32.xlu0 %v789, 96
      %v993 = vpop.permute.xlu0 %992
      %994 = vrot.lane.b32.xlu0 %v792, 96
      %v995 = vpop.permute.xlu0 %994
      %996 = vrot.lane.b32.xlu0 %v797, 96
      %v997 = vpop.permute.xlu0 %996
      %998 = vrot.lane.b32.xlu0 %v806, 96
      %v999 = vpop.permute.xlu0 %998
      %1000 = vrot.lane.b32.xlu0 %v808, 96
      %v1001 = vpop.permute.xlu0 %1000
      %1002 = vrot.lane.b32.xlu0 %v810, 96
      %v1003 = vpop.permute.xlu0 %1002
      %1004 = vrot.lane.b32.xlu0 %v815, 96
      %v1005 = vpop.permute.xlu0 %1004
      %1006 = vrot.lane.b32.xlu0 %v817, 96
      %v1007 = vpop.permute.xlu0 %1006
      %1008 = vrot.lane.b32.xlu0 %v819, 96
      %v1009 = vpop.permute.xlu0 %1008
      %1010 = vrot.lane.b32.xlu0 %v824, 96
      %v1011 = vpop.permute.xlu0 %1010
      %1012 = vrot.lane.b32.xlu0 %v826, 96
      %v1013 = vpop.permute.xlu0 %1012
      %1014 = vrot.lane.b32.xlu0 %v828, 96
      %v1015 = vpop.permute.xlu0 %1014
      %v1028 = vcombine.low %v993, %v1005
      %v1029 = vcombine.high %v993, %v1005
      %v1031 = vunpack.c.l.s4 1983009808
      %v1032 = vunpack.c.0.s8 %v1031
      %v1033 = vlaneseq
      %v1034 = vshrl.u32 %v1033, 7
      %v1035 = vsub.s32 %v1032, %v1034
      %v1036 = vrot.slane %v1028, %v1035
      %v1038 = vunpack.c.l.s4 1983009808
      %v1039 = vunpack.c.0.s8 %v1038
      %v1040 = vlaneseq
      %v1041 = vshrl.u32 %v1040, 7
      %v1042 = vsub.s32 %v1039, %v1041
      %v1043 = vrot.slane %v1029, %v1042
      %v1044 = vcombine.low %v999, %v1011
      %v1045 = vcombine.high %v999, %v1011
      %v1047 = vunpack.c.l.s4 1983009808
      %v1048 = vunpack.c.0.s8 %v1047
      %v1049 = vlaneseq
      %v1050 = vshrl.u32 %v1049, 7
      %v1051 = vsub.s32 %v1048, %v1050
      %v1052 = vrot.slane %v1044, %v1051
      %v1054 = vunpack.c.l.s4 1983009808
      %v1055 = vunpack.c.0.s8 %v1054
      %v1056 = vlaneseq
      %v1057 = vshrl.u32 %v1056, 7
      %v1058 = vsub.s32 %v1055, %v1057
      %v1059 = vrot.slane %v1045, %v1058
      %v1060 = vcombine.low %v1036, %v1052
      %v1061 = vcombine.high %v1036, %v1052
      %v1063 = vunpack.c.l.s4 1934713408
      %v1064 = vunpack.c.0.s8 %v1063
      %v1065 = vlaneseq
      %v1066 = vshrl.u32 %v1065, 7
      %v1067 = vsub.s32 %v1064, %v1066
      %v1068 = vrot.slane %v1060, %v1067
      %v1070 = vunpack.c.l.s4 1934713408
      %v1071 = vunpack.c.0.s8 %v1070
      %v1072 = vlaneseq
      %v1073 = vshrl.u32 %v1072, 7
      %v1074 = vsub.s32 %v1071, %v1073
      %v1075 = vrot.slane %v1061, %v1074
      %v1076 = vcombine.low %v1043, %v1059
      %v1077 = vcombine.high %v1043, %v1059
      %v1079 = vunpack.c.l.s4 1934713408
      %v1080 = vunpack.c.0.s8 %v1079
      %v1081 = vlaneseq
      %v1082 = vshrl.u32 %v1081, 7
      %v1083 = vsub.s32 %v1080, %v1082
      %v1084 = vrot.slane %v1076, %v1083
      %v1086 = vunpack.c.l.s4 1934713408
      %v1087 = vunpack.c.0.s8 %v1086
      %v1088 = vlaneseq
      %v1089 = vshrl.u32 %v1088, 7
      %v1090 = vsub.s32 %v1087, %v1089
      %v1091 = vrot.slane %v1077, %v1090
      %v1092 = vcombine.high %v1068, 0.0
      %v1093 = vcombine.high %v1075, 0.0
      %v1094 = vcombine.high %v1084, 0.0
      %v1095 = vcombine.high %v1091, 0.0
      %v1096 = vcombine.low %v995, %v1007
      %v1097 = vcombine.high %v995, %v1007
      %v1099 = vunpack.c.l.s4 1983009808
      %v1100 = vunpack.c.0.s8 %v1099
      %v1101 = vlaneseq
      %v1102 = vshrl.u32 %v1101, 7
      %v1103 = vsub.s32 %v1100, %v1102
      %v1104 = vrot.slane %v1096, %v1103
      %v1106 = vunpack.c.l.s4 1983009808
      %v1107 = vunpack.c.0.s8 %v1106
      %v1108 = vlaneseq
      %v1109 = vshrl.u32 %v1108, 7
      %v1110 = vsub.s32 %v1107, %v1109
      %v1111 = vrot.slane %v1097, %v1110
      %v1112 = vcombine.low %v1001, %v1013
      %v1113 = vcombine.high %v1001, %v1013
      %v1115 = vunpack.c.l.s4 1983009808
      %v1116 = vunpack.c.0.s8 %v1115
      %v1117 = vlaneseq
      %v1118 = vshrl.u32 %v1117, 7
      %v1119 = vsub.s32 %v1116, %v1118
      %v1120 = vrot.slane %v1112, %v1119
      %v1122 = vunpack.c.l.s4 1983009808
      %v1123 = vunpack.c.0.s8 %v1122
      %v1124 = vlaneseq
      %v1125 = vshrl.u32 %v1124, 7
      %v1126 = vsub.s32 %v1123, %v1125
      %v1127 = vrot.slane %v1113, %v1126
      %v1128 = vcombine.low %v1104, %v1120
      %v1129 = vcombine.high %v1104, %v1120
      %v1131 = vunpack.c.l.s4 1934713408
      %v1132 = vunpack.c.0.s8 %v1131
      %v1133 = vlaneseq
      %v1134 = vshrl.u32 %v1133, 7
      %v1135 = vsub.s32 %v1132, %v1134
      %v1136 = vrot.slane %v1128, %v1135
      %v1138 = vunpack.c.l.s4 1934713408
      %v1139 = vunpack.c.0.s8 %v1138
      %v1140 = vlaneseq
      %v1141 = vshrl.u32 %v1140, 7
      %v1142 = vsub.s32 %v1139, %v1141
      %v1143 = vrot.slane %v1129, %v1142
      %v1144 = vcombine.low %v1111, %v1127
      %v1145 = vcombine.high %v1111, %v1127
      %v1147 = vunpack.c.l.s4 1934713408
      %v1148 = vunpack.c.0.s8 %v1147
      %v1149 = vlaneseq
      %v1150 = vshrl.u32 %v1149, 7
      %v1151 = vsub.s32 %v1148, %v1150
      %v1152 = vrot.slane %v1144, %v1151
      %v1154 = vunpack.c.l.s4 1934713408
      %v1155 = vunpack.c.0.s8 %v1154
      %v1156 = vlaneseq
      %v1157 = vshrl.u32 %v1156, 7
      %v1158 = vsub.s32 %v1155, %v1157
      %v1159 = vrot.slane %v1145, %v1158
      %v1160 = vcombine.high %v1136, 0.0
      %v1161 = vcombine.high %v1143, 0.0
      %v1162 = vcombine.high %v1152, 0.0
      %v1163 = vcombine.high %v1159, 0.0
      %v1164 = vcombine.low %v997, %v1009
      %v1166 = vunpack.c.l.s4 1983009808
      %v1167 = vunpack.c.0.s8 %v1166
      %v1168 = vlaneseq
      %v1169 = vshrl.u32 %v1168, 7
      %v1170 = vsub.s32 %v1167, %v1169
      %v1171 = vrot.slane %v1164, %v1170
      %v1172 = vcombine.low %v1003, %v1015
      %v1174 = vunpack.c.l.s4 1983009808
      %v1175 = vunpack.c.0.s8 %v1174
      %v1176 = vlaneseq
      %v1177 = vshrl.u32 %v1176, 7
      %v1178 = vsub.s32 %v1175, %v1177
      %v1179 = vrot.slane %v1172, %v1178
      %v1180 = vcombine.low %v1171, %v1179
      %v1182 = vunpack.c.l.s4 1934713408
      %v1183 = vunpack.c.0.s8 %v1182
      %v1184 = vlaneseq
      %v1185 = vshrl.u32 %v1184, 7
      %v1186 = vsub.s32 %v1183, %v1185
      %v1187 = vrot.slane %v1180, %v1186
      %1188 = vrot.lane.b32.xlu0 %v789, 64
      %v1189 = vpop.permute.xlu0 %1188
      %1190 = vrot.lane.b32.xlu0 %v792, 64
      %v1191 = vpop.permute.xlu0 %1190
      %1192 = vrot.lane.b32.xlu0 %v797, 64
      %v1193 = vpop.permute.xlu0 %1192
      %1194 = vrot.lane.b32.xlu0 %v806, 64
      %v1195 = vpop.permute.xlu0 %1194
      %1196 = vrot.lane.b32.xlu0 %v808, 64
      %v1197 = vpop.permute.xlu0 %1196
      %1198 = vrot.lane.b32.xlu0 %v810, 64
      %v1199 = vpop.permute.xlu0 %1198
      %1200 = vrot.lane.b32.xlu0 %v815, 64
      %v1201 = vpop.permute.xlu0 %1200
      %1202 = vrot.lane.b32.xlu0 %v817, 64
      %v1203 = vpop.permute.xlu0 %1202
      %1204 = vrot.lane.b32.xlu0 %v819, 64
      %v1205 = vpop.permute.xlu0 %1204
      %1206 = vrot.lane.b32.xlu0 %v824, 64
      %v1207 = vpop.permute.xlu0 %1206
      %1208 = vrot.lane.b32.xlu0 %v826, 64
      %v1209 = vpop.permute.xlu0 %1208
      %1210 = vrot.lane.b32.xlu0 %v828, 64
      %v1211 = vpop.permute.xlu0 %1210
      %v1224 = vcombine.low %v1189, %v1201
      %v1225 = vcombine.high %v1189, %v1201
      %v1227 = vunpack.c.l.s4 1983009808
      %v1228 = vunpack.c.0.s8 %v1227
      %v1229 = vlaneseq
      %v1230 = vshrl.u32 %v1229, 7
      %v1231 = vsub.s32 %v1228, %v1230
      %v1232 = vrot.slane %v1224, %v1231
      %v1234 = vunpack.c.l.s4 1983009808
      %v1235 = vunpack.c.0.s8 %v1234
      %v1236 = vlaneseq
      %v1237 = vshrl.u32 %v1236, 7
      %v1238 = vsub.s32 %v1235, %v1237
      %v1239 = vrot.slane %v1225, %v1238
      %v1240 = vcombine.low %v1195, %v1207
      %v1241 = vcombine.high %v1195, %v1207
      %v1243 = vunpack.c.l.s4 1983009808
      %v1244 = vunpack.c.0.s8 %v1243
      %v1245 = vlaneseq
      %v1246 = vshrl.u32 %v1245, 7
      %v1247 = vsub.s32 %v1244, %v1246
      %v1248 = vrot.slane %v1240, %v1247
      %v1250 = vunpack.c.l.s4 1983009808
      %v1251 = vunpack.c.0.s8 %v1250
      %v1252 = vlaneseq
      %v1253 = vshrl.u32 %v1252, 7
      %v1254 = vsub.s32 %v1251, %v1253
      %v1255 = vrot.slane %v1241, %v1254
      %v1256 = vcombine.low %v1232, %v1248
      %v1257 = vcombine.high %v1232, %v1248
      %v1259 = vunpack.c.l.s4 1934713408
      %v1260 = vunpack.c.0.s8 %v1259
      %v1261 = vlaneseq
      %v1262 = vshrl.u32 %v1261, 7
      %v1263 = vsub.s32 %v1260, %v1262
      %v1264 = vrot.slane %v1256, %v1263
      %v1266 = vunpack.c.l.s4 1934713408
      %v1267 = vunpack.c.0.s8 %v1266
      %v1268 = vlaneseq
      %v1269 = vshrl.u32 %v1268, 7
      %v1270 = vsub.s32 %v1267, %v1269
      %v1271 = vrot.slane %v1257, %v1270
      %v1272 = vcombine.low %v1239, %v1255
      %v1273 = vcombine.high %v1239, %v1255
      %v1275 = vunpack.c.l.s4 1934713408
      %v1276 = vunpack.c.0.s8 %v1275
      %v1277 = vlaneseq
      %v1278 = vshrl.u32 %v1277, 7
      %v1279 = vsub.s32 %v1276, %v1278
      %v1280 = vrot.slane %v1272, %v1279
      %v1282 = vunpack.c.l.s4 1934713408
      %v1283 = vunpack.c.0.s8 %v1282
      %v1284 = vlaneseq
      %v1285 = vshrl.u32 %v1284, 7
      %v1286 = vsub.s32 %v1283, %v1285
      %v1287 = vrot.slane %v1273, %v1286
      %v1288 = vcombine.high %v1264, 0.0
      %v1289 = vcombine.high %v1271, 0.0
      %v1290 = vcombine.high %v1280, 0.0
      %v1291 = vcombine.high %v1287, 0.0
      %v1292 = vcombine.low %v1191, %v1203
      %v1293 = vcombine.high %v1191, %v1203
      %v1295 = vunpack.c.l.s4 1983009808
      %v1296 = vunpack.c.0.s8 %v1295
      %v1297 = vlaneseq
      %v1298 = vshrl.u32 %v1297, 7
      %v1299 = vsub.s32 %v1296, %v1298
      %v1300 = vrot.slane %v1292, %v1299
      %v1302 = vunpack.c.l.s4 1983009808
      %v1303 = vunpack.c.0.s8 %v1302
      %v1304 = vlaneseq
      %v1305 = vshrl.u32 %v1304, 7
      %v1306 = vsub.s32 %v1303, %v1305
      %v1307 = vrot.slane %v1293, %v1306
      %v1308 = vcombine.low %v1197, %v1209
      %v1309 = vcombine.high %v1197, %v1209
      %v1311 = vunpack.c.l.s4 1983009808
      %v1312 = vunpack.c.0.s8 %v1311
      %v1313 = vlaneseq
      %v1314 = vshrl.u32 %v1313, 7
      %v1315 = vsub.s32 %v1312, %v1314
      %v1316 = vrot.slane %v1308, %v1315
      %v1318 = vunpack.c.l.s4 1983009808
      %v1319 = vunpack.c.0.s8 %v1318
      %v1320 = vlaneseq
      %v1321 = vshrl.u32 %v1320, 7
      %v1322 = vsub.s32 %v1319, %v1321
      %v1323 = vrot.slane %v1309, %v1322
      %v1324 = vcombine.low %v1300, %v1316
      %v1325 = vcombine.high %v1300, %v1316
      %v1327 = vunpack.c.l.s4 1934713408
      %v1328 = vunpack.c.0.s8 %v1327
      %v1329 = vlaneseq
      %v1330 = vshrl.u32 %v1329, 7
      %v1331 = vsub.s32 %v1328, %v1330
      %v1332 = vrot.slane %v1324, %v1331
      %v1334 = vunpack.c.l.s4 1934713408
      %v1335 = vunpack.c.0.s8 %v1334
      %v1336 = vlaneseq
      %v1337 = vshrl.u32 %v1336, 7
      %v1338 = vsub.s32 %v1335, %v1337
      %v1339 = vrot.slane %v1325, %v1338
      %v1340 = vcombine.low %v1307, %v1323
      %v1341 = vcombine.high %v1307, %v1323
      %v1343 = vunpack.c.l.s4 1934713408
      %v1344 = vunpack.c.0.s8 %v1343
      %v1345 = vlaneseq
      %v1346 = vshrl.u32 %v1345, 7
      %v1347 = vsub.s32 %v1344, %v1346
      %v1348 = vrot.slane %v1340, %v1347
      %v1350 = vunpack.c.l.s4 1934713408
      %v1351 = vunpack.c.0.s8 %v1350
      %v1352 = vlaneseq
      %v1353 = vshrl.u32 %v1352, 7
      %v1354 = vsub.s32 %v1351, %v1353
      %v1355 = vrot.slane %v1341, %v1354
      %v1356 = vcombine.high %v1332, 0.0
      %v1357 = vcombine.high %v1339, 0.0
      %v1358 = vcombine.high %v1348, 0.0
      %v1359 = vcombine.high %v1355, 0.0
      %v1360 = vcombine.low %v1193, %v1205
      %v1362 = vunpack.c.l.s4 1983009808
      %v1363 = vunpack.c.0.s8 %v1362
      %v1364 = vlaneseq
      %v1365 = vshrl.u32 %v1364, 7
      %v1366 = vsub.s32 %v1363, %v1365
      %v1367 = vrot.slane %v1360, %v1366
      %v1368 = vcombine.low %v1199, %v1211
      %v1370 = vunpack.c.l.s4 1983009808
      %v1371 = vunpack.c.0.s8 %v1370
      %v1372 = vlaneseq
      %v1373 = vshrl.u32 %v1372, 7
      %v1374 = vsub.s32 %v1371, %v1373
      %v1375 = vrot.slane %v1368, %v1374
      %v1376 = vcombine.low %v1367, %v1375
      %v1378 = vunpack.c.l.s4 1934713408
      %v1379 = vunpack.c.0.s8 %v1378
      %v1380 = vlaneseq
      %v1381 = vshrl.u32 %v1380, 7
      %v1382 = vsub.s32 %v1379, %v1381
      %v1383 = vrot.slane %v1376, %v1382
      %v1384 = vpack.c.bf16 %v872, %v872
      %v1385 = vpack.c.bf16 %v896, %v896
      %v1386 = vpack.c.bf16 %v879, %v879
      %v1387 = vpack.c.bf16 %v897, %v897
      %v1388 = vpack.c.bf16 %v888, %v888
      %v1389 = vpack.c.bf16 %v898, %v898
      %v1390 = vpack.c.bf16 %v895, %v895
      %v1391 = vpack.c.bf16 %v899, %v899
      %v1392 = vpack.c.bf16 %v940, %v940
      %v1393 = vpack.c.bf16 %v964, %v964
      %v1394 = vpack.c.bf16 %v947, %v947
      %v1395 = vpack.c.bf16 %v965, %v965
      %v1396 = vpack.c.bf16 %v956, %v956
      %v1397 = vpack.c.bf16 %v966, %v966
      %v1398 = vpack.c.bf16 %v963, %v963
      %v1399 = vpack.c.bf16 %v967, %v967
      %v1400 = vpack.c.bf16 %v1068, %v1068
      %v1401 = vpack.c.bf16 %v1092, %v1092
      %v1402 = vpack.c.bf16 %v1075, %v1075
      %v1403 = vpack.c.bf16 %v1093, %v1093
      %v1404 = vpack.c.bf16 %v1084, %v1084
      %v1405 = vpack.c.bf16 %v1094, %v1094
      %v1406 = vpack.c.bf16 %v1091, %v1091
      %v1407 = vpack.c.bf16 %v1095, %v1095
      %v1408 = vpack.c.bf16 %v1136, %v1136
      %v1409 = vpack.c.bf16 %v1160, %v1160
      %v1410 = vpack.c.bf16 %v1143, %v1143
      %v1411 = vpack.c.bf16 %v1161, %v1161
      %v1412 = vpack.c.bf16 %v1152, %v1152
      %v1413 = vpack.c.bf16 %v1162, %v1162
      %v1414 = vpack.c.bf16 %v1159, %v1159
      %v1415 = vpack.c.bf16 %v1163, %v1163
      %v1416 = vpack.c.bf16 %v1187, %v1187
      %v1417 = vcombine.low %v1384, %v1388
      %v1419 = vunpack.c.l.s4 1983009808
      %v1420 = vunpack.c.0.s8 %v1419
      %v1421 = vlaneseq
      %v1422 = vshrl.u32 %v1421, 7
      %v1423 = vsub.s32 %v1420, %v1422
      %v1424 = vrot.slane %v1417, %v1423
      %v1425 = vcombine.low %v1386, %v1390
      %v1427 = vunpack.c.l.s4 1983009808
      %v1428 = vunpack.c.0.s8 %v1427
      %v1429 = vlaneseq
      %v1430 = vshrl.u32 %v1429, 7
      %v1431 = vsub.s32 %v1428, %v1430
      %v1432 = vrot.slane %v1425, %v1431
      %v1433 = vcombine.low %v1392, %v1396
      %v1435 = vunpack.c.l.s4 1983009808
      %v1436 = vunpack.c.0.s8 %v1435
      %v1437 = vlaneseq
      %v1438 = vshrl.u32 %v1437, 7
      %v1439 = vsub.s32 %v1436, %v1438
      %v1440 = vrot.slane %v1433, %v1439
      %v1441 = vcombine.low %v1394, %v1398
      %v1443 = vunpack.c.l.s4 1983009808
      %v1444 = vunpack.c.0.s8 %v1443
      %v1445 = vlaneseq
      %v1446 = vshrl.u32 %v1445, 7
      %v1447 = vsub.s32 %v1444, %v1446
      %v1448 = vrot.slane %v1441, %v1447
      %v1449 = vcombine.low %v1424, %v1432
      %v1451 = vunpack.c.l.s4 1934713408
      %v1452 = vunpack.c.0.s8 %v1451
      %v1453 = vlaneseq
      %v1454 = vshrl.u32 %v1453, 7
      %v1455 = vsub.s32 %v1452, %v1454
      %v1456 = vrot.slane %v1449, %v1455
      %v1457 = vcombine.low %v1440, %v1448
      %v1459 = vunpack.c.l.s4 1934713408
      %v1460 = vunpack.c.0.s8 %v1459
      %v1461 = vlaneseq
      %v1462 = vshrl.u32 %v1461, 7
      %v1463 = vsub.s32 %v1460, %v1462
      %v1464 = vrot.slane %v1457, %v1463
      %v1465 = vcombine.low %v1456, %v1464
      %v1466 = vcombine.high %v1456, %v1464
      %v1467 = vcombine.low %v1385, %v1389
      %v1469 = vunpack.c.l.s4 1983009808
      %v1470 = vunpack.c.0.s8 %v1469
      %v1471 = vlaneseq
      %v1472 = vshrl.u32 %v1471, 7
      %v1473 = vsub.s32 %v1470, %v1472
      %v1474 = vrot.slane %v1467, %v1473
      %v1475 = vcombine.low %v1387, %v1391
      %v1477 = vunpack.c.l.s4 1983009808
      %v1478 = vunpack.c.0.s8 %v1477
      %v1479 = vlaneseq
      %v1480 = vshrl.u32 %v1479, 7
      %v1481 = vsub.s32 %v1478, %v1480
      %v1482 = vrot.slane %v1475, %v1481
      %v1483 = vcombine.low %v1393, %v1397
      %v1485 = vunpack.c.l.s4 1983009808
      %v1486 = vunpack.c.0.s8 %v1485
      %v1487 = vlaneseq
      %v1488 = vshrl.u32 %v1487, 7
      %v1489 = vsub.s32 %v1486, %v1488
      %v1490 = vrot.slane %v1483, %v1489
      %v1491 = vcombine.low %v1395, %v1399
      %v1493 = vunpack.c.l.s4 1983009808
      %v1494 = vunpack.c.0.s8 %v1493
      %v1495 = vlaneseq
      %v1496 = vshrl.u32 %v1495, 7
      %v1497 = vsub.s32 %v1494, %v1496
      %v1498 = vrot.slane %v1491, %v1497
      %v1499 = vcombine.low %v1474, %v1482
      %v1501 = vunpack.c.l.s4 1934713408
      %v1502 = vunpack.c.0.s8 %v1501
      %v1503 = vlaneseq
      %v1504 = vshrl.u32 %v1503, 7
      %v1505 = vsub.s32 %v1502, %v1504
      %v1506 = vrot.slane %v1499, %v1505
      %v1507 = vcombine.low %v1490, %v1498
      %v1509 = vunpack.c.l.s4 1934713408
      %v1510 = vunpack.c.0.s8 %v1509
      %v1511 = vlaneseq
      %v1512 = vshrl.u32 %v1511, 7
      %v1513 = vsub.s32 %v1510, %v1512
      %v1514 = vrot.slane %v1507, %v1513
      %v1515 = vcombine.low %v1506, %v1514
      %v1516 = vcombine.high %v1506, %v1514
      %v1517 = vpack.c.bf16 %v991, %v991
      %v1519 = vunpack.c.l.s4 1934713408
      %v1520 = vunpack.c.0.s8 %v1519
      %v1521 = vlaneseq
      %v1522 = vshrl.u32 %v1521, 7
      %v1523 = vsub.s32 %v1520, %v1522
      %v1524 = vrot.slane %v1517, %v1523
      %v1525 = vcombine.high %v1524, 0
      %v1528 = vpack.i.b16 %v1515, %v1465
      %v1529 = vshrl.u32 %v1465, 16
      %v1530 = vshrl.u32 %v1515, 16
      %v1531 = vpack.i.b16 %v1530, %v1529
      %v1534 = vpack.i.b16 %v1516, %v1466
      %v1535 = vshrl.u32 %v1466, 16
      %v1536 = vshrl.u32 %v1516, 16
      %v1537 = vpack.i.b16 %v1536, %v1535
      %v1540 = vpack.i.b16 0, %v1524
      %v1541 = vshrl.u32 %v1524, 16
      %v1542 = vshrl.u32 0, 16
      %v1543 = vpack.i.b16 %v1542, %v1541
      %v1545 = vpack.i.b16 0, %v1525
      %v1546 = vshrl.u32 %v1525, 16
      %v1547 = vpack.i.b16 %v1542, %v1546
      %1548 = vxpose.xlu0.c.b16.start [1/8] %v1400, 128
      %1549 = vxpose.xlu0.c.b16.cont [2/8] 0, 128
      %1550 = vxpose.xlu0.c.b16.cont [3/8] 0, 128
      %1551 = vxpose.xlu0.c.b16.cont [4/8] 0, 128
      %1552 = vxpose.xlu0.c.b16.cont [5/8] 0, 128
      %1553 = vxpose.xlu0.c.b16.cont [6/8] 0, 128
      %1554 = vxpose.xlu0.c.b16.cont [7/8] 0, 128
      %1555 = vxpose.xlu0.c.b16.end [8/8] 0, 128
      %v1556 = vpop.trf.xlu0
      %v1557 = vpop.trf.xlu0
      %v1558 = vpop.trf.xlu0
      %v1559 = vpop.trf.xlu0
      %v1560 = vpop.trf.xlu0
      %v1561 = vpop.trf.xlu0
      %v1562 = vpop.trf.xlu0
      %v1563 = vpop.trf.xlu0
      %1564 = vxpose.xlu0.c.b16.start [1/8] %v1401, 128
      %1565 = vxpose.xlu0.c.b16.cont [2/8] 0, 128
      %1566 = vxpose.xlu0.c.b16.cont [3/8] 0, 128
      %1567 = vxpose.xlu0.c.b16.cont [4/8] 0, 128
      %1568 = vxpose.xlu0.c.b16.cont [5/8] 0, 128
      %1569 = vxpose.xlu0.c.b16.cont [6/8] 0, 128
      %1570 = vxpose.xlu0.c.b16.cont [7/8] 0, 128
      %1571 = vxpose.xlu0.c.b16.end [8/8] 0, 128
      %v1572 = vpop.trf.xlu0
      %v1573 = vpop.trf.xlu0
      %v1574 = vpop.trf.xlu0
      %v1575 = vpop.trf.xlu0
      %v1576 = vpop.trf.xlu0
      %v1577 = vpop.trf.xlu0
      %v1578 = vpop.trf.xlu0
      %v1579 = vpop.trf.xlu0
      %1580 = vxpose.xlu0.c.b16.start [1/8] %v1402, 128
      %1581 = vxpose.xlu0.c.b16.cont [2/8] 0, 128
      %1582 = vxpose.xlu0.c.b16.cont [3/8] 0, 128
      %1583 = vxpose.xlu0.c.b16.cont [4/8] 0, 128
      %1584 = vxpose.xlu0.c.b16.cont [5/8] 0, 128
      %1585 = vxpose.xlu0.c.b16.cont [6/8] 0, 128
      %1586 = vxpose.xlu0.c.b16.cont [7/8] 0, 128
      %1587 = vxpose.xlu0.c.b16.end [8/8] 0, 128
      %v1588 = vpop.trf.xlu0
      %v1589 = vpop.trf.xlu0
      %v1590 = vpop.trf.xlu0
      %v1591 = vpop.trf.xlu0
      %v1592 = vpop.trf.xlu0
      %v1593 = vpop.trf.xlu0
      %v1594 = vpop.trf.xlu0
      %v1595 = vpop.trf.xlu0
      %1596 = vxpose.xlu0.c.b16.start [1/8] %v1403, 128
      %1597 = vxpose.xlu0.c.b16.cont [2/8] 0, 128
      %1598 = vxpose.xlu0.c.b16.cont [3/8] 0, 128
      %1599 = vxpose.xlu0.c.b16.cont [4/8] 0, 128
      %1600 = vxpose.xlu0.c.b16.cont [5/8] 0, 128
      %1601 = vxpose.xlu0.c.b16.cont [6/8] 0, 128
      %1602 = vxpose.xlu0.c.b16.cont [7/8] 0, 128
      %1603 = vxpose.xlu0.c.b16.end [8/8] 0, 128
      %v1604 = vpop.trf.xlu0
      %v1605 = vpop.trf.xlu0
      %v1606 = vpop.trf.xlu0
      %v1607 = vpop.trf.xlu0
      %v1608 = vpop.trf.xlu0
      %v1609 = vpop.trf.xlu0
      %v1610 = vpop.trf.xlu0
      %v1611 = vpop.trf.xlu0
      %1612 = vxpose.xlu0.c.b16.start [1/8] %v1404, 128
      %1613 = vxpose.xlu0.c.b16.cont [2/8] 0, 128
      %1614 = vxpose.xlu0.c.b16.cont [3/8] 0, 128
      %1615 = vxpose.xlu0.c.b16.cont [4/8] 0, 128
      %1616 = vxpose.xlu0.c.b16.cont [5/8] 0, 128
      %1617 = vxpose.xlu0.c.b16.cont [6/8] 0, 128
      %1618 = vxpose.xlu0.c.b16.cont [7/8] 0, 128
      %1619 = vxpose.xlu0.c.b16.end [8/8] 0, 128
      %v1620 = vpop.trf.xlu0
      %v1621 = vpop.trf.xlu0
      %v1622 = vpop.trf.xlu0
      %v1623 = vpop.trf.xlu0
      %v1624 = vpop.trf.xlu0
      %v1625 = vpop.trf.xlu0
      %v1626 = vpop.trf.xlu0
      %v1627 = vpop.trf.xlu0
      %1628 = vxpose.xlu0.c.b16.start [1/8] %v1405, 128
      %1629 = vxpose.xlu0.c.b16.cont [2/8] 0, 128
      %1630 = vxpose.xlu0.c.b16.cont [3/8] 0, 128
      %1631 = vxpose.xlu0.c.b16.cont [4/8] 0, 128
      %1632 = vxpose.xlu0.c.b16.cont [5/8] 0, 128
      %1633 = vxpose.xlu0.c.b16.cont [6/8] 0, 128
      %1634 = vxpose.xlu0.c.b16.cont [7/8] 0, 128
      %1635 = vxpose.xlu0.c.b16.end [8/8] 0, 128
      %v1636 = vpop.trf.xlu0
      %v1637 = vpop.trf.xlu0
      %v1638 = vpop.trf.xlu0
      %v1639 = vpop.trf.xlu0
      %v1640 = vpop.trf.xlu0
      %v1641 = vpop.trf.xlu0
      %v1642 = vpop.trf.xlu0
      %v1643 = vpop.trf.xlu0
      %1644 = vxpose.xlu0.c.b16.start [1/8] %v1406, 128
      %1645 = vxpose.xlu0.c.b16.cont [2/8] 0, 128
      %1646 = vxpose.xlu0.c.b16.cont [3/8] 0, 128
      %1647 = vxpose.xlu0.c.b16.cont [4/8] 0, 128
      %1648 = vxpose.xlu0.c.b16.cont [5/8] 0, 128
      %1649 = vxpose.xlu0.c.b16.cont [6/8] 0, 128
      %1650 = vxpose.xlu0.c.b16.cont [7/8] 0, 128
      %1651 = vxpose.xlu0.c.b16.end [8/8] 0, 128
      %v1652 = vpop.trf.xlu0
      %v1653 = vpop.trf.xlu0
      %v1654 = vpop.trf.xlu0
      %v1655 = vpop.trf.xlu0
      %v1656 = vpop.trf.xlu0
      %v1657 = vpop.trf.xlu0
      %v1658 = vpop.trf.xlu0
      %v1659 = vpop.trf.xlu0
      %1660 = vxpose.xlu0.c.b16.start [1/8] %v1407, 128
      %1661 = vxpose.xlu0.c.b16.cont [2/8] 0, 128
      %1662 = vxpose.xlu0.c.b16.cont [3/8] 0, 128
      %1663 = vxpose.xlu0.c.b16.cont [4/8] 0, 128
      %1664 = vxpose.xlu0.c.b16.cont [5/8] 0, 128
      %1665 = vxpose.xlu0.c.b16.cont [6/8] 0, 128
      %1666 = vxpose.xlu0.c.b16.cont [7/8] 0, 128
      %1667 = vxpose.xlu0.c.b16.end [8/8] 0, 128
      %v1668 = vpop.trf.xlu0
      %v1669 = vpop.trf.xlu0
      %v1670 = vpop.trf.xlu0
      %v1671 = vpop.trf.xlu0
      %v1672 = vpop.trf.xlu0
      %v1673 = vpop.trf.xlu0
      %v1674 = vpop.trf.xlu0
      %v1675 = vpop.trf.xlu0
      %1676 = vxpose.xlu0.c.b16.start [1/8] %v1408, 128
      %1677 = vxpose.xlu0.c.b16.cont [2/8] 0, 128
      %1678 = vxpose.xlu0.c.b16.cont [3/8] 0, 128
      %1679 = vxpose.xlu0.c.b16.cont [4/8] 0, 128
      %1680 = vxpose.xlu0.c.b16.cont [5/8] 0, 128
      %1681 = vxpose.xlu0.c.b16.cont [6/8] 0, 128
      %1682 = vxpose.xlu0.c.b16.cont [7/8] 0, 128
      %1683 = vxpose.xlu0.c.b16.end [8/8] 0, 128
      %v1684 = vpop.trf.xlu0
      %v1685 = vpop.trf.xlu0
      %v1686 = vpop.trf.xlu0
      %v1687 = vpop.trf.xlu0
      %v1688 = vpop.trf.xlu0
      %v1689 = vpop.trf.xlu0
      %v1690 = vpop.trf.xlu0
      %v1691 = vpop.trf.xlu0
      %1692 = vxpose.xlu0.c.b16.start [1/8] %v1409, 128
      %1693 = vxpose.xlu0.c.b16.cont [2/8] 0, 128
      %1694 = vxpose.xlu0.c.b16.cont [3/8] 0, 128
      %1695 = vxpose.xlu0.c.b16.cont [4/8] 0, 128
      %1696 = vxpose.xlu0.c.b16.cont [5/8] 0, 128
      %1697 = vxpose.xlu0.c.b16.cont [6/8] 0, 128
      %1698 = vxpose.xlu0.c.b16.cont [7/8] 0, 128
      %1699 = vxpose.xlu0.c.b16.end [8/8] 0, 128
      %v1700 = vpop.trf.xlu0
      %v1701 = vpop.trf.xlu0
      %v1702 = vpop.trf.xlu0
      %v1703 = vpop.trf.xlu0
      %v1704 = vpop.trf.xlu0
      %v1705 = vpop.trf.xlu0
      %v1706 = vpop.trf.xlu0
      %v1707 = vpop.trf.xlu0
      %1708 = vxpose.xlu0.c.b16.start [1/8] %v1410, 128
      %1709 = vxpose.xlu0.c.b16.cont [2/8] 0, 128
      %1710 = vxpose.xlu0.c.b16.cont [3/8] 0, 128
      %1711 = vxpose.xlu0.c.b16.cont [4/8] 0, 128
      %1712 = vxpose.xlu0.c.b16.cont [5/8] 0, 128
      %1713 = vxpose.xlu0.c.b16.cont [6/8] 0, 128
      %1714 = vxpose.xlu0.c.b16.cont [7/8] 0, 128
      %1715 = vxpose.xlu0.c.b16.end [8/8] 0, 128
      %v1716 = vpop.trf.xlu0
      %v1717 = vpop.trf.xlu0
      %v1718 = vpop.trf.xlu0
      %v1719 = vpop.trf.xlu0
      %v1720 = vpop.trf.xlu0
      %v1721 = vpop.trf.xlu0
      %v1722 = vpop.trf.xlu0
      %v1723 = vpop.trf.xlu0
      %1724 = vxpose.xlu0.c.b16.start [1/8] %v1411, 128
      %1725 = vxpose.xlu0.c.b16.cont [2/8] 0, 128
      %1726 = vxpose.xlu0.c.b16.cont [3/8] 0, 128
      %1727 = vxpose.xlu0.c.b16.cont [4/8] 0, 128
      %1728 = vxpose.xlu0.c.b16.cont [5/8] 0, 128
      %1729 = vxpose.xlu0.c.b16.cont [6/8] 0, 128
      %1730 = vxpose.xlu0.c.b16.cont [7/8] 0, 128
      %1731 = vxpose.xlu0.c.b16.end [8/8] 0, 128
      %v1732 = vpop.trf.xlu0
      %v1733 = vpop.trf.xlu0
      %v1734 = vpop.trf.xlu0
      %v1735 = vpop.trf.xlu0
      %v1736 = vpop.trf.xlu0
      %v1737 = vpop.trf.xlu0
      %v1738 = vpop.trf.xlu0
      %v1739 = vpop.trf.xlu0
      %1740 = vxpose.xlu0.c.b16.start [1/8] %v1412, 128
      %1741 = vxpose.xlu0.c.b16.cont [2/8] 0, 128
      %1742 = vxpose.xlu0.c.b16.cont [3/8] 0, 128
      %1743 = vxpose.xlu0.c.b16.cont [4/8] 0, 128
      %1744 = vxpose.xlu0.c.b16.cont [5/8] 0, 128
      %1745 = vxpose.xlu0.c.b16.cont [6/8] 0, 128
      %1746 = vxpose.xlu0.c.b16.cont [7/8] 0, 128
      %1747 = vxpose.xlu0.c.b16.end [8/8] 0, 128
      %v1748 = vpop.trf.xlu0
      %v1749 = vpop.trf.xlu0
      %v1750 = vpop.trf.xlu0
      %v1751 = vpop.trf.xlu0
      %v1752 = vpop.trf.xlu0
      %v1753 = vpop.trf.xlu0
      %v1754 = vpop.trf.xlu0
      %v1755 = vpop.trf.xlu0
      %1756 = vxpose.xlu0.c.b16.start [1/8] %v1413, 128
      %1757 = vxpose.xlu0.c.b16.cont [2/8] 0, 128
      %1758 = vxpose.xlu0.c.b16.cont [3/8] 0, 128
      %1759 = vxpose.xlu0.c.b16.cont [4/8] 0, 128
      %1760 = vxpose.xlu0.c.b16.cont [5/8] 0, 128
      %1761 = vxpose.xlu0.c.b16.cont [6/8] 0, 128
      %1762 = vxpose.xlu0.c.b16.cont [7/8] 0, 128
      %1763 = vxpose.xlu0.c.b16.end [8/8] 0, 128
      %v1764 = vpop.trf.xlu0
      %v1765 = vpop.trf.xlu0
      %v1766 = vpop.trf.xlu0
      %v1767 = vpop.trf.xlu0
      %v1768 = vpop.trf.xlu0
      %v1769 = vpop.trf.xlu0
      %v1770 = vpop.trf.xlu0
      %v1771 = vpop.trf.xlu0
      %1772 = vxpose.xlu0.c.b16.start [1/8] %v1414, 128
      %1773 = vxpose.xlu0.c.b16.cont [2/8] 0, 128
      %1774 = vxpose.xlu0.c.b16.cont [3/8] 0, 128
      %1775 = vxpose.xlu0.c.b16.cont [4/8] 0, 128
      %1776 = vxpose.xlu0.c.b16.cont [5/8] 0, 128
      %1777 = vxpose.xlu0.c.b16.cont [6/8] 0, 128
      %1778 = vxpose.xlu0.c.b16.cont [7/8] 0, 128
      %1779 = vxpose.xlu0.c.b16.end [8/8] 0, 128
      %v1780 = vpop.trf.xlu0
      %v1781 = vpop.trf.xlu0
      %v1782 = vpop.trf.xlu0
      %v1783 = vpop.trf.xlu0
      %v1784 = vpop.trf.xlu0
      %v1785 = vpop.trf.xlu0
      %v1786 = vpop.trf.xlu0
      %v1787 = vpop.trf.xlu0
      %1788 = vxpose.xlu0.c.b16.start [1/8] %v1415, 128
      %1789 = vxpose.xlu0.c.b16.cont [2/8] 0, 128
      %1790 = vxpose.xlu0.c.b16.cont [3/8] 0, 128
      %1791 = vxpose.xlu0.c.b16.cont [4/8] 0, 128
      %1792 = vxpose.xlu0.c.b16.cont [5/8] 0, 128
      %1793 = vxpose.xlu0.c.b16.cont [6/8] 0, 128
      %1794 = vxpose.xlu0.c.b16.cont [7/8] 0, 128
      %1795 = vxpose.xlu0.c.b16.end [8/8] 0, 128
      %v1796 = vpop.trf.xlu0
      %v1797 = vpop.trf.xlu0
      %v1798 = vpop.trf.xlu0
      %v1799 = vpop.trf.xlu0
      %v1800 = vpop.trf.xlu0
      %v1801 = vpop.trf.xlu0
      %v1802 = vpop.trf.xlu0
      %v1803 = vpop.trf.xlu0
      %1804 = vxpose.xlu0.c.b16.start [1/8] %v1416, 128
      %1805 = vxpose.xlu0.c.b16.cont [2/8] 0, 128
      %1806 = vxpose.xlu0.c.b16.cont [3/8] 0, 128
      %1807 = vxpose.xlu0.c.b16.cont [4/8] 0, 128
      %1808 = vxpose.xlu0.c.b16.cont [5/8] 0, 128
      %1809 = vxpose.xlu0.c.b16.cont [6/8] 0, 128
      %1810 = vxpose.xlu0.c.b16.cont [7/8] 0, 128
      %1811 = vxpose.xlu0.c.b16.end [8/8] 0, 128
      %v1812 = vpop.trf.xlu0
      %v1813 = vpop.trf.xlu0
      %v1814 = vpop.trf.xlu0
      %v1815 = vpop.trf.xlu0
      %v1816 = vpop.trf.xlu0
      %v1817 = vpop.trf.xlu0
      %v1818 = vpop.trf.xlu0
      %v1819 = vpop.trf.xlu0
      %v1820 = vcombine.low %v1556, %v1620
      %v1822 = vunpack.c.l.s4 1983009808
      %v1823 = vunpack.c.0.s8 %v1822
      %v1824 = vlaneseq
      %v1825 = vshrl.u32 %v1824, 7
      %v1826 = vsub.s32 %v1823, %v1825
      %v1827 = vrot.slane %v1820, %v1826
      %v1828 = vcombine.low %v1588, %v1652
      %v1830 = vunpack.c.l.s4 1983009808
      %v1831 = vunpack.c.0.s8 %v1830
      %v1832 = vlaneseq
      %v1833 = vshrl.u32 %v1832, 7
      %v1834 = vsub.s32 %v1831, %v1833
      %v1835 = vrot.slane %v1828, %v1834
      %v1836 = vcombine.low %v1684, %v1748
      %v1838 = vunpack.c.l.s4 1983009808
      %v1839 = vunpack.c.0.s8 %v1838
      %v1840 = vlaneseq
      %v1841 = vshrl.u32 %v1840, 7
      %v1842 = vsub.s32 %v1839, %v1841
      %v1843 = vrot.slane %v1836, %v1842
      %v1844 = vcombine.low %v1716, %v1780
      %v1846 = vunpack.c.l.s4 1983009808
      %v1847 = vunpack.c.0.s8 %v1846
      %v1848 = vlaneseq
      %v1849 = vshrl.u32 %v1848, 7
      %v1850 = vsub.s32 %v1847, %v1849
      %v1851 = vrot.slane %v1844, %v1850
      %v1852 = vcombine.low %v1827, %v1835
      %v1853 = vcombine.high %v1827, %v1835
      %v1855 = vunpack.c.l.s4 1934713408
      %v1856 = vunpack.c.0.s8 %v1855
      %v1857 = vlaneseq
      %v1858 = vshrl.u32 %v1857, 7
      %v1859 = vsub.s32 %v1856, %v1858
      %v1860 = vrot.slane %v1852, %v1859
      %v1862 = vunpack.c.l.s4 1934713408
      %v1863 = vunpack.c.0.s8 %v1862
      %v1864 = vlaneseq
      %v1865 = vshrl.u32 %v1864, 7
      %v1866 = vsub.s32 %v1863, %v1865
      %v1867 = vrot.slane %v1853, %v1866
      %v1868 = vcombine.low %v1843, %v1851
      %v1869 = vcombine.high %v1843, %v1851
      %v1871 = vunpack.c.l.s4 1934713408
      %v1872 = vunpack.c.0.s8 %v1871
      %v1873 = vlaneseq
      %v1874 = vshrl.u32 %v1873, 7
      %v1875 = vsub.s32 %v1872, %v1874
      %v1876 = vrot.slane %v1868, %v1875
      %v1878 = vunpack.c.l.s4 1934713408
      %v1879 = vunpack.c.0.s8 %v1878
      %v1880 = vlaneseq
      %v1881 = vshrl.u32 %v1880, 7
      %v1882 = vsub.s32 %v1879, %v1881
      %v1883 = vrot.slane %v1869, %v1882
      %v1884 = vcombine.low %v1860, %v1876
      %v1885 = vcombine.high %v1860, %v1876
      %v1886 = vcombine.low %v1867, %v1883
      %v1887 = vcombine.high %v1867, %v1883
      %v1888 = vcombine.low %v1572, %v1636
      %v1890 = vunpack.c.l.s4 1983009808
      %v1891 = vunpack.c.0.s8 %v1890
      %v1892 = vlaneseq
      %v1893 = vshrl.u32 %v1892, 7
      %v1894 = vsub.s32 %v1891, %v1893
      %v1895 = vrot.slane %v1888, %v1894
      %v1896 = vcombine.low %v1604, %v1668
      %v1898 = vunpack.c.l.s4 1983009808
      %v1899 = vunpack.c.0.s8 %v1898
      %v1900 = vlaneseq
      %v1901 = vshrl.u32 %v1900, 7
      %v1902 = vsub.s32 %v1899, %v1901
      %v1903 = vrot.slane %v1896, %v1902
      %v1904 = vcombine.low %v1700, %v1764
      %v1906 = vunpack.c.l.s4 1983009808
      %v1907 = vunpack.c.0.s8 %v1906
      %v1908 = vlaneseq
      %v1909 = vshrl.u32 %v1908, 7
      %v1910 = vsub.s32 %v1907, %v1909
      %v1911 = vrot.slane %v1904, %v1910
      %v1912 = vcombine.low %v1732, %v1796
      %v1914 = vunpack.c.l.s4 1983009808
      %v1915 = vunpack.c.0.s8 %v1914
      %v1916 = vlaneseq
      %v1917 = vshrl.u32 %v1916, 7
      %v1918 = vsub.s32 %v1915, %v1917
      %v1919 = vrot.slane %v1912, %v1918
      %v1920 = vcombine.low %v1895, %v1903
      %v1921 = vcombine.high %v1895, %v1903
      %v1923 = vunpack.c.l.s4 1934713408
      %v1924 = vunpack.c.0.s8 %v1923
      %v1925 = vlaneseq
      %v1926 = vshrl.u32 %v1925, 7
      %v1927 = vsub.s32 %v1924, %v1926
      %v1928 = vrot.slane %v1920, %v1927
      %v1930 = vunpack.c.l.s4 1934713408
      %v1931 = vunpack.c.0.s8 %v1930
      %v1932 = vlaneseq
      %v1933 = vshrl.u32 %v1932, 7
      %v1934 = vsub.s32 %v1931, %v1933
      %v1935 = vrot.slane %v1921, %v1934
      %v1936 = vcombine.low %v1911, %v1919
      %v1937 = vcombine.high %v1911, %v1919
      %v1939 = vunpack.c.l.s4 1934713408
      %v1940 = vunpack.c.0.s8 %v1939
      %v1941 = vlaneseq
      %v1942 = vshrl.u32 %v1941, 7
      %v1943 = vsub.s32 %v1940, %v1942
      %v1944 = vrot.slane %v1936, %v1943
      %v1946 = vunpack.c.l.s4 1934713408
      %v1947 = vunpack.c.0.s8 %v1946
      %v1948 = vlaneseq
      %v1949 = vshrl.u32 %v1948, 7
      %v1950 = vsub.s32 %v1947, %v1949
      %v1951 = vrot.slane %v1937, %v1950
      %v1952 = vcombine.low %v1928, %v1944
      %v1953 = vcombine.high %v1928, %v1944
      %v1954 = vcombine.low %v1935, %v1951
      %v1955 = vcombine.high %v1935, %v1951
      %v1957 = vunpack.c.l.s4 1983009808
      %v1958 = vunpack.c.0.s8 %v1957
      %v1959 = vlaneseq
      %v1960 = vshrl.u32 %v1959, 7
      %v1961 = vsub.s32 %v1958, %v1960
      %v1962 = vrot.slane %v1812, %v1961
      %v1963 = vcombine.high %v1962, 0
      %v1965 = vunpack.c.l.s4 1934713408
      %v1966 = vunpack.c.0.s8 %v1965
      %v1967 = vlaneseq
      %v1968 = vshrl.u32 %v1967, 7
      %v1969 = vsub.s32 %v1966, %v1968
      %v1970 = vrot.slane %v1962, %v1969
      %v1972 = vunpack.c.l.s4 1934713408
      %v1973 = vunpack.c.0.s8 %v1972
      %v1974 = vlaneseq
      %v1975 = vshrl.u32 %v1974, 7
      %v1976 = vsub.s32 %v1973, %v1975
      %v1977 = vrot.slane %v1963, %v1976
      %v1978 = vcombine.high %v1970, 0
      %v1979 = vcombine.high %v1977, 0
      %v1982 = vpack.i.b16 %v1952, %v1884
      %v1984 = vshrl.u32 %v1884, 16
      %v1985 = vshrl.u32 %v1952, 16
      %v1986 = vpack.i.b16 %v1985, %v1984
      %v1990 = vpack.i.b16 %v1953, %v1885
      %v1992 = vshrl.u32 %v1885, 16
      %v1993 = vshrl.u32 %v1953, 16
      %v1994 = vpack.i.b16 %v1993, %v1992
      %v1998 = vpack.i.b16 %v1954, %v1886
      %v2000 = vshrl.u32 %v1886, 16
      %v2001 = vshrl.u32 %v1954, 16
      %v2002 = vpack.i.b16 %v2001, %v2000
      %v2006 = vpack.i.b16 %v1955, %v1887
      %v2008 = vshrl.u32 %v1887, 16
      %v2009 = vshrl.u32 %v1955, 16
      %v2010 = vpack.i.b16 %v2009, %v2008
      %v2013 = vpack.i.b16 0, %v1970
      %v2015 = vshrl.u32 %v1970, 16
      %v2016 = vpack.i.b16 %v1542, %v2015
      %v2019 = vpack.i.b16 0, %v1978
      %v2021 = vshrl.u32 %v1978, 16
      %v2022 = vpack.i.b16 %v1542, %v2021
      %v2025 = vpack.i.b16 0, %v1977
      %v2027 = vshrl.u32 %v1977, 16
      %v2028 = vpack.i.b16 %v1542, %v2027
      %v2031 = vpack.i.b16 0, %v1979
      %v2033 = vshrl.u32 %v1979, 16
      %v2034 = vpack.i.b16 %v1542, %v2033
      %2036 = vxpose.xlu0.c.b16.start [1/8] %v1982, 128
      %2037 = vxpose.xlu0.c.b16.cont [2/8] %v2013, 128
      %2038 = vxpose.xlu0.c.b16.cont [3/8] 0, 128
      %2039 = vxpose.xlu0.c.b16.cont [4/8] 0, 128
      %2040 = vxpose.xlu0.c.b16.cont [5/8] 0, 128
      %2041 = vxpose.xlu0.c.b16.cont [6/8] 0, 128
      %2042 = vxpose.xlu0.c.b16.cont [7/8] 0, 128
      %2043 = vxpose.xlu0.c.b16.end [8/8] 0, 128
      %v2044 = vpop.trf.xlu0
      %v2045 = vpop.trf.xlu0
      %v2046 = vpop.trf.xlu0
      %v2047 = vpop.trf.xlu0
      %v2048 = vpop.trf.xlu0
      %v2049 = vpop.trf.xlu0
      %v2050 = vpop.trf.xlu0
      %v2051 = vpop.trf.xlu0
      %2052 = vxpose.xlu0.c.b16.start [1/8] %v1986, 128
      %2053 = vxpose.xlu0.c.b16.cont [2/8] %v2016, 128
      %2054 = vxpose.xlu0.c.b16.cont [3/8] 0, 128
      %2055 = vxpose.xlu0.c.b16.cont [4/8] 0, 128
      %2056 = vxpose.xlu0.c.b16.cont [5/8] 0, 128
      %2057 = vxpose.xlu0.c.b16.cont [6/8] 0, 128
      %2058 = vxpose.xlu0.c.b16.cont [7/8] 0, 128
      %2059 = vxpose.xlu0.c.b16.end [8/8] 0, 128
      %v2060 = vpop.trf.xlu0
      %v2061 = vpop.trf.xlu0
      %v2062 = vpop.trf.xlu0
      %v2063 = vpop.trf.xlu0
      %v2064 = vpop.trf.xlu0
      %v2065 = vpop.trf.xlu0
      %v2066 = vpop.trf.xlu0
      %v2067 = vpop.trf.xlu0
      %2068 = vxpose.xlu0.c.b16.start [1/8] %v1990, 128
      %2069 = vxpose.xlu0.c.b16.cont [2/8] %v2019, 128
      %2070 = vxpose.xlu0.c.b16.cont [3/8] 0, 128
      %2071 = vxpose.xlu0.c.b16.cont [4/8] 0, 128
      %2072 = vxpose.xlu0.c.b16.cont [5/8] 0, 128
      %2073 = vxpose.xlu0.c.b16.cont [6/8] 0, 128
      %2074 = vxpose.xlu0.c.b16.cont [7/8] 0, 128
      %2075 = vxpose.xlu0.c.b16.end [8/8] 0, 128
      %v2076 = vpop.trf.xlu0
      %v2077 = vpop.trf.xlu0
      %v2078 = vpop.trf.xlu0
      %v2079 = vpop.trf.xlu0
      %v2080 = vpop.trf.xlu0
      %v2081 = vpop.trf.xlu0
      %v2082 = vpop.trf.xlu0
      %v2083 = vpop.trf.xlu0
      %2084 = vxpose.xlu0.c.b16.start [1/8] %v1994, 128
      %2085 = vxpose.xlu0.c.b16.cont [2/8] %v2022, 128
      %2086 = vxpose.xlu0.c.b16.cont [3/8] 0, 128
      %2087 = vxpose.xlu0.c.b16.cont [4/8] 0, 128
      %2088 = vxpose.xlu0.c.b16.cont [5/8] 0, 128
      %2089 = vxpose.xlu0.c.b16.cont [6/8] 0, 128
      %2090 = vxpose.xlu0.c.b16.cont [7/8] 0, 128
      %2091 = vxpose.xlu0.c.b16.end [8/8] 0, 128
      %v2092 = vpop.trf.xlu0
      %v2093 = vpop.trf.xlu0
      %v2094 = vpop.trf.xlu0
      %v2095 = vpop.trf.xlu0
      %v2096 = vpop.trf.xlu0
      %v2097 = vpop.trf.xlu0
      %v2098 = vpop.trf.xlu0
      %v2099 = vpop.trf.xlu0
      %2100 = vxpose.xlu0.c.b16.start [1/8] %v1998, 128
      %2101 = vxpose.xlu0.c.b16.cont [2/8] %v2025, 128
      %2102 = vxpose.xlu0.c.b16.cont [3/8] 0, 128
      %2103 = vxpose.xlu0.c.b16.cont [4/8] 0, 128
      %2104 = vxpose.xlu0.c.b16.cont [5/8] 0, 128
      %2105 = vxpose.xlu0.c.b16.cont [6/8] 0, 128
      %2106 = vxpose.xlu0.c.b16.cont [7/8] 0, 128
      %2107 = vxpose.xlu0.c.b16.end [8/8] 0, 128
      %v2108 = vpop.trf.xlu0
      %v2109 = vpop.trf.xlu0
      %v2110 = vpop.trf.xlu0
      %v2111 = vpop.trf.xlu0
      %v2112 = vpop.trf.xlu0
      %v2113 = vpop.trf.xlu0
      %v2114 = vpop.trf.xlu0
      %v2115 = vpop.trf.xlu0
      %2116 = vxpose.xlu0.c.b16.start [1/8] %v2002, 128
      %2117 = vxpose.xlu0.c.b16.cont [2/8] %v2028, 128
      %2118 = vxpose.xlu0.c.b16.cont [3/8] 0, 128
      %2119 = vxpose.xlu0.c.b16.cont [4/8] 0, 128
      %2120 = vxpose.xlu0.c.b16.cont [5/8] 0, 128
      %2121 = vxpose.xlu0.c.b16.cont [6/8] 0, 128
      %2122 = vxpose.xlu0.c.b16.cont [7/8] 0, 128
      %2123 = vxpose.xlu0.c.b16.end [8/8] 0, 128
      %v2124 = vpop.trf.xlu0
      %v2125 = vpop.trf.xlu0
      %v2126 = vpop.trf.xlu0
      %v2127 = vpop.trf.xlu0
      %v2128 = vpop.trf.xlu0
      %v2129 = vpop.trf.xlu0
      %v2130 = vpop.trf.xlu0
      %v2131 = vpop.trf.xlu0
      %2132 = vxpose.xlu0.c.b16.start [1/8] %v2006, 128
      %2133 = vxpose.xlu0.c.b16.cont [2/8] %v2031, 128
      %2134 = vxpose.xlu0.c.b16.cont [3/8] 0, 128
      %2135 = vxpose.xlu0.c.b16.cont [4/8] 0, 128
      %2136 = vxpose.xlu0.c.b16.cont [5/8] 0, 128
      %2137 = vxpose.xlu0.c.b16.cont [6/8] 0, 128
      %2138 = vxpose.xlu0.c.b16.cont [7/8] 0, 128
      %2139 = vxpose.xlu0.c.b16.end [8/8] 0, 128
      %v2140 = vpop.trf.xlu0
      %v2141 = vpop.trf.xlu0
      %v2142 = vpop.trf.xlu0
      %v2143 = vpop.trf.xlu0
      %v2144 = vpop.trf.xlu0
      %v2145 = vpop.trf.xlu0
      %v2146 = vpop.trf.xlu0
      %v2147 = vpop.trf.xlu0
      %2148 = vxpose.xlu0.c.b16.start [1/8] %v2010, 128
      %2149 = vxpose.xlu0.c.b16.cont [2/8] %v2034, 128
      %2150 = vxpose.xlu0.c.b16.cont [3/8] 0, 128
      %2151 = vxpose.xlu0.c.b16.cont [4/8] 0, 128
      %2152 = vxpose.xlu0.c.b16.cont [5/8] 0, 128
      %2153 = vxpose.xlu0.c.b16.cont [6/8] 0, 128
      %2154 = vxpose.xlu0.c.b16.cont [7/8] 0, 128
      %2155 = vxpose.xlu0.c.b16.end [8/8] 0, 128
      %v2156 = vpop.trf.xlu0
      %v2157 = vpop.trf.xlu0
      %v2158 = vpop.trf.xlu0
      %v2159 = vpop.trf.xlu0
      %v2160 = vpop.trf.xlu0
      %v2161 = vpop.trf.xlu0
      %v2162 = vpop.trf.xlu0
      %v2163 = vpop.trf.xlu0
      %v2164 = vcombine.low %v2044, %v2108
      %v2166 = vunpack.c.l.s4 1983009808
      %v2167 = vunpack.c.0.s8 %v2166
      %v2168 = vlaneseq
      %v2169 = vshrl.u32 %v2168, 7
      %v2170 = vsub.s32 %v2167, %v2169
      %v2171 = vrot.slane %v2164, %v2170
      %v2172 = vcombine.low %v2076, %v2140
      %v2174 = vunpack.c.l.s4 1983009808
      %v2175 = vunpack.c.0.s8 %v2174
      %v2176 = vlaneseq
      %v2177 = vshrl.u32 %v2176, 7
      %v2178 = vsub.s32 %v2175, %v2177
      %v2179 = vrot.slane %v2172, %v2178
      %v2180 = vcombine.low %v2171, %v2179
      %v2182 = vunpack.c.l.s4 1934713408
      %v2183 = vunpack.c.0.s8 %v2182
      %v2184 = vlaneseq
      %v2185 = vshrl.u32 %v2184, 7
      %v2186 = vsub.s32 %v2183, %v2185
      %v2187 = vrot.slane %v2180, %v2186
      %v2188 = vcombine.high %v2187, 0
      %v2189 = vcombine.low %v2060, %v2124
      %v2191 = vunpack.c.l.s4 1983009808
      %v2192 = vunpack.c.0.s8 %v2191
      %v2193 = vlaneseq
      %v2194 = vshrl.u32 %v2193, 7
      %v2195 = vsub.s32 %v2192, %v2194
      %v2196 = vrot.slane %v2189, %v2195
      %v2197 = vcombine.low %v2092, %v2156
      %v2199 = vunpack.c.l.s4 1983009808
      %v2200 = vunpack.c.0.s8 %v2199
      %v2201 = vlaneseq
      %v2202 = vshrl.u32 %v2201, 7
      %v2203 = vsub.s32 %v2200, %v2202
      %v2204 = vrot.slane %v2197, %v2203
      %v2205 = vcombine.low %v2196, %v2204
      %v2207 = vunpack.c.l.s4 1934713408
      %v2208 = vunpack.c.0.s8 %v2207
      %v2209 = vlaneseq
      %v2210 = vshrl.u32 %v2209, 7
      %v2211 = vsub.s32 %v2208, %v2210
      %v2212 = vrot.slane %v2205, %v2211
      %v2213 = vcombine.high %v2212, 0
      %v2216 = vpack.i.b16 %v2212, %v2187
      %v2217 = vshrl.u32 %v2187, 16
      %v2218 = vshrl.u32 %v2212, 16
      %v2219 = vpack.i.b16 %v2218, %v2217
      %v2222 = vpack.i.b16 %v2213, %v2188
      %v2223 = vshrl.u32 %v2188, 16
      %v2224 = vshrl.u32 %v2213, 16
      %v2225 = vpack.i.b16 %v2224, %v2223
      %vm2226 = vcmask 64512
      %v2228 = vsel %vm2226, %v1528, 0
      %v2231 = vsel %vm2226, %v1540, 0
      %vm2233 = vcmask 1043456
      %v2235 = vsel %vm2233, %v2216, 0
      %2237 = vmatprep.subr.bf16.mxu0 0
      %2238 = vmatpush1.bf16.msra.mxu0 0
      %2239 = vmatprep.subr.bf16.mxu0 0
      %2240 = vmatpush1.bf16.msra.mxu0 0
      %2241 = vmatprep.subr.bf16.mxu0 0
      %2242 = vmatpush1.bf16.msra.mxu0 0
      %2243 = vmatprep.subr.bf16.mxu0 0
      %2244 = vmatpush1.bf16.msra.mxu0 0
      %2245 = vmatprep.subr.bf16.mxu0 0
      %2246 = vmatpush1.bf16.msra.mxu0 0
      %2247 = vmatprep.subr.bf16.mxu0 0
      %2248 = vmatpush1.bf16.msra.mxu0 0
      %2249 = vmatprep.subr.bf16.mxu0 0
      %2250 = vmatpush1.bf16.msra.mxu0 0
      %2251 = vmatprep.subr.bf16.mxu0 0
      %2252 = vmatpush1.bf16.msra.mxu0 %v2235
      %2253 = vmatprep.subr.bf16.mxu0 0
      %2254 = vmatpush2.bf16.msra.mxu0 0
      %2255 = vmatprep.subr.bf16.mxu0 0
      %2256 = vmatpush2.bf16.msra.mxu0 0
      %2257 = vmatprep.subr.bf16.mxu0 0
      %2258 = vmatpush2.bf16.msra.mxu0 0
      %2259 = vmatprep.subr.bf16.mxu0 0
      %2260 = vmatpush2.bf16.msra.mxu0 0
      %2261 = vmatprep.subr.bf16.mxu0 0
      %2262 = vmatpush2.bf16.msra.mxu0 0
      %2263 = vmatprep.subr.bf16.mxu0 0
      %2264 = vmatpush2.bf16.msra.mxu0 0
      %2265 = vmatprep.subr.bf16.mxu0 0
      %2266 = vmatpush2.bf16.msra.mxu0 0
      %2267 = vmatprep.subr.bf16.mxu0 0
      %2268 = vmatpush2.bf16.msra.mxu0 0
      %2269 = vmatprep.mubr.bf16.mxu0 0
      %2270 = vmatmul.mubr.bf16.gmra.mxu0 %v2228
      %v2271 = vpop.f32.mrf.mxu0
      %v2272 = vadd.f32 0.0, %v2271
      %v2273 = vpop.f32.mrf.mxu0
      %v2274 = vpop.f32.mrf.mxu0
      %v2275 = vadd.f32 0.0, %v2274
      %v2276 = vpop.f32.mrf.mxu0
      %2277 = vmatprep.mubr.bf16.mxu0 0
      %2278 = vmatmul.mubr.bf16.gmra.mxu0 %v2231
      %v2279 = vpop.f32.mrf.mxu0
      %v2280 = vadd.f32 0.0, %v2279
      %v2281 = vpop.f32.mrf.mxu0
      %v2282 = vpop.f32.mrf.mxu0
      %v2283 = vpop.f32.mrf.mxu0
      %2284 = vdwg.mxu0
      %v2286 = vsel %vm2226, %v1531, 0
      %v2289 = vsel %vm2226, %v1543, 0
      %v2292 = vsel %vm2233, %v2219, 0
      %2294 = vmatprep.subr.bf16.mxu0 0
      %2295 = vmatpush1.bf16.msra.mxu0 0
      %2296 = vmatprep.subr.bf16.mxu0 0
      %2297 = vmatpush1.bf16.msra.mxu0 0
      %2298 = vmatprep.subr.bf16.mxu0 0
      %2299 = vmatpush1.bf16.msra.mxu0 0
      %2300 = vmatprep.subr.bf16.mxu0 0
      %2301 = vmatpush1.bf16.msra.mxu0 0
      %2302 = vmatprep.subr.bf16.mxu0 0
      %2303 = vmatpush1.bf16.msra.mxu0 0
      %2304 = vmatprep.subr.bf16.mxu0 0
      %2305 = vmatpush1.bf16.msra.mxu0 0
      %2306 = vmatprep.subr.bf16.mxu0 0
      %2307 = vmatpush1.bf16.msra.mxu0 0
      %2308 = vmatprep.subr.bf16.mxu0 0
      %2309 = vmatpush1.bf16.msra.mxu0 %v2292
      %2310 = vmatprep.subr.bf16.mxu0 0
      %2311 = vmatpush2.bf16.msra.mxu0 0
      %2312 = vmatprep.subr.bf16.mxu0 0
      %2313 = vmatpush2.bf16.msra.mxu0 0
      %2314 = vmatprep.subr.bf16.mxu0 0
      %2315 = vmatpush2.bf16.msra.mxu0 0
      %2316 = vmatprep.subr.bf16.mxu0 0
      %2317 = vmatpush2.bf16.msra.mxu0 0
      %2318 = vmatprep.subr.bf16.mxu0 0
      %2319 = vmatpush2.bf16.msra.mxu0 0
      %2320 = vmatprep.subr.bf16.mxu0 0
      %2321 = vmatpush2.bf16.msra.mxu0 0
      %2322 = vmatprep.subr.bf16.mxu0 0
      %2323 = vmatpush2.bf16.msra.mxu0 0
      %2324 = vmatprep.subr.bf16.mxu0 0
      %2325 = vmatpush2.bf16.msra.mxu0 0
      %2326 = vmatprep.mubr.bf16.mxu0 0
      %2327 = vmatmul.mubr.bf16.gmra.mxu0 %v2286
      %v2328 = vpop.f32.mrf.mxu0
      %v2329 = vadd.f32 0.0, %v2328
      %v2330 = vpop.f32.mrf.mxu0
      %v2331 = vpop.f32.mrf.mxu0
      %v2332 = vadd.f32 0.0, %v2331
      %v2333 = vpop.f32.mrf.mxu0
      %2334 = vmatprep.mubr.bf16.mxu0 0
      %2335 = vmatmul.mubr.bf16.gmra.mxu0 %v2289
      %v2336 = vpop.f32.mrf.mxu0
      %v2337 = vadd.f32 0.0, %v2336
      %v2338 = vpop.f32.mrf.mxu0
      %v2339 = vpop.f32.mrf.mxu0
      %v2340 = vpop.f32.mrf.mxu0
      %2341 = vdwg.mxu0
      %v2343 = vsel %vm2226, %v1534, 0
      %v2346 = vsel %vm2226, %v1545, 0
      %v2349 = vsel %vm2233, %v2222, 0
      %2351 = vmatprep.subr.bf16.mxu0 0
      %2352 = vmatpush1.bf16.msra.mxu0 0
      %2353 = vmatprep.subr.bf16.mxu0 0
      %2354 = vmatpush1.bf16.msra.mxu0 0
      %2355 = vmatprep.subr.bf16.mxu0 0
      %2356 = vmatpush1.bf16.msra.mxu0 0
      %2357 = vmatprep.subr.bf16.mxu0 0
      %2358 = vmatpush1.bf16.msra.mxu0 0
      %2359 = vmatprep.subr.bf16.mxu0 0
      %2360 = vmatpush1.bf16.msra.mxu0 0
      %2361 = vmatprep.subr.bf16.mxu0 0
      %2362 = vmatpush1.bf16.msra.mxu0 0
      %2363 = vmatprep.subr.bf16.mxu0 0
      %2364 = vmatpush1.bf16.msra.mxu0 0
      %2365 = vmatprep.subr.bf16.mxu0 0
      %2366 = vmatpush1.bf16.msra.mxu0 %v2349
      %2367 = vmatprep.subr.bf16.mxu0 0
      %2368 = vmatpush2.bf16.msra.mxu0 0
      %2369 = vmatprep.subr.bf16.mxu0 0
      %2370 = vmatpush2.bf16.msra.mxu0 0
      %2371 = vmatprep.subr.bf16.mxu0 0
      %2372 = vmatpush2.bf16.msra.mxu0 0
      %2373 = vmatprep.subr.bf16.mxu0 0
      %2374 = vmatpush2.bf16.msra.mxu0 0
      %2375 = vmatprep.subr.bf16.mxu0 0
      %2376 = vmatpush2.bf16.msra.mxu0 0
      %2377 = vmatprep.subr.bf16.mxu0 0
      %2378 = vmatpush2.bf16.msra.mxu0 0
      %2379 = vmatprep.subr.bf16.mxu0 0
      %2380 = vmatpush2.bf16.msra.mxu0 0
      %2381 = vmatprep.subr.bf16.mxu0 0
      %2382 = vmatpush2.bf16.msra.mxu0 0
      %2383 = vmatprep.mubr.bf16.mxu0 0
      %2384 = vmatmul.mubr.bf16.gmra.mxu0 %v2343
      %v2385 = vpop.f32.mrf.mxu0
      %v2386 = vadd.f32 0.0, %v2385
      %v2387 = vpop.f32.mrf.mxu0
      %v2388 = vpop.f32.mrf.mxu0
      %v2389 = vadd.f32 0.0, %v2388
      %v2390 = vpop.f32.mrf.mxu0
      %2391 = vmatprep.mubr.bf16.mxu0 0
      %2392 = vmatmul.mubr.bf16.gmra.mxu0 %v2346
      %v2393 = vpop.f32.mrf.mxu0
      %v2394 = vadd.f32 0.0, %v2393
      %v2395 = vpop.f32.mrf.mxu0
      %v2396 = vpop.f32.mrf.mxu0
      %v2397 = vpop.f32.mrf.mxu0
      %2398 = vdwg.mxu0
      %v2400 = vsel %vm2226, %v1537, 0
      %v2403 = vsel %vm2226, %v1547, 0
      %v2406 = vsel %vm2233, %v2225, 0
      %2408 = vmatprep.subr.bf16.mxu0 0
      %2409 = vmatpush1.bf16.msra.mxu0 0
      %2410 = vmatprep.subr.bf16.mxu0 0
      %2411 = vmatpush1.bf16.msra.mxu0 0
      %2412 = vmatprep.subr.bf16.mxu0 0
      %2413 = vmatpush1.bf16.msra.mxu0 0
      %2414 = vmatprep.subr.bf16.mxu0 0
      %2415 = vmatpush1.bf16.msra.mxu0 0
      %2416 = vmatprep.subr.bf16.mxu0 0
      %2417 = vmatpush1.bf16.msra.mxu0 0
      %2418 = vmatprep.subr.bf16.mxu0 0
      %2419 = vmatpush1.bf16.msra.mxu0 0
      %2420 = vmatprep.subr.bf16.mxu0 0
      %2421 = vmatpush1.bf16.msra.mxu0 0
      %2422 = vmatprep.subr.bf16.mxu0 0
      %2423 = vmatpush1.bf16.msra.mxu0 %v2406
      %2424 = vmatprep.subr.bf16.mxu0 0
      %2425 = vmatpush2.bf16.msra.mxu0 0
      %2426 = vmatprep.subr.bf16.mxu0 0
      %2427 = vmatpush2.bf16.msra.mxu0 0
      %2428 = vmatprep.subr.bf16.mxu0 0
      %2429 = vmatpush2.bf16.msra.mxu0 0
      %2430 = vmatprep.subr.bf16.mxu0 0
      %2431 = vmatpush2.bf16.msra.mxu0 0
      %2432 = vmatprep.subr.bf16.mxu0 0
      %2433 = vmatpush2.bf16.msra.mxu0 0
      %2434 = vmatprep.subr.bf16.mxu0 0
      %2435 = vmatpush2.bf16.msra.mxu0 0
      %2436 = vmatprep.subr.bf16.mxu0 0
      %2437 = vmatpush2.bf16.msra.mxu0 0
      %2438 = vmatprep.subr.bf16.mxu0 0
      %2439 = vmatpush2.bf16.msra.mxu0 0
      %2440 = vmatprep.mubr.bf16.mxu0 0
      %2441 = vmatmul.mubr.bf16.gmra.mxu0 %v2400
      %v2442 = vpop.f32.mrf.mxu0
      %v2443 = vadd.f32 0.0, %v2442
      %v2444 = vpop.f32.mrf.mxu0
      %v2445 = vpop.f32.mrf.mxu0
      %v2446 = vadd.f32 0.0, %v2445
      %v2447 = vpop.f32.mrf.mxu0
      %2448 = vmatprep.mubr.bf16.mxu0 0
      %2449 = vmatmul.mubr.bf16.gmra.mxu0 %v2403
      %v2450 = vpop.f32.mrf.mxu0
      %v2451 = vadd.f32 0.0, %v2450
      %v2452 = vpop.f32.mrf.mxu0
      %v2453 = vpop.f32.mrf.mxu0
      %v2454 = vpop.f32.mrf.mxu0
      %2455 = vdwg.mxu0
      %v2456 = vmul.f32 %v2272, 0.35355338
      %v2457 = vmul.f32 %v2275, 0.35355338
      %v2458 = vmul.f32 %v2280, 0.35355338
      %v2459 = vmul.f32 %v2329, 0.35355338
      %v2460 = vmul.f32 %v2332, 0.35355338
      %v2461 = vmul.f32 %v2337, 0.35355338
      %v2462 = vmul.f32 %v2386, 0.35355338
      %v2463 = vmul.f32 %v2389, 0.35355338
      %v2464 = vmul.f32 %v2394, 0.35355338
      %v2465 = vmul.f32 %v2443, 0.35355338
      %v2466 = vmul.f32 %v2446, 0.35355338
      %v2467 = vmul.f32 %v2451, 0.35355338
      %vm2468 = vcmask 138240
      %v2469 = vsel %vm2468, %v2456, -inf
      %2470 = vmax.xlane.f32.xlu0 %v2469
      %v2471 = vpop.xlane.xlu0 %2470
      %v2472 = vsel %vm2468, %v2457, -inf
      %2473 = vmax.xlane.f32.xlu0 %v2472
      %v2474 = vpop.xlane.xlu0 %2473
      %vm2475 = vcmask 131072
      %v2476 = vsel %vm2475, %v2458, -inf
      %2477 = vmax.xlane.f32.xlu0 %v2476
      %v2478 = vpop.xlane.xlu0 %2477
      %v2479 = vsel %vm2468, %v2459, -inf
      %2480 = vmax.xlane.f32.xlu0 %v2479
      %v2481 = vpop.xlane.xlu0 %2480
      %v2482 = vsel %vm2468, %v2460, -inf
      %2483 = vmax.xlane.f32.xlu0 %v2482
      %v2484 = vpop.xlane.xlu0 %2483
      %v2485 = vsel %vm2475, %v2461, -inf
      %2486 = vmax.xlane.f32.xlu0 %v2485
      %v2487 = vpop.xlane.xlu0 %2486
      %v2488 = vsel %vm2468, %v2462, -inf
      %2489 = vmax.xlane.f32.xlu0 %v2488
      %v2490 = vpop.xlane.xlu0 %2489
      %v2491 = vsel %vm2468, %v2463, -inf
      %2492 = vmax.xlane.f32.xlu0 %v2491
      %v2493 = vpop.xlane.xlu0 %2492
      %v2494 = vsel %vm2475, %v2464, -inf
      %2495 = vmax.xlane.f32.xlu0 %v2494
      %v2496 = vpop.xlane.xlu0 %2495
      %v2497 = vsel %vm2468, %v2465, -inf
      %2498 = vmax.xlane.f32.xlu0 %v2497
      %v2499 = vpop.xlane.xlu0 %2498
      %v2500 = vsel %vm2468, %v2466, -inf
      %2501 = vmax.xlane.f32.xlu0 %v2500
      %v2502 = vpop.xlane.xlu0 %2501
      %v2503 = vsel %vm2475, %v2467, -inf
      %2504 = vmax.xlane.f32.xlu0 %v2503
      %v2505 = vpop.xlane.xlu0 %2504
      %v2506 = vsub.f32 %v2456, %v2471
      %v2507 = vsub.f32 %v2457, %v2474
      %v2508 = vsub.f32 %v2458, %v2478
      %v2509 = vsub.f32 %v2459, %v2481
      %v2510 = vsub.f32 %v2460, %v2484
      %v2511 = vsub.f32 %v2461, %v2487
      %v2512 = vsub.f32 %v2462, %v2490
      %v2513 = vsub.f32 %v2463, %v2493
      %v2514 = vsub.f32 %v2464, %v2496
      %v2515 = vsub.f32 %v2465, %v2499
      %v2516 = vsub.f32 %v2466, %v2502
      %v2517 = vsub.f32 %v2467, %v2505
      %v2518 = vmul.f32 %v2506, 1.442695
      %v2519 = vpow.pop %v2518
      %v2520 = vmul.f32 %v2507, 1.442695
      %v2521 = vpow.pop %v2520
      %v2522 = vmul.f32 %v2508, 1.442695
      %v2523 = vpow.pop %v2522
      %v2524 = vmul.f32 %v2509, 1.442695
      %v2525 = vpow.pop %v2524
      %v2526 = vmul.f32 %v2510, 1.442695
      %v2527 = vpow.pop %v2526
      %v2528 = vmul.f32 %v2511, 1.442695
      %v2529 = vpow.pop %v2528
      %v2530 = vmul.f32 %v2512, 1.442695
      %v2531 = vpow.pop %v2530
      %v2532 = vmul.f32 %v2513, 1.442695
      %v2533 = vpow.pop %v2532
      %v2534 = vmul.f32 %v2514, 1.442695
      %v2535 = vpow.pop %v2534
      %v2536 = vmul.f32 %v2515, 1.442695
      %v2537 = vpow.pop %v2536
      %v2538 = vmul.f32 %v2516, 1.442695
      %v2539 = vpow.pop %v2538
      %v2540 = vmul.f32 %v2517, 1.442695
      %v2541 = vpow.pop %v2540
      %v2542 = vsel %vm2468, %v2519, 0.0
      %2543 = vadd.xlane.f32.xlu0 %v2542
      %v2544 = vpop.xlane.xlu0 %2543
      %v2545 = vsel %vm2468, %v2521, 0.0
      %2546 = vadd.xlane.f32.xlu0 %v2545
      %v2547 = vpop.xlane.xlu0 %2546
      %v2548 = vsel %vm2475, %v2523, 0.0
      %2549 = vadd.xlane.f32.xlu0 %v2548
      %v2550 = vpop.xlane.xlu0 %2549
      %v2551 = vsel %vm2468, %v2525, 0.0
      %2552 = vadd.xlane.f32.xlu0 %v2551
      %v2553 = vpop.xlane.xlu0 %2552
      %v2554 = vsel %vm2468, %v2527, 0.0
      %2555 = vadd.xlane.f32.xlu0 %v2554
      %v2556 = vpop.xlane.xlu0 %2555
      %v2557 = vsel %vm2475, %v2529, 0.0
      %2558 = vadd.xlane.f32.xlu0 %v2557
      %v2559 = vpop.xlane.xlu0 %2558
      %v2560 = vsel %vm2468, %v2531, 0.0
      %2561 = vadd.xlane.f32.xlu0 %v2560
      %v2562 = vpop.xlane.xlu0 %2561
      %v2563 = vsel %vm2468, %v2533, 0.0
      %2564 = vadd.xlane.f32.xlu0 %v2563
      %v2565 = vpop.xlane.xlu0 %2564
      %v2566 = vsel %vm2475, %v2535, 0.0
      %2567 = vadd.xlane.f32.xlu0 %v2566
      %v2568 = vpop.xlane.xlu0 %2567
      %v2569 = vsel %vm2468, %v2537, 0.0
      %2570 = vadd.xlane.f32.xlu0 %v2569
      %v2571 = vpop.xlane.xlu0 %2570
      %v2572 = vsel %vm2468, %v2539, 0.0
      %2573 = vadd.xlane.f32.xlu0 %v2572
      %v2574 = vpop.xlane.xlu0 %2573
      %v2575 = vsel %vm2475, %v2541, 0.0
      %2576 = vadd.xlane.f32.xlu0 %v2575
      %v2577 = vpop.xlane.xlu0 %2576
      %v2578 = vrcp.pop %v2544
      %v2579 = vrcp.pop %v2547
      %v2580 = vrcp.pop %v2550
      %v2581 = vrcp.pop %v2553
      %v2582 = vrcp.pop %v2556
      %v2583 = vrcp.pop %v2559
      %v2584 = vrcp.pop %v2562
      %v2585 = vrcp.pop %v2565
      %v2586 = vrcp.pop %v2568
      %v2587 = vrcp.pop %v2571
      %v2588 = vrcp.pop %v2574
      %v2589 = vrcp.pop %v2577
      %v2590 = vmul.f32 %v2519, %v2578
      %v2591 = vmul.f32 %v2521, %v2579
      %v2592 = vmul.f32 %v2523, %v2580
      %v2593 = vmul.f32 %v2525, %v2581
      %v2594 = vmul.f32 %v2527, %v2582
      %v2595 = vmul.f32 %v2529, %v2583
      %v2596 = vmul.f32 %v2531, %v2584
      %v2597 = vmul.f32 %v2533, %v2585
      %v2598 = vmul.f32 %v2535, %v2586
      %v2599 = vmul.f32 %v2537, %v2587
      %v2600 = vmul.f32 %v2539, %v2588
      %v2601 = vmul.f32 %v2541, %v2589
      %v2602 = vpack.c.bf16 %v2591, %v2590
      %v2603 = vpack.c.bf16 %v2592, %v2592
      %v2604 = vpack.c.bf16 %v2594, %v2593
      %v2605 = vpack.c.bf16 %v2595, %v2595
      %v2606 = vpack.c.bf16 %v2597, %v2596
      %v2607 = vpack.c.bf16 %v2598, %v2598
      %v2608 = vpack.c.bf16 %v2600, %v2599
      %v2609 = vpack.c.bf16 %v2601, %v2601
      %v2610 = vpack.c.bf16 %v1264, %v1264
      %v2611 = vpack.c.bf16 %v1288, %v1288
      %v2612 = vpack.c.bf16 %v1271, %v1271
      %v2613 = vpack.c.bf16 %v1289, %v1289
      %v2614 = vpack.c.bf16 %v1280, %v1280
      %v2615 = vpack.c.bf16 %v1290, %v1290
      %v2616 = vpack.c.bf16 %v1287, %v1287
      %v2617 = vpack.c.bf16 %v1291, %v1291
      %v2618 = vpack.c.bf16 %v1332, %v1332
      %v2619 = vpack.c.bf16 %v1356, %v1356
      %v2620 = vpack.c.bf16 %v1339, %v1339
      %v2621 = vpack.c.bf16 %v1357, %v1357
      %v2622 = vpack.c.bf16 %v1348, %v1348
      %v2623 = vpack.c.bf16 %v1358, %v1358
      %v2624 = vpack.c.bf16 %v1355, %v1355
      %v2625 = vpack.c.bf16 %v1359, %v1359
      %v2626 = vpack.c.bf16 %v1383, %v1383
      %2627 = vxpose.xlu0.c.b16.start [1/8] %v2610, 128
      %2628 = vxpose.xlu0.c.b16.cont [2/8] 0, 128
      %2629 = vxpose.xlu0.c.b16.cont [3/8] 0, 128
      %2630 = vxpose.xlu0.c.b16.cont [4/8] 0, 128
      %2631 = vxpose.xlu0.c.b16.cont [5/8] 0, 128
      %2632 = vxpose.xlu0.c.b16.cont [6/8] 0, 128
      %2633 = vxpose.xlu0.c.b16.cont [7/8] 0, 128
      %2634 = vxpose.xlu0.c.b16.end [8/8] 0, 128
      %v2635 = vpop.trf.xlu0
      %v2636 = vpop.trf.xlu0
      %v2637 = vpop.trf.xlu0
      %v2638 = vpop.trf.xlu0
      %v2639 = vpop.trf.xlu0
      %v2640 = vpop.trf.xlu0
      %v2641 = vpop.trf.xlu0
      %v2642 = vpop.trf.xlu0
      %2643 = vxpose.xlu0.c.b16.start [1/8] %v2611, 128
      %2644 = vxpose.xlu0.c.b16.cont [2/8] 0, 128
      %2645 = vxpose.xlu0.c.b16.cont [3/8] 0, 128
      %2646 = vxpose.xlu0.c.b16.cont [4/8] 0, 128
      %2647 = vxpose.xlu0.c.b16.cont [5/8] 0, 128
      %2648 = vxpose.xlu0.c.b16.cont [6/8] 0, 128
      %2649 = vxpose.xlu0.c.b16.cont [7/8] 0, 128
      %2650 = vxpose.xlu0.c.b16.end [8/8] 0, 128
      %v2651 = vpop.trf.xlu0
      %v2652 = vpop.trf.xlu0
      %v2653 = vpop.trf.xlu0
      %v2654 = vpop.trf.xlu0
      %v2655 = vpop.trf.xlu0
      %v2656 = vpop.trf.xlu0
      %v2657 = vpop.trf.xlu0
      %v2658 = vpop.trf.xlu0
      %2659 = vxpose.xlu0.c.b16.start [1/8] %v2612, 128
      %2660 = vxpose.xlu0.c.b16.cont [2/8] 0, 128
      %2661 = vxpose.xlu0.c.b16.cont [3/8] 0, 128
      %2662 = vxpose.xlu0.c.b16.cont [4/8] 0, 128
      %2663 = vxpose.xlu0.c.b16.cont [5/8] 0, 128
      %2664 = vxpose.xlu0.c.b16.cont [6/8] 0, 128
      %2665 = vxpose.xlu0.c.b16.cont [7/8] 0, 128
      %2666 = vxpose.xlu0.c.b16.end [8/8] 0, 128
      %v2667 = vpop.trf.xlu0
      %v2668 = vpop.trf.xlu0
      %v2669 = vpop.trf.xlu0
      %v2670 = vpop.trf.xlu0
      %v2671 = vpop.trf.xlu0
      %v2672 = vpop.trf.xlu0
      %v2673 = vpop.trf.xlu0
      %v2674 = vpop.trf.xlu0
      %2675 = vxpose.xlu0.c.b16.start [1/8] %v2613, 128
      %2676 = vxpose.xlu0.c.b16.cont [2/8] 0, 128
      %2677 = vxpose.xlu0.c.b16.cont [3/8] 0, 128
      %2678 = vxpose.xlu0.c.b16.cont [4/8] 0, 128
      %2679 = vxpose.xlu0.c.b16.cont [5/8] 0, 128
      %2680 = vxpose.xlu0.c.b16.cont [6/8] 0, 128
      %2681 = vxpose.xlu0.c.b16.cont [7/8] 0, 128
      %2682 = vxpose.xlu0.c.b16.end [8/8] 0, 128
      %v2683 = vpop.trf.xlu0
      %v2684 = vpop.trf.xlu0
      %v2685 = vpop.trf.xlu0
      %v2686 = vpop.trf.xlu0
      %v2687 = vpop.trf.xlu0
      %v2688 = vpop.trf.xlu0
      %v2689 = vpop.trf.xlu0
      %v2690 = vpop.trf.xlu0
      %2691 = vxpose.xlu0.c.b16.start [1/8] %v2614, 128
      %2692 = vxpose.xlu0.c.b16.cont [2/8] 0, 128
      %2693 = vxpose.xlu0.c.b16.cont [3/8] 0, 128
      %2694 = vxpose.xlu0.c.b16.cont [4/8] 0, 128
      %2695 = vxpose.xlu0.c.b16.cont [5/8] 0, 128
      %2696 = vxpose.xlu0.c.b16.cont [6/8] 0, 128
      %2697 = vxpose.xlu0.c.b16.cont [7/8] 0, 128
      %2698 = vxpose.xlu0.c.b16.end [8/8] 0, 128
      %v2699 = vpop.trf.xlu0
      %v2700 = vpop.trf.xlu0
      %v2701 = vpop.trf.xlu0
      %v2702 = vpop.trf.xlu0
      %v2703 = vpop.trf.xlu0
      %v2704 = vpop.trf.xlu0
      %v2705 = vpop.trf.xlu0
      %v2706 = vpop.trf.xlu0
      %2707 = vxpose.xlu0.c.b16.start [1/8] %v2615, 128
      %2708 = vxpose.xlu0.c.b16.cont [2/8] 0, 128
      %2709 = vxpose.xlu0.c.b16.cont [3/8] 0, 128
      %2710 = vxpose.xlu0.c.b16.cont [4/8] 0, 128
      %2711 = vxpose.xlu0.c.b16.cont [5/8] 0, 128
      %2712 = vxpose.xlu0.c.b16.cont [6/8] 0, 128
      %2713 = vxpose.xlu0.c.b16.cont [7/8] 0, 128
      %2714 = vxpose.xlu0.c.b16.end [8/8] 0, 128
      %v2715 = vpop.trf.xlu0
      %v2716 = vpop.trf.xlu0
      %v2717 = vpop.trf.xlu0
      %v2718 = vpop.trf.xlu0
      %v2719 = vpop.trf.xlu0
      %v2720 = vpop.trf.xlu0
      %v2721 = vpop.trf.xlu0
      %v2722 = vpop.trf.xlu0
      %2723 = vxpose.xlu0.c.b16.start [1/8] %v2616, 128
      %2724 = vxpose.xlu0.c.b16.cont [2/8] 0, 128
      %2725 = vxpose.xlu0.c.b16.cont [3/8] 0, 128
      %2726 = vxpose.xlu0.c.b16.cont [4/8] 0, 128
      %2727 = vxpose.xlu0.c.b16.cont [5/8] 0, 128
      %2728 = vxpose.xlu0.c.b16.cont [6/8] 0, 128
      %2729 = vxpose.xlu0.c.b16.cont [7/8] 0, 128
      %2730 = vxpose.xlu0.c.b16.end [8/8] 0, 128
      %v2731 = vpop.trf.xlu0
      %v2732 = vpop.trf.xlu0
      %v2733 = vpop.trf.xlu0
      %v2734 = vpop.trf.xlu0
      %v2735 = vpop.trf.xlu0
      %v2736 = vpop.trf.xlu0
      %v2737 = vpop.trf.xlu0
      %v2738 = vpop.trf.xlu0
      %2739 = vxpose.xlu0.c.b16.start [1/8] %v2617, 128
      %2740 = vxpose.xlu0.c.b16.cont [2/8] 0, 128
      %2741 = vxpose.xlu0.c.b16.cont [3/8] 0, 128
      %2742 = vxpose.xlu0.c.b16.cont [4/8] 0, 128
      %2743 = vxpose.xlu0.c.b16.cont [5/8] 0, 128
      %2744 = vxpose.xlu0.c.b16.cont [6/8] 0, 128
      %2745 = vxpose.xlu0.c.b16.cont [7/8] 0, 128
      %2746 = vxpose.xlu0.c.b16.end [8/8] 0, 128
      %v2747 = vpop.trf.xlu0
      %v2748 = vpop.trf.xlu0
      %v2749 = vpop.trf.xlu0
      %v2750 = vpop.trf.xlu0
      %v2751 = vpop.trf.xlu0
      %v2752 = vpop.trf.xlu0
      %v2753 = vpop.trf.xlu0
      %v2754 = vpop.trf.xlu0
      %2755 = vxpose.xlu0.c.b16.start [1/8] %v2618, 128
      %2756 = vxpose.xlu0.c.b16.cont [2/8] 0, 128
      %2757 = vxpose.xlu0.c.b16.cont [3/8] 0, 128
      %2758 = vxpose.xlu0.c.b16.cont [4/8] 0, 128
      %2759 = vxpose.xlu0.c.b16.cont [5/8] 0, 128
      %2760 = vxpose.xlu0.c.b16.cont [6/8] 0, 128
      %2761 = vxpose.xlu0.c.b16.cont [7/8] 0, 128
      %2762 = vxpose.xlu0.c.b16.end [8/8] 0, 128
      %v2763 = vpop.trf.xlu0
      %v2764 = vpop.trf.xlu0
      %v2765 = vpop.trf.xlu0
      %v2766 = vpop.trf.xlu0
      %v2767 = vpop.trf.xlu0
      %v2768 = vpop.trf.xlu0
      %v2769 = vpop.trf.xlu0
      %v2770 = vpop.trf.xlu0
      %2771 = vxpose.xlu0.c.b16.start [1/8] %v2619, 128
      %2772 = vxpose.xlu0.c.b16.cont [2/8] 0, 128
      %2773 = vxpose.xlu0.c.b16.cont [3/8] 0, 128
      %2774 = vxpose.xlu0.c.b16.cont [4/8] 0, 128
      %2775 = vxpose.xlu0.c.b16.cont [5/8] 0, 128
      %2776 = vxpose.xlu0.c.b16.cont [6/8] 0, 128
      %2777 = vxpose.xlu0.c.b16.cont [7/8] 0, 128
      %2778 = vxpose.xlu0.c.b16.end [8/8] 0, 128
      %v2779 = vpop.trf.xlu0
      %v2780 = vpop.trf.xlu0
      %v2781 = vpop.trf.xlu0
      %v2782 = vpop.trf.xlu0
      %v2783 = vpop.trf.xlu0
      %v2784 = vpop.trf.xlu0
      %v2785 = vpop.trf.xlu0
      %v2786 = vpop.trf.xlu0
      %2787 = vxpose.xlu0.c.b16.start [1/8] %v2620, 128
      %2788 = vxpose.xlu0.c.b16.cont [2/8] 0, 128
      %2789 = vxpose.xlu0.c.b16.cont [3/8] 0, 128
      %2790 = vxpose.xlu0.c.b16.cont [4/8] 0, 128
      %2791 = vxpose.xlu0.c.b16.cont [5/8] 0, 128
      %2792 = vxpose.xlu0.c.b16.cont [6/8] 0, 128
      %2793 = vxpose.xlu0.c.b16.cont [7/8] 0, 128
      %2794 = vxpose.xlu0.c.b16.end [8/8] 0, 128
      %v2795 = vpop.trf.xlu0
      %v2796 = vpop.trf.xlu0
      %v2797 = vpop.trf.xlu0
      %v2798 = vpop.trf.xlu0
      %v2799 = vpop.trf.xlu0
      %v2800 = vpop.trf.xlu0
      %v2801 = vpop.trf.xlu0
      %v2802 = vpop.trf.xlu0
      %2803 = vxpose.xlu0.c.b16.start [1/8] %v2621, 128
      %2804 = vxpose.xlu0.c.b16.cont [2/8] 0, 128
      %2805 = vxpose.xlu0.c.b16.cont [3/8] 0, 128
      %2806 = vxpose.xlu0.c.b16.cont [4/8] 0, 128
      %2807 = vxpose.xlu0.c.b16.cont [5/8] 0, 128
      %2808 = vxpose.xlu0.c.b16.cont [6/8] 0, 128
      %2809 = vxpose.xlu0.c.b16.cont [7/8] 0, 128
      %2810 = vxpose.xlu0.c.b16.end [8/8] 0, 128
      %v2811 = vpop.trf.xlu0
      %v2812 = vpop.trf.xlu0
      %v2813 = vpop.trf.xlu0
      %v2814 = vpop.trf.xlu0
      %v2815 = vpop.trf.xlu0
      %v2816 = vpop.trf.xlu0
      %v2817 = vpop.trf.xlu0
      %v2818 = vpop.trf.xlu0
      %2819 = vxpose.xlu0.c.b16.start [1/8] %v2622, 128
      %2820 = vxpose.xlu0.c.b16.cont [2/8] 0, 128
      %2821 = vxpose.xlu0.c.b16.cont [3/8] 0, 128
      %2822 = vxpose.xlu0.c.b16.cont [4/8] 0, 128
      %2823 = vxpose.xlu0.c.b16.cont [5/8] 0, 128
      %2824 = vxpose.xlu0.c.b16.cont [6/8] 0, 128
      %2825 = vxpose.xlu0.c.b16.cont [7/8] 0, 128
      %2826 = vxpose.xlu0.c.b16.end [8/8] 0, 128
      %v2827 = vpop.trf.xlu0
      %v2828 = vpop.trf.xlu0
      %v2829 = vpop.trf.xlu0
      %v2830 = vpop.trf.xlu0
      %v2831 = vpop.trf.xlu0
      %v2832 = vpop.trf.xlu0
      %v2833 = vpop.trf.xlu0
      %v2834 = vpop.trf.xlu0
      %2835 = vxpose.xlu0.c.b16.start [1/8] %v2623, 128
      %2836 = vxpose.xlu0.c.b16.cont [2/8] 0, 128
      %2837 = vxpose.xlu0.c.b16.cont [3/8] 0, 128
      %2838 = vxpose.xlu0.c.b16.cont [4/8] 0, 128
      %2839 = vxpose.xlu0.c.b16.cont [5/8] 0, 128
      %2840 = vxpose.xlu0.c.b16.cont [6/8] 0, 128
      %2841 = vxpose.xlu0.c.b16.cont [7/8] 0, 128
      %2842 = vxpose.xlu0.c.b16.end [8/8] 0, 128
      %v2843 = vpop.trf.xlu0
      %v2844 = vpop.trf.xlu0
      %v2845 = vpop.trf.xlu0
      %v2846 = vpop.trf.xlu0
      %v2847 = vpop.trf.xlu0
      %v2848 = vpop.trf.xlu0
      %v2849 = vpop.trf.xlu0
      %v2850 = vpop.trf.xlu0
      %2851 = vxpose.xlu0.c.b16.start [1/8] %v2624, 128
      %2852 = vxpose.xlu0.c.b16.cont [2/8] 0, 128
      %2853 = vxpose.xlu0.c.b16.cont [3/8] 0, 128
      %2854 = vxpose.xlu0.c.b16.cont [4/8] 0, 128
      %2855 = vxpose.xlu0.c.b16.cont [5/8] 0, 128
      %2856 = vxpose.xlu0.c.b16.cont [6/8] 0, 128
      %2857 = vxpose.xlu0.c.b16.cont [7/8] 0, 128
      %2858 = vxpose.xlu0.c.b16.end [8/8] 0, 128
      %v2859 = vpop.trf.xlu0
      %v2860 = vpop.trf.xlu0
      %v2861 = vpop.trf.xlu0
      %v2862 = vpop.trf.xlu0
      %v2863 = vpop.trf.xlu0
      %v2864 = vpop.trf.xlu0
      %v2865 = vpop.trf.xlu0
      %v2866 = vpop.trf.xlu0
      %2867 = vxpose.xlu0.c.b16.start [1/8] %v2625, 128
      %2868 = vxpose.xlu0.c.b16.cont [2/8] 0, 128
      %2869 = vxpose.xlu0.c.b16.cont [3/8] 0, 128
      %2870 = vxpose.xlu0.c.b16.cont [4/8] 0, 128
      %2871 = vxpose.xlu0.c.b16.cont [5/8] 0, 128
      %2872 = vxpose.xlu0.c.b16.cont [6/8] 0, 128
      %2873 = vxpose.xlu0.c.b16.cont [7/8] 0, 128
      %2874 = vxpose.xlu0.c.b16.end [8/8] 0, 128
      %v2875 = vpop.trf.xlu0
      %v2876 = vpop.trf.xlu0
      %v2877 = vpop.trf.xlu0
      %v2878 = vpop.trf.xlu0
      %v2879 = vpop.trf.xlu0
      %v2880 = vpop.trf.xlu0
      %v2881 = vpop.trf.xlu0
      %v2882 = vpop.trf.xlu0
      %2883 = vxpose.xlu0.c.b16.start [1/8] %v2626, 128
      %2884 = vxpose.xlu0.c.b16.cont [2/8] 0, 128
      %2885 = vxpose.xlu0.c.b16.cont [3/8] 0, 128
      %2886 = vxpose.xlu0.c.b16.cont [4/8] 0, 128
      %2887 = vxpose.xlu0.c.b16.cont [5/8] 0, 128
      %2888 = vxpose.xlu0.c.b16.cont [6/8] 0, 128
      %2889 = vxpose.xlu0.c.b16.cont [7/8] 0, 128
      %2890 = vxpose.xlu0.c.b16.end [8/8] 0, 128
      %v2891 = vpop.trf.xlu0
      %v2892 = vpop.trf.xlu0
      %v2893 = vpop.trf.xlu0
      %v2894 = vpop.trf.xlu0
      %v2895 = vpop.trf.xlu0
      %v2896 = vpop.trf.xlu0
      %v2897 = vpop.trf.xlu0
      %v2898 = vpop.trf.xlu0
      %v2899 = vcombine.low %v2635, %v2699
      %v2901 = vunpack.c.l.s4 1983009808
      %v2902 = vunpack.c.0.s8 %v2901
      %v2903 = vlaneseq
      %v2904 = vshrl.u32 %v2903, 7
      %v2905 = vsub.s32 %v2902, %v2904
      %v2906 = vrot.slane %v2899, %v2905
      %v2907 = vcombine.low %v2667, %v2731
      %v2909 = vunpack.c.l.s4 1983009808
      %v2910 = vunpack.c.0.s8 %v2909
      %v2911 = vlaneseq
      %v2912 = vshrl.u32 %v2911, 7
      %v2913 = vsub.s32 %v2910, %v2912
      %v2914 = vrot.slane %v2907, %v2913
      %v2915 = vcombine.low %v2763, %v2827
      %v2917 = vunpack.c.l.s4 1983009808
      %v2918 = vunpack.c.0.s8 %v2917
      %v2919 = vlaneseq
      %v2920 = vshrl.u32 %v2919, 7
      %v2921 = vsub.s32 %v2918, %v2920
      %v2922 = vrot.slane %v2915, %v2921
      %v2923 = vcombine.low %v2795, %v2859
      %v2925 = vunpack.c.l.s4 1983009808
      %v2926 = vunpack.c.0.s8 %v2925
      %v2927 = vlaneseq
      %v2928 = vshrl.u32 %v2927, 7
      %v2929 = vsub.s32 %v2926, %v2928
      %v2930 = vrot.slane %v2923, %v2929
      %v2931 = vcombine.low %v2906, %v2914
      %v2932 = vcombine.high %v2906, %v2914
      %v2934 = vunpack.c.l.s4 1934713408
      %v2935 = vunpack.c.0.s8 %v2934
      %v2936 = vlaneseq
      %v2937 = vshrl.u32 %v2936, 7
      %v2938 = vsub.s32 %v2935, %v2937
      %v2939 = vrot.slane %v2931, %v2938
      %v2941 = vunpack.c.l.s4 1934713408
      %v2942 = vunpack.c.0.s8 %v2941
      %v2943 = vlaneseq
      %v2944 = vshrl.u32 %v2943, 7
      %v2945 = vsub.s32 %v2942, %v2944
      %v2946 = vrot.slane %v2932, %v2945
      %v2947 = vcombine.low %v2922, %v2930
      %v2948 = vcombine.high %v2922, %v2930
      %v2950 = vunpack.c.l.s4 1934713408
      %v2951 = vunpack.c.0.s8 %v2950
      %v2952 = vlaneseq
      %v2953 = vshrl.u32 %v2952, 7
      %v2954 = vsub.s32 %v2951, %v2953
      %v2955 = vrot.slane %v2947, %v2954
      %v2957 = vunpack.c.l.s4 1934713408
      %v2958 = vunpack.c.0.s8 %v2957
      %v2959 = vlaneseq
      %v2960 = vshrl.u32 %v2959, 7
      %v2961 = vsub.s32 %v2958, %v2960
      %v2962 = vrot.slane %v2948, %v2961
      %v2963 = vcombine.low %v2939, %v2955
      %v2964 = vcombine.high %v2939, %v2955
      %v2965 = vcombine.low %v2946, %v2962
      %v2966 = vcombine.high %v2946, %v2962
      %v2967 = vcombine.low %v2651, %v2715
      %v2969 = vunpack.c.l.s4 1983009808
      %v2970 = vunpack.c.0.s8 %v2969
      %v2971 = vlaneseq
      %v2972 = vshrl.u32 %v2971, 7
      %v2973 = vsub.s32 %v2970, %v2972
      %v2974 = vrot.slane %v2967, %v2973
      %v2975 = vcombine.low %v2683, %v2747
      %v2977 = vunpack.c.l.s4 1983009808
      %v2978 = vunpack.c.0.s8 %v2977
      %v2979 = vlaneseq
      %v2980 = vshrl.u32 %v2979, 7
      %v2981 = vsub.s32 %v2978, %v2980
      %v2982 = vrot.slane %v2975, %v2981
      %v2983 = vcombine.low %v2779, %v2843
      %v2985 = vunpack.c.l.s4 1983009808
      %v2986 = vunpack.c.0.s8 %v2985
      %v2987 = vlaneseq
      %v2988 = vshrl.u32 %v2987, 7
      %v2989 = vsub.s32 %v2986, %v2988
      %v2990 = vrot.slane %v2983, %v2989
      %v2991 = vcombine.low %v2811, %v2875
      %v2993 = vunpack.c.l.s4 1983009808
      %v2994 = vunpack.c.0.s8 %v2993
      %v2995 = vlaneseq
      %v2996 = vshrl.u32 %v2995, 7
      %v2997 = vsub.s32 %v2994, %v2996
      %v2998 = vrot.slane %v2991, %v2997
      %v2999 = vcombine.low %v2974, %v2982
      %v3000 = vcombine.high %v2974, %v2982
      %v3002 = vunpack.c.l.s4 1934713408
      %v3003 = vunpack.c.0.s8 %v3002
      %v3004 = vlaneseq
      %v3005 = vshrl.u32 %v3004, 7
      %v3006 = vsub.s32 %v3003, %v3005
      %v3007 = vrot.slane %v2999, %v3006
      %v3009 = vunpack.c.l.s4 1934713408
      %v3010 = vunpack.c.0.s8 %v3009
      %v3011 = vlaneseq
      %v3012 = vshrl.u32 %v3011, 7
      %v3013 = vsub.s32 %v3010, %v3012
      %v3014 = vrot.slane %v3000, %v3013
      %v3015 = vcombine.low %v2990, %v2998
      %v3016 = vcombine.high %v2990, %v2998
      %v3018 = vunpack.c.l.s4 1934713408
      %v3019 = vunpack.c.0.s8 %v3018
      %v3020 = vlaneseq
      %v3021 = vshrl.u32 %v3020, 7
      %v3022 = vsub.s32 %v3019, %v3021
      %v3023 = vrot.slane %v3015, %v3022
      %v3025 = vunpack.c.l.s4 1934713408
      %v3026 = vunpack.c.0.s8 %v3025
      %v3027 = vlaneseq
      %v3028 = vshrl.u32 %v3027, 7
      %v3029 = vsub.s32 %v3026, %v3028
      %v3030 = vrot.slane %v3016, %v3029
      %v3031 = vcombine.low %v3007, %v3023
      %v3032 = vcombine.high %v3007, %v3023
      %v3033 = vcombine.low %v3014, %v3030
      %v3034 = vcombine.high %v3014, %v3030
      %v3036 = vunpack.c.l.s4 1983009808
      %v3037 = vunpack.c.0.s8 %v3036
      %v3038 = vlaneseq
      %v3039 = vshrl.u32 %v3038, 7
      %v3040 = vsub.s32 %v3037, %v3039
      %v3041 = vrot.slane %v2891, %v3040
      %v3042 = vcombine.high %v3041, 0
      %v3044 = vunpack.c.l.s4 1934713408
      %v3045 = vunpack.c.0.s8 %v3044
      %v3046 = vlaneseq
      %v3047 = vshrl.u32 %v3046, 7
      %v3048 = vsub.s32 %v3045, %v3047
      %v3049 = vrot.slane %v3041, %v3048
      %v3051 = vunpack.c.l.s4 1934713408
      %v3052 = vunpack.c.0.s8 %v3051
      %v3053 = vlaneseq
      %v3054 = vshrl.u32 %v3053, 7
      %v3055 = vsub.s32 %v3052, %v3054
      %v3056 = vrot.slane %v3042, %v3055
      %v3057 = vcombine.high %v3049, 0
      %v3058 = vcombine.high %v3056, 0
      %v3061 = vpack.i.b16 %v3031, %v2963
      %v3063 = vshrl.u32 %v2963, 16
      %v3064 = vshrl.u32 %v3031, 16
      %v3065 = vpack.i.b16 %v3064, %v3063
      %v3069 = vpack.i.b16 %v3032, %v2964
      %v3071 = vshrl.u32 %v2964, 16
      %v3072 = vshrl.u32 %v3032, 16
      %v3073 = vpack.i.b16 %v3072, %v3071
      %v3077 = vpack.i.b16 %v3033, %v2965
      %v3079 = vshrl.u32 %v2965, 16
      %v3080 = vshrl.u32 %v3033, 16
      %v3081 = vpack.i.b16 %v3080, %v3079
      %v3085 = vpack.i.b16 %v3034, %v2966
      %v3087 = vshrl.u32 %v2966, 16
      %v3088 = vshrl.u32 %v3034, 16
      %v3089 = vpack.i.b16 %v3088, %v3087
      %v3092 = vpack.i.b16 0, %v3049
      %v3094 = vshrl.u32 %v3049, 16
      %v3095 = vpack.i.b16 %v1542, %v3094
      %v3098 = vpack.i.b16 0, %v3057
      %v3100 = vshrl.u32 %v3057, 16
      %v3101 = vpack.i.b16 %v1542, %v3100
      %v3104 = vpack.i.b16 0, %v3056
      %v3106 = vshrl.u32 %v3056, 16
      %v3107 = vpack.i.b16 %v1542, %v3106
      %v3110 = vpack.i.b16 0, %v3058
      %v3112 = vshrl.u32 %v3058, 16
      %v3113 = vpack.i.b16 %v1542, %v3112
      %3115 = vxpose.xlu0.c.b16.start [1/8] %v3061, 128
      %3116 = vxpose.xlu0.c.b16.cont [2/8] %v3092, 128
      %3117 = vxpose.xlu0.c.b16.cont [3/8] 0, 128
      %3118 = vxpose.xlu0.c.b16.cont [4/8] 0, 128
      %3119 = vxpose.xlu0.c.b16.cont [5/8] 0, 128
      %3120 = vxpose.xlu0.c.b16.cont [6/8] 0, 128
      %3121 = vxpose.xlu0.c.b16.cont [7/8] 0, 128
      %3122 = vxpose.xlu0.c.b16.end [8/8] 0, 128
      %v3123 = vpop.trf.xlu0
      %v3124 = vpop.trf.xlu0
      %v3125 = vpop.trf.xlu0
      %v3126 = vpop.trf.xlu0
      %v3127 = vpop.trf.xlu0
      %v3128 = vpop.trf.xlu0
      %v3129 = vpop.trf.xlu0
      %v3130 = vpop.trf.xlu0
      %3131 = vxpose.xlu0.c.b16.start [1/8] %v3065, 128
      %3132 = vxpose.xlu0.c.b16.cont [2/8] %v3095, 128
      %3133 = vxpose.xlu0.c.b16.cont [3/8] 0, 128
      %3134 = vxpose.xlu0.c.b16.cont [4/8] 0, 128
      %3135 = vxpose.xlu0.c.b16.cont [5/8] 0, 128
      %3136 = vxpose.xlu0.c.b16.cont [6/8] 0, 128
      %3137 = vxpose.xlu0.c.b16.cont [7/8] 0, 128
      %3138 = vxpose.xlu0.c.b16.end [8/8] 0, 128
      %v3139 = vpop.trf.xlu0
      %v3140 = vpop.trf.xlu0
      %v3141 = vpop.trf.xlu0
      %v3142 = vpop.trf.xlu0
      %v3143 = vpop.trf.xlu0
      %v3144 = vpop.trf.xlu0
      %v3145 = vpop.trf.xlu0
      %v3146 = vpop.trf.xlu0
      %3147 = vxpose.xlu0.c.b16.start [1/8] %v3069, 128
      %3148 = vxpose.xlu0.c.b16.cont [2/8] %v3098, 128
      %3149 = vxpose.xlu0.c.b16.cont [3/8] 0, 128
      %3150 = vxpose.xlu0.c.b16.cont [4/8] 0, 128
      %3151 = vxpose.xlu0.c.b16.cont [5/8] 0, 128
      %3152 = vxpose.xlu0.c.b16.cont [6/8] 0, 128
      %3153 = vxpose.xlu0.c.b16.cont [7/8] 0, 128
      %3154 = vxpose.xlu0.c.b16.end [8/8] 0, 128
      %v3155 = vpop.trf.xlu0
      %v3156 = vpop.trf.xlu0
      %v3157 = vpop.trf.xlu0
      %v3158 = vpop.trf.xlu0
      %v3159 = vpop.trf.xlu0
      %v3160 = vpop.trf.xlu0
      %v3161 = vpop.trf.xlu0
      %v3162 = vpop.trf.xlu0
      %3163 = vxpose.xlu0.c.b16.start [1/8] %v3073, 128
      %3164 = vxpose.xlu0.c.b16.cont [2/8] %v3101, 128
      %3165 = vxpose.xlu0.c.b16.cont [3/8] 0, 128
      %3166 = vxpose.xlu0.c.b16.cont [4/8] 0, 128
      %3167 = vxpose.xlu0.c.b16.cont [5/8] 0, 128
      %3168 = vxpose.xlu0.c.b16.cont [6/8] 0, 128
      %3169 = vxpose.xlu0.c.b16.cont [7/8] 0, 128
      %3170 = vxpose.xlu0.c.b16.end [8/8] 0, 128
      %v3171 = vpop.trf.xlu0
      %v3172 = vpop.trf.xlu0
      %v3173 = vpop.trf.xlu0
      %v3174 = vpop.trf.xlu0
      %v3175 = vpop.trf.xlu0
      %v3176 = vpop.trf.xlu0
      %v3177 = vpop.trf.xlu0
      %v3178 = vpop.trf.xlu0
      %3179 = vxpose.xlu0.c.b16.start [1/8] %v3077, 128
      %3180 = vxpose.xlu0.c.b16.cont [2/8] %v3104, 128
      %3181 = vxpose.xlu0.c.b16.cont [3/8] 0, 128
      %3182 = vxpose.xlu0.c.b16.cont [4/8] 0, 128
      %3183 = vxpose.xlu0.c.b16.cont [5/8] 0, 128
      %3184 = vxpose.xlu0.c.b16.cont [6/8] 0, 128
      %3185 = vxpose.xlu0.c.b16.cont [7/8] 0, 128
      %3186 = vxpose.xlu0.c.b16.end [8/8] 0, 128
      %v3187 = vpop.trf.xlu0
      %v3188 = vpop.trf.xlu0
      %v3189 = vpop.trf.xlu0
      %v3190 = vpop.trf.xlu0
      %v3191 = vpop.trf.xlu0
      %v3192 = vpop.trf.xlu0
      %v3193 = vpop.trf.xlu0
      %v3194 = vpop.trf.xlu0
      %3195 = vxpose.xlu0.c.b16.start [1/8] %v3081, 128
      %3196 = vxpose.xlu0.c.b16.cont [2/8] %v3107, 128
      %3197 = vxpose.xlu0.c.b16.cont [3/8] 0, 128
      %3198 = vxpose.xlu0.c.b16.cont [4/8] 0, 128
      %3199 = vxpose.xlu0.c.b16.cont [5/8] 0, 128
      %3200 = vxpose.xlu0.c.b16.cont [6/8] 0, 128
      %3201 = vxpose.xlu0.c.b16.cont [7/8] 0, 128
      %3202 = vxpose.xlu0.c.b16.end [8/8] 0, 128
      %v3203 = vpop.trf.xlu0
      %v3204 = vpop.trf.xlu0
      %v3205 = vpop.trf.xlu0
      %v3206 = vpop.trf.xlu0
      %v3207 = vpop.trf.xlu0
      %v3208 = vpop.trf.xlu0
      %v3209 = vpop.trf.xlu0
      %v3210 = vpop.trf.xlu0
      %3211 = vxpose.xlu0.c.b16.start [1/8] %v3085, 128
      %3212 = vxpose.xlu0.c.b16.cont [2/8] %v3110, 128
      %3213 = vxpose.xlu0.c.b16.cont [3/8] 0, 128
      %3214 = vxpose.xlu0.c.b16.cont [4/8] 0, 128
      %3215 = vxpose.xlu0.c.b16.cont [5/8] 0, 128
      %3216 = vxpose.xlu0.c.b16.cont [6/8] 0, 128
      %3217 = vxpose.xlu0.c.b16.cont [7/8] 0, 128
      %3218 = vxpose.xlu0.c.b16.end [8/8] 0, 128
      %v3219 = vpop.trf.xlu0
      %v3220 = vpop.trf.xlu0
      %v3221 = vpop.trf.xlu0
      %v3222 = vpop.trf.xlu0
      %v3223 = vpop.trf.xlu0
      %v3224 = vpop.trf.xlu0
      %v3225 = vpop.trf.xlu0
      %v3226 = vpop.trf.xlu0
      %3227 = vxpose.xlu0.c.b16.start [1/8] %v3089, 128
      %3228 = vxpose.xlu0.c.b16.cont [2/8] %v3113, 128
      %3229 = vxpose.xlu0.c.b16.cont [3/8] 0, 128
      %3230 = vxpose.xlu0.c.b16.cont [4/8] 0, 128
      %3231 = vxpose.xlu0.c.b16.cont [5/8] 0, 128
      %3232 = vxpose.xlu0.c.b16.cont [6/8] 0, 128
      %3233 = vxpose.xlu0.c.b16.cont [7/8] 0, 128
      %3234 = vxpose.xlu0.c.b16.end [8/8] 0, 128
      %v3235 = vpop.trf.xlu0
      %v3236 = vpop.trf.xlu0
      %v3237 = vpop.trf.xlu0
      %v3238 = vpop.trf.xlu0
      %v3239 = vpop.trf.xlu0
      %v3240 = vpop.trf.xlu0
      %v3241 = vpop.trf.xlu0
      %v3242 = vpop.trf.xlu0
      %v3243 = vcombine.low %v3123, %v3187
      %v3245 = vunpack.c.l.s4 1983009808
      %v3246 = vunpack.c.0.s8 %v3245
      %v3247 = vlaneseq
      %v3248 = vshrl.u32 %v3247, 7
      %v3249 = vsub.s32 %v3246, %v3248
      %v3250 = vrot.slane %v3243, %v3249
      %v3251 = vcombine.low %v3155, %v3219
      %v3253 = vunpack.c.l.s4 1983009808
      %v3254 = vunpack.c.0.s8 %v3253
      %v3255 = vlaneseq
      %v3256 = vshrl.u32 %v3255, 7
      %v3257 = vsub.s32 %v3254, %v3256
      %v3258 = vrot.slane %v3251, %v3257
      %v3259 = vcombine.low %v3250, %v3258
      %v3261 = vunpack.c.l.s4 1934713408
      %v3262 = vunpack.c.0.s8 %v3261
      %v3263 = vlaneseq
      %v3264 = vshrl.u32 %v3263, 7
      %v3265 = vsub.s32 %v3262, %v3264
      %v3266 = vrot.slane %v3259, %v3265
      %v3267 = vcombine.high %v3266, 0
      %v3268 = vcombine.low %v3139, %v3203
      %v3270 = vunpack.c.l.s4 1983009808
      %v3271 = vunpack.c.0.s8 %v3270
      %v3272 = vlaneseq
      %v3273 = vshrl.u32 %v3272, 7
      %v3274 = vsub.s32 %v3271, %v3273
      %v3275 = vrot.slane %v3268, %v3274
      %v3276 = vcombine.low %v3171, %v3235
      %v3278 = vunpack.c.l.s4 1983009808
      %v3279 = vunpack.c.0.s8 %v3278
      %v3280 = vlaneseq
      %v3281 = vshrl.u32 %v3280, 7
      %v3282 = vsub.s32 %v3279, %v3281
      %v3283 = vrot.slane %v3276, %v3282
      %v3284 = vcombine.low %v3275, %v3283
      %v3286 = vunpack.c.l.s4 1934713408
      %v3287 = vunpack.c.0.s8 %v3286
      %v3288 = vlaneseq
      %v3289 = vshrl.u32 %v3288, 7
      %v3290 = vsub.s32 %v3287, %v3289
      %v3291 = vrot.slane %v3284, %v3290
      %v3292 = vcombine.high %v3291, 0
      %v3295 = vpack.i.b16 %v3291, %v3266
      %v3296 = vshrl.u32 %v3266, 16
      %v3297 = vshrl.u32 %v3291, 16
      %v3298 = vpack.i.b16 %v3297, %v3296
      %v3301 = vpack.i.b16 %v3292, %v3267
      %v3302 = vshrl.u32 %v3267, 16
      %v3303 = vshrl.u32 %v3292, 16
      %v3304 = vpack.i.b16 %v3303, %v3302
      %v3306 = vsel %vm2468, %v3295, 0
      %v3309 = vsel %vm2468, %v2602, 0
      %v3312 = vsel %vm2468, %v2603, 0
      %3314 = vmatprep.subr.bf16.mxu0 0
      %3315 = vmatpush1.bf16.xpose.msra.mxu0 0
      %3316 = vmatprep.subr.bf16.mxu0 0
      %3317 = vmatpush1.bf16.xpose.msra.mxu0 0
      %3318 = vmatprep.subr.bf16.mxu0 0
      %3319 = vmatpush1.bf16.xpose.msra.mxu0 0
      %3320 = vmatprep.subr.bf16.mxu0 0
      %3321 = vmatpush1.bf16.xpose.msra.mxu0 0
      %3322 = vmatprep.subr.bf16.mxu0 0
      %3323 = vmatpush1.bf16.xpose.msra.mxu0 0
      %3324 = vmatprep.subr.bf16.mxu0 0
      %3325 = vmatpush1.bf16.xpose.msra.mxu0 0
      %3326 = vmatprep.subr.bf16.mxu0 0
      %3327 = vmatpush1.bf16.xpose.msra.mxu0 %v3312
      %3328 = vmatprep.subr.bf16.mxu0 0
      %3329 = vmatpush1.bf16.xpose.msra.mxu0 %v3309
      %3330 = vmatprep.subr.bf16.mxu0 0
      %3331 = vmatpush2.bf16.xpose.msra.mxu0 0
      %3332 = vmatprep.subr.bf16.mxu0 0
      %3333 = vmatpush2.bf16.xpose.msra.mxu0 0
      %3334 = vmatprep.subr.bf16.mxu0 0
      %3335 = vmatpush2.bf16.xpose.msra.mxu0 0
      %3336 = vmatprep.subr.bf16.mxu0 0
      %3337 = vmatpush2.bf16.xpose.msra.mxu0 0
      %3338 = vmatprep.subr.bf16.mxu0 0
      %3339 = vmatpush2.bf16.xpose.msra.mxu0 0
      %3340 = vmatprep.subr.bf16.mxu0 0
      %3341 = vmatpush2.bf16.xpose.msra.mxu0 0
      %3342 = vmatprep.subr.bf16.mxu0 0
      %3343 = vmatpush2.bf16.xpose.msra.mxu0 0
      %3344 = vmatprep.subr.bf16.mxu0 0
      %3345 = vmatpush2.bf16.xpose.msra.mxu0 0
      %3346 = vmatprep.mubr.bf16.mxu0 0
      %3347 = vmatmul.mubr.bf16.gmra.mxu0 %v3306
      %v3348 = vpop.f32.mrf.mxu0
      %v3349 = vadd.f32 0.0, %v3348
      %v3350 = vpop.f32.mrf.mxu0
      %v3351 = vpop.f32.mrf.mxu0
      %v3352 = vpop.f32.mrf.mxu0
      %3353 = vdwg.mxu0
      %v3355 = vsel %vm2468, %v3298, 0
      %v3358 = vsel %vm2468, %v2604, 0
      %v3361 = vsel %vm2468, %v2605, 0
      %3363 = vmatprep.subr.bf16.mxu0 0
      %3364 = vmatpush1.bf16.xpose.msra.mxu0 0
      %3365 = vmatprep.subr.bf16.mxu0 0
      %3366 = vmatpush1.bf16.xpose.msra.mxu0 0
      %3367 = vmatprep.subr.bf16.mxu0 0
      %3368 = vmatpush1.bf16.xpose.msra.mxu0 0
      %3369 = vmatprep.subr.bf16.mxu0 0
      %3370 = vmatpush1.bf16.xpose.msra.mxu0 0
      %3371 = vmatprep.subr.bf16.mxu0 0
      %3372 = vmatpush1.bf16.xpose.msra.mxu0 0
      %3373 = vmatprep.subr.bf16.mxu0 0
      %3374 = vmatpush1.bf16.xpose.msra.mxu0 0
      %3375 = vmatprep.subr.bf16.mxu0 0
      %3376 = vmatpush1.bf16.xpose.msra.mxu0 %v3361
      %3377 = vmatprep.subr.bf16.mxu0 0
      %3378 = vmatpush1.bf16.xpose.msra.mxu0 %v3358
      %3379 = vmatprep.subr.bf16.mxu0 0
      %3380 = vmatpush2.bf16.xpose.msra.mxu0 0
      %3381 = vmatprep.subr.bf16.mxu0 0
      %3382 = vmatpush2.bf16.xpose.msra.mxu0 0
      %3383 = vmatprep.subr.bf16.mxu0 0
      %3384 = vmatpush2.bf16.xpose.msra.mxu0 0
      %3385 = vmatprep.subr.bf16.mxu0 0
      %3386 = vmatpush2.bf16.xpose.msra.mxu0 0
      %3387 = vmatprep.subr.bf16.mxu0 0
      %3388 = vmatpush2.bf16.xpose.msra.mxu0 0
      %3389 = vmatprep.subr.bf16.mxu0 0
      %3390 = vmatpush2.bf16.xpose.msra.mxu0 0
      %3391 = vmatprep.subr.bf16.mxu0 0
      %3392 = vmatpush2.bf16.xpose.msra.mxu0 0
      %3393 = vmatprep.subr.bf16.mxu0 0
      %3394 = vmatpush2.bf16.xpose.msra.mxu0 0
      %3395 = vmatprep.mubr.bf16.mxu0 0
      %3396 = vmatmul.mubr.bf16.gmra.mxu0 %v3355
      %v3397 = vpop.f32.mrf.mxu0
      %v3398 = vadd.f32 0.0, %v3397
      %v3399 = vpop.f32.mrf.mxu0
      %v3400 = vpop.f32.mrf.mxu0
      %v3401 = vpop.f32.mrf.mxu0
      %3402 = vdwg.mxu0
      %v3404 = vsel %vm2468, %v3301, 0
      %v3407 = vsel %vm2468, %v2606, 0
      %v3410 = vsel %vm2468, %v2607, 0
      %3412 = vmatprep.subr.bf16.mxu0 0
      %3413 = vmatpush1.bf16.xpose.msra.mxu0 0
      %3414 = vmatprep.subr.bf16.mxu0 0
      %3415 = vmatpush1.bf16.xpose.msra.mxu0 0
      %3416 = vmatprep.subr.bf16.mxu0 0
      %3417 = vmatpush1.bf16.xpose.msra.mxu0 0
      %3418 = vmatprep.subr.bf16.mxu0 0
      %3419 = vmatpush1.bf16.xpose.msra.mxu0 0
      %3420 = vmatprep.subr.bf16.mxu0 0
      %3421 = vmatpush1.bf16.xpose.msra.mxu0 0
      %3422 = vmatprep.subr.bf16.mxu0 0
      %3423 = vmatpush1.bf16.xpose.msra.mxu0 0
      %3424 = vmatprep.subr.bf16.mxu0 0
      %3425 = vmatpush1.bf16.xpose.msra.mxu0 %v3410
      %3426 = vmatprep.subr.bf16.mxu0 0
      %3427 = vmatpush1.bf16.xpose.msra.mxu0 %v3407
      %3428 = vmatprep.subr.bf16.mxu0 0
      %3429 = vmatpush2.bf16.xpose.msra.mxu0 0
      %3430 = vmatprep.subr.bf16.mxu0 0
      %3431 = vmatpush2.bf16.xpose.msra.mxu0 0
      %3432 = vmatprep.subr.bf16.mxu0 0
      %3433 = vmatpush2.bf16.xpose.msra.mxu0 0
      %3434 = vmatprep.subr.bf16.mxu0 0
      %3435 = vmatpush2.bf16.xpose.msra.mxu0 0
      %3436 = vmatprep.subr.bf16.mxu0 0
      %3437 = vmatpush2.bf16.xpose.msra.mxu0 0
      %3438 = vmatprep.subr.bf16.mxu0 0
      %3439 = vmatpush2.bf16.xpose.msra.mxu0 0
      %3440 = vmatprep.subr.bf16.mxu0 0
      %3441 = vmatpush2.bf16.xpose.msra.mxu0 0
      %3442 = vmatprep.subr.bf16.mxu0 0
      %3443 = vmatpush2.bf16.xpose.msra.mxu0 0
      %3444 = vmatprep.mubr.bf16.mxu0 0
      %3445 = vmatmul.mubr.bf16.gmra.mxu0 %v3404
      %v3446 = vpop.f32.mrf.mxu0
      %v3447 = vadd.f32 0.0, %v3446
      %v3448 = vpop.f32.mrf.mxu0
      %v3449 = vpop.f32.mrf.mxu0
      %v3450 = vpop.f32.mrf.mxu0
      %3451 = vdwg.mxu0
      %v3453 = vsel %vm2468, %v3304, 0
      %v3456 = vsel %vm2468, %v2608, 0
      %v3459 = vsel %vm2468, %v2609, 0
      %3461 = vmatprep.subr.bf16.mxu0 0
      %3462 = vmatpush1.bf16.xpose.msra.mxu0 0
      %3463 = vmatprep.subr.bf16.mxu0 0
      %3464 = vmatpush1.bf16.xpose.msra.mxu0 0
      %3465 = vmatprep.subr.bf16.mxu0 0
      %3466 = vmatpush1.bf16.xpose.msra.mxu0 0
      %3467 = vmatprep.subr.bf16.mxu0 0
      %3468 = vmatpush1.bf16.xpose.msra.mxu0 0
      %3469 = vmatprep.subr.bf16.mxu0 0
      %3470 = vmatpush1.bf16.xpose.msra.mxu0 0
      %3471 = vmatprep.subr.bf16.mxu0 0
      %3472 = vmatpush1.bf16.xpose.msra.mxu0 0
      %3473 = vmatprep.subr.bf16.mxu0 0
      %3474 = vmatpush1.bf16.xpose.msra.mxu0 %v3459
      %3475 = vmatprep.subr.bf16.mxu0 0
      %3476 = vmatpush1.bf16.xpose.msra.mxu0 %v3456
      %3477 = vmatprep.subr.bf16.mxu0 0
      %3478 = vmatpush2.bf16.xpose.msra.mxu0 0
      %3479 = vmatprep.subr.bf16.mxu0 0
      %3480 = vmatpush2.bf16.xpose.msra.mxu0 0
      %3481 = vmatprep.subr.bf16.mxu0 0
      %3482 = vmatpush2.bf16.xpose.msra.mxu0 0
      %3483 = vmatprep.subr.bf16.mxu0 0
      %3484 = vmatpush2.bf16.xpose.msra.mxu0 0
      %3485 = vmatprep.subr.bf16.mxu0 0
      %3486 = vmatpush2.bf16.xpose.msra.mxu0 0
      %3487 = vmatprep.subr.bf16.mxu0 0
      %3488 = vmatpush2.bf16.xpose.msra.mxu0 0
      %3489 = vmatprep.subr.bf16.mxu0 0
      %3490 = vmatpush2.bf16.xpose.msra.mxu0 0
      %3491 = vmatprep.subr.bf16.mxu0 0
      %3492 = vmatpush2.bf16.xpose.msra.mxu0 0
      %3493 = vmatprep.mubr.bf16.mxu0 0
      %3494 = vmatmul.mubr.bf16.gmra.mxu0 %v3453
      %v3495 = vpop.f32.mrf.mxu0
      %v3496 = vadd.f32 0.0, %v3495
      %v3497 = vpop.f32.mrf.mxu0
      %v3498 = vpop.f32.mrf.mxu0
      %v3499 = vpop.f32.mrf.mxu0
      %3500 = vdwg.mxu0
      %3501 = vxpose.xlu0.b32.start [1/16] %v3349, 128
      %3502 = vxpose.xlu0.b32.cont [2/16] 0.0, 128
      %3503 = vxpose.xlu0.b32.cont [3/16] 0.0, 128
      %3504 = vxpose.xlu0.b32.cont [4/16] 0.0, 128
      %3505 = vxpose.xlu0.b32.cont [5/16] 0.0, 128
      %3506 = vxpose.xlu0.b32.cont [6/16] 0.0, 128
      %3507 = vxpose.xlu0.b32.cont [7/16] 0.0, 128
      %3508 = vxpose.xlu0.b32.cont [8/16] 0.0, 128
      %3509 = vxpose.xlu0.b32.cont [9/16] 0.0, 128
      %3510 = vxpose.xlu0.b32.cont [10/16] 0.0, 128
      %3511 = vxpose.xlu0.b32.cont [11/16] 0.0, 128
      %3512 = vxpose.xlu0.b32.cont [12/16] 0.0, 128
      %3513 = vxpose.xlu0.b32.cont [13/16] 0.0, 128
      %3514 = vxpose.xlu0.b32.cont [14/16] 0.0, 128
      %3515 = vxpose.xlu0.b32.cont [15/16] 0.0, 128
      %3516 = vxpose.xlu0.b32.end [16/16] 0.0, 128
      %v3517 = vpop.trf.xlu0
      %v3518 = vpop.trf.xlu0
      %v3519 = vpop.trf.xlu0
      %v3520 = vpop.trf.xlu0
      %v3521 = vpop.trf.xlu0
      %v3522 = vpop.trf.xlu0
      %v3523 = vpop.trf.xlu0
      %v3524 = vpop.trf.xlu0
      %v3525 = vpop.trf.xlu0
      %v3526 = vpop.trf.xlu0
      %v3527 = vpop.trf.xlu0
      %v3528 = vpop.trf.xlu0
      %v3529 = vpop.trf.xlu0
      %v3530 = vpop.trf.xlu0
      %v3531 = vpop.trf.xlu0
      %v3532 = vpop.trf.xlu0
      %3533 = vxpose.xlu0.b32.start [1/16] %v3398, 128
      %3534 = vxpose.xlu0.b32.cont [2/16] 0.0, 128
      %3535 = vxpose.xlu0.b32.cont [3/16] 0.0, 128
      %3536 = vxpose.xlu0.b32.cont [4/16] 0.0, 128
      %3537 = vxpose.xlu0.b32.cont [5/16] 0.0, 128
      %3538 = vxpose.xlu0.b32.cont [6/16] 0.0, 128
      %3539 = vxpose.xlu0.b32.cont [7/16] 0.0, 128
      %3540 = vxpose.xlu0.b32.cont [8/16] 0.0, 128
      %3541 = vxpose.xlu0.b32.cont [9/16] 0.0, 128
      %3542 = vxpose.xlu0.b32.cont [10/16] 0.0, 128
      %3543 = vxpose.xlu0.b32.cont [11/16] 0.0, 128
      %3544 = vxpose.xlu0.b32.cont [12/16] 0.0, 128
      %3545 = vxpose.xlu0.b32.cont [13/16] 0.0, 128
      %3546 = vxpose.xlu0.b32.cont [14/16] 0.0, 128
      %3547 = vxpose.xlu0.b32.cont [15/16] 0.0, 128
      %3548 = vxpose.xlu0.b32.end [16/16] 0.0, 128
      %v3549 = vpop.trf.xlu0
      %v3550 = vpop.trf.xlu0
      %v3551 = vpop.trf.xlu0
      %v3552 = vpop.trf.xlu0
      %v3553 = vpop.trf.xlu0
      %v3554 = vpop.trf.xlu0
      %v3555 = vpop.trf.xlu0
      %v3556 = vpop.trf.xlu0
      %v3557 = vpop.trf.xlu0
      %v3558 = vpop.trf.xlu0
      %v3559 = vpop.trf.xlu0
      %v3560 = vpop.trf.xlu0
      %v3561 = vpop.trf.xlu0
      %v3562 = vpop.trf.xlu0
      %v3563 = vpop.trf.xlu0
      %v3564 = vpop.trf.xlu0
      %3565 = vxpose.xlu0.b32.start [1/16] %v3447, 128
      %3566 = vxpose.xlu0.b32.cont [2/16] 0.0, 128
      %3567 = vxpose.xlu0.b32.cont [3/16] 0.0, 128
      %3568 = vxpose.xlu0.b32.cont [4/16] 0.0, 128
      %3569 = vxpose.xlu0.b32.cont [5/16] 0.0, 128
      %3570 = vxpose.xlu0.b32.cont [6/16] 0.0, 128
      %3571 = vxpose.xlu0.b32.cont [7/16] 0.0, 128
      %3572 = vxpose.xlu0.b32.cont [8/16] 0.0, 128
      %3573 = vxpose.xlu0.b32.cont [9/16] 0.0, 128
      %3574 = vxpose.xlu0.b32.cont [10/16] 0.0, 128
      %3575 = vxpose.xlu0.b32.cont [11/16] 0.0, 128
      %3576 = vxpose.xlu0.b32.cont [12/16] 0.0, 128
      %3577 = vxpose.xlu0.b32.cont [13/16] 0.0, 128
      %3578 = vxpose.xlu0.b32.cont [14/16] 0.0, 128
      %3579 = vxpose.xlu0.b32.cont [15/16] 0.0, 128
      %3580 = vxpose.xlu0.b32.end [16/16] 0.0, 128
      %v3581 = vpop.trf.xlu0
      %v3582 = vpop.trf.xlu0
      %v3583 = vpop.trf.xlu0
      %v3584 = vpop.trf.xlu0
      %v3585 = vpop.trf.xlu0
      %v3586 = vpop.trf.xlu0
      %v3587 = vpop.trf.xlu0
      %v3588 = vpop.trf.xlu0
      %v3589 = vpop.trf.xlu0
      %v3590 = vpop.trf.xlu0
      %v3591 = vpop.trf.xlu0
      %v3592 = vpop.trf.xlu0
      %v3593 = vpop.trf.xlu0
      %v3594 = vpop.trf.xlu0
      %v3595 = vpop.trf.xlu0
      %v3596 = vpop.trf.xlu0
      %3597 = vxpose.xlu0.b32.start [1/16] %v3496, 128
      %3598 = vxpose.xlu0.b32.cont [2/16] 0.0, 128
      %3599 = vxpose.xlu0.b32.cont [3/16] 0.0, 128
      %3600 = vxpose.xlu0.b32.cont [4/16] 0.0, 128
      %3601 = vxpose.xlu0.b32.cont [5/16] 0.0, 128
      %3602 = vxpose.xlu0.b32.cont [6/16] 0.0, 128
      %3603 = vxpose.xlu0.b32.cont [7/16] 0.0, 128
      %3604 = vxpose.xlu0.b32.cont [8/16] 0.0, 128
      %3605 = vxpose.xlu0.b32.cont [9/16] 0.0, 128
      %3606 = vxpose.xlu0.b32.cont [10/16] 0.0, 128
      %3607 = vxpose.xlu0.b32.cont [11/16] 0.0, 128
      %3608 = vxpose.xlu0.b32.cont [12/16] 0.0, 128
      %3609 = vxpose.xlu0.b32.cont [13/16] 0.0, 128
      %3610 = vxpose.xlu0.b32.cont [14/16] 0.0, 128
      %3611 = vxpose.xlu0.b32.cont [15/16] 0.0, 128
      %3612 = vxpose.xlu0.b32.end [16/16] 0.0, 128
      %v3613 = vpop.trf.xlu0
      %v3614 = vpop.trf.xlu0
      %v3615 = vpop.trf.xlu0
      %v3616 = vpop.trf.xlu0
      %v3617 = vpop.trf.xlu0
      %v3618 = vpop.trf.xlu0
      %v3619 = vpop.trf.xlu0
      %v3620 = vpop.trf.xlu0
      %v3621 = vpop.trf.xlu0
      %v3622 = vpop.trf.xlu0
      %v3623 = vpop.trf.xlu0
      %v3624 = vpop.trf.xlu0
      %v3625 = vpop.trf.xlu0
      %v3626 = vpop.trf.xlu0
      %v3627 = vpop.trf.xlu0
      %v3628 = vpop.trf.xlu0
      %v3629 = vcombine.low %v3517, %v3581
      %v3630 = vcombine.high %v3517, %v3581
      %v3632 = vunpack.c.l.s4 1983009808
      %v3633 = vunpack.c.0.s8 %v3632
      %v3634 = vlaneseq
      %v3635 = vshrl.u32 %v3634, 7
      %v3636 = vsub.s32 %v3633, %v3635
      %v3637 = vrot.slane %v3629, %v3636
      %v3639 = vunpack.c.l.s4 1983009808
      %v3640 = vunpack.c.0.s8 %v3639
      %v3641 = vlaneseq
      %v3642 = vshrl.u32 %v3641, 7
      %v3643 = vsub.s32 %v3640, %v3642
      %v3644 = vrot.slane %v3630, %v3643
      %v3645 = vcombine.low %v3549, %v3613
      %v3646 = vcombine.high %v3549, %v3613
      %v3648 = vunpack.c.l.s4 1983009808
      %v3649 = vunpack.c.0.s8 %v3648
      %v3650 = vlaneseq
      %v3651 = vshrl.u32 %v3650, 7
      %v3652 = vsub.s32 %v3649, %v3651
      %v3653 = vrot.slane %v3645, %v3652
      %v3655 = vunpack.c.l.s4 1983009808
      %v3656 = vunpack.c.0.s8 %v3655
      %v3657 = vlaneseq
      %v3658 = vshrl.u32 %v3657, 7
      %v3659 = vsub.s32 %v3656, %v3658
      %v3660 = vrot.slane %v3646, %v3659
      %v3661 = vcombine.low %v3637, %v3653
      %v3662 = vcombine.high %v3637, %v3653
      %v3664 = vunpack.c.l.s4 1934713408
      %v3665 = vunpack.c.0.s8 %v3664
      %v3666 = vlaneseq
      %v3667 = vshrl.u32 %v3666, 7
      %v3668 = vsub.s32 %v3665, %v3667
      %v3669 = vrot.slane %v3661, %v3668
      %v3671 = vunpack.c.l.s4 1934713408
      %v3672 = vunpack.c.0.s8 %v3671
      %v3673 = vlaneseq
      %v3674 = vshrl.u32 %v3673, 7
      %v3675 = vsub.s32 %v3672, %v3674
      %v3676 = vrot.slane %v3662, %v3675
      %v3677 = vcombine.low %v3644, %v3660
      %v3678 = vcombine.high %v3644, %v3660
      %v3680 = vunpack.c.l.s4 1934713408
      %v3681 = vunpack.c.0.s8 %v3680
      %v3682 = vlaneseq
      %v3683 = vshrl.u32 %v3682, 7
      %v3684 = vsub.s32 %v3681, %v3683
      %v3685 = vrot.slane %v3677, %v3684
      %v3687 = vunpack.c.l.s4 1934713408
      %v3688 = vunpack.c.0.s8 %v3687
      %v3689 = vlaneseq
      %v3690 = vshrl.u32 %v3689, 7
      %v3691 = vsub.s32 %v3688, %v3690
      %v3692 = vrot.slane %v3678, %v3691
      %v3693 = vcombine.high %v3669, 0.0
      %v3694 = vcombine.high %v3676, 0.0
      %v3695 = vcombine.high %v3685, 0.0
      %v3696 = vcombine.high %v3692, 0.0
      %v3697 = vcombine.low %v3518, %v3582
      %v3698 = vcombine.high %v3518, %v3582
      %v3700 = vunpack.c.l.s4 1983009808
      %v3701 = vunpack.c.0.s8 %v3700
      %v3702 = vlaneseq
      %v3703 = vshrl.u32 %v3702, 7
      %v3704 = vsub.s32 %v3701, %v3703
      %v3705 = vrot.slane %v3697, %v3704
      %v3707 = vunpack.c.l.s4 1983009808
      %v3708 = vunpack.c.0.s8 %v3707
      %v3709 = vlaneseq
      %v3710 = vshrl.u32 %v3709, 7
      %v3711 = vsub.s32 %v3708, %v3710
      %v3712 = vrot.slane %v3698, %v3711
      %v3713 = vcombine.low %v3550, %v3614
      %v3714 = vcombine.high %v3550, %v3614
      %v3716 = vunpack.c.l.s4 1983009808
      %v3717 = vunpack.c.0.s8 %v3716
      %v3718 = vlaneseq
      %v3719 = vshrl.u32 %v3718, 7
      %v3720 = vsub.s32 %v3717, %v3719
      %v3721 = vrot.slane %v3713, %v3720
      %v3723 = vunpack.c.l.s4 1983009808
      %v3724 = vunpack.c.0.s8 %v3723
      %v3725 = vlaneseq
      %v3726 = vshrl.u32 %v3725, 7
      %v3727 = vsub.s32 %v3724, %v3726
      %v3728 = vrot.slane %v3714, %v3727
      %v3729 = vcombine.low %v3705, %v3721
      %v3730 = vcombine.high %v3705, %v3721
      %v3732 = vunpack.c.l.s4 1934713408
      %v3733 = vunpack.c.0.s8 %v3732
      %v3734 = vlaneseq
      %v3735 = vshrl.u32 %v3734, 7
      %v3736 = vsub.s32 %v3733, %v3735
      %v3737 = vrot.slane %v3729, %v3736
      %v3739 = vunpack.c.l.s4 1934713408
      %v3740 = vunpack.c.0.s8 %v3739
      %v3741 = vlaneseq
      %v3742 = vshrl.u32 %v3741, 7
      %v3743 = vsub.s32 %v3740, %v3742
      %v3744 = vrot.slane %v3730, %v3743
      %v3745 = vcombine.low %v3712, %v3728
      %v3746 = vcombine.high %v3712, %v3728
      %v3748 = vunpack.c.l.s4 1934713408
      %v3749 = vunpack.c.0.s8 %v3748
      %v3750 = vlaneseq
      %v3751 = vshrl.u32 %v3750, 7
      %v3752 = vsub.s32 %v3749, %v3751
      %v3753 = vrot.slane %v3745, %v3752
      %v3755 = vunpack.c.l.s4 1934713408
      %v3756 = vunpack.c.0.s8 %v3755
      %v3757 = vlaneseq
      %v3758 = vshrl.u32 %v3757, 7
      %v3759 = vsub.s32 %v3756, %v3758
      %v3760 = vrot.slane %v3746, %v3759
      %v3761 = vcombine.high %v3737, 0.0
      %v3762 = vcombine.high %v3744, 0.0
      %v3763 = vcombine.high %v3753, 0.0
      %v3764 = vcombine.high %v3760, 0.0
      %v3765 = vcombine.low %v3519, %v3583
      %v3767 = vunpack.c.l.s4 1983009808
      %v3768 = vunpack.c.0.s8 %v3767
      %v3769 = vlaneseq
      %v3770 = vshrl.u32 %v3769, 7
      %v3771 = vsub.s32 %v3768, %v3770
      %v3772 = vrot.slane %v3765, %v3771
      %v3773 = vcombine.low %v3551, %v3615
      %v3775 = vunpack.c.l.s4 1983009808
      %v3776 = vunpack.c.0.s8 %v3775
      %v3777 = vlaneseq
      %v3778 = vshrl.u32 %v3777, 7
      %v3779 = vsub.s32 %v3776, %v3778
      %v3780 = vrot.slane %v3773, %v3779
      %v3781 = vcombine.low %v3772, %v3780
      %v3782 = vcombine.low %v3669, %v3676
      %v3784 = vunpack.c.l.s4 1983009808
      %v3785 = vunpack.c.0.s8 %v3784
      %v3786 = vlaneseq
      %v3787 = vshrl.u32 %v3786, 7
      %v3788 = vsub.s32 %v3785, %v3787
      %v3789 = vrot.slane %v3782, %v3788
      %v3790 = vcombine.low %v3693, %v3694
      %v3792 = vunpack.c.l.s4 1983009808
      %v3793 = vunpack.c.0.s8 %v3792
      %v3794 = vlaneseq
      %v3795 = vshrl.u32 %v3794, 7
      %v3796 = vsub.s32 %v3793, %v3795
      %v3797 = vrot.slane %v3790, %v3796
      %v3798 = vcombine.low %v3685, %v3692
      %v3800 = vunpack.c.l.s4 1983009808
      %v3801 = vunpack.c.0.s8 %v3800
      %v3802 = vlaneseq
      %v3803 = vshrl.u32 %v3802, 7
      %v3804 = vsub.s32 %v3801, %v3803
      %v3805 = vrot.slane %v3798, %v3804
      %v3806 = vcombine.low %v3695, %v3696
      %v3808 = vunpack.c.l.s4 1983009808
      %v3809 = vunpack.c.0.s8 %v3808
      %v3810 = vlaneseq
      %v3811 = vshrl.u32 %v3810, 7
      %v3812 = vsub.s32 %v3809, %v3811
      %v3813 = vrot.slane %v3806, %v3812
      %v3814 = vcombine.low %v3789, %v3797
      %v3815 = vcombine.high %v3789, %v3797
      %v3817 = vunpack.c.l.s4 1934713408
      %v3818 = vunpack.c.0.s8 %v3817
      %v3819 = vlaneseq
      %v3820 = vshrl.u32 %v3819, 7
      %v3821 = vsub.s32 %v3818, %v3820
      %v3822 = vrot.slane %v3814, %v3821
      %v3824 = vunpack.c.l.s4 1934713408
      %v3825 = vunpack.c.0.s8 %v3824
      %v3826 = vlaneseq
      %v3827 = vshrl.u32 %v3826, 7
      %v3828 = vsub.s32 %v3825, %v3827
      %v3829 = vrot.slane %v3815, %v3828
      %v3830 = vcombine.low %v3805, %v3813
      %v3831 = vcombine.high %v3805, %v3813
      %v3833 = vunpack.c.l.s4 1934713408
      %v3834 = vunpack.c.0.s8 %v3833
      %v3835 = vlaneseq
      %v3836 = vshrl.u32 %v3835, 7
      %v3837 = vsub.s32 %v3834, %v3836
      %v3838 = vrot.slane %v3830, %v3837
      %v3840 = vunpack.c.l.s4 1934713408
      %v3841 = vunpack.c.0.s8 %v3840
      %v3842 = vlaneseq
      %v3843 = vshrl.u32 %v3842, 7
      %v3844 = vsub.s32 %v3841, %v3843
      %v3845 = vrot.slane %v3831, %v3844
      %v3846 = vcombine.low %v3822, %v3838
      %v3847 = vcombine.high %v3822, %v3838
      %v3848 = vcombine.low %v3829, %v3845
      %v3849 = vcombine.high %v3829, %v3845
      %v3850 = vcombine.low %v3737, %v3744
      %v3852 = vunpack.c.l.s4 1983009808
      %v3853 = vunpack.c.0.s8 %v3852
      %v3854 = vlaneseq
      %v3855 = vshrl.u32 %v3854, 7
      %v3856 = vsub.s32 %v3853, %v3855
      %v3857 = vrot.slane %v3850, %v3856
      %v3858 = vcombine.low %v3761, %v3762
      %v3860 = vunpack.c.l.s4 1983009808
      %v3861 = vunpack.c.0.s8 %v3860
      %v3862 = vlaneseq
      %v3863 = vshrl.u32 %v3862, 7
      %v3864 = vsub.s32 %v3861, %v3863
      %v3865 = vrot.slane %v3858, %v3864
      %v3866 = vcombine.low %v3753, %v3760
      %v3868 = vunpack.c.l.s4 1983009808
      %v3869 = vunpack.c.0.s8 %v3868
      %v3870 = vlaneseq
      %v3871 = vshrl.u32 %v3870, 7
      %v3872 = vsub.s32 %v3869, %v3871
      %v3873 = vrot.slane %v3866, %v3872
      %v3874 = vcombine.low %v3763, %v3764
      %v3876 = vunpack.c.l.s4 1983009808
      %v3877 = vunpack.c.0.s8 %v3876
      %v3878 = vlaneseq
      %v3879 = vshrl.u32 %v3878, 7
      %v3880 = vsub.s32 %v3877, %v3879
      %v3881 = vrot.slane %v3874, %v3880
      %v3882 = vcombine.low %v3857, %v3865
      %v3883 = vcombine.high %v3857, %v3865
      %v3885 = vunpack.c.l.s4 1934713408
      %v3886 = vunpack.c.0.s8 %v3885
      %v3887 = vlaneseq
      %v3888 = vshrl.u32 %v3887, 7
      %v3889 = vsub.s32 %v3886, %v3888
      %v3890 = vrot.slane %v3882, %v3889
      %v3892 = vunpack.c.l.s4 1934713408
      %v3893 = vunpack.c.0.s8 %v3892
      %v3894 = vlaneseq
      %v3895 = vshrl.u32 %v3894, 7
      %v3896 = vsub.s32 %v3893, %v3895
      %v3897 = vrot.slane %v3883, %v3896
      %v3898 = vcombine.low %v3873, %v3881
      %v3899 = vcombine.high %v3873, %v3881
      %v3901 = vunpack.c.l.s4 1934713408
      %v3902 = vunpack.c.0.s8 %v3901
      %v3903 = vlaneseq
      %v3904 = vshrl.u32 %v3903, 7
      %v3905 = vsub.s32 %v3902, %v3904
      %v3906 = vrot.slane %v3898, %v3905
      %v3908 = vunpack.c.l.s4 1934713408
      %v3909 = vunpack.c.0.s8 %v3908
      %v3910 = vlaneseq
      %v3911 = vshrl.u32 %v3910, 7
      %v3912 = vsub.s32 %v3909, %v3911
      %v3913 = vrot.slane %v3899, %v3912
      %v3914 = vcombine.low %v3890, %v3906
      %v3915 = vcombine.high %v3890, %v3906
      %v3916 = vcombine.low %v3897, %v3913
      %v3917 = vcombine.high %v3897, %v3913
      %v3919 = vunpack.c.l.s4 1934713408
      %v3920 = vunpack.c.0.s8 %v3919
      %v3921 = vlaneseq
      %v3922 = vshrl.u32 %v3921, 7
      %v3923 = vsub.s32 %v3920, %v3922
      %v3924 = vrot.slane %v3781, %v3923
      %v3926 = vunpack.c.l.s4 1983009808
      %v3927 = vunpack.c.0.s8 %v3926
      %v3928 = vlaneseq
      %v3929 = vshrl.u32 %v3928, 7
      %v3930 = vsub.s32 %v3927, %v3929
      %v3931 = vrot.slane %v3924, %v3930
      %v3932 = vcombine.high %v3931, 0.0
      %v3934 = vunpack.c.l.s4 1934713408
      %v3935 = vunpack.c.0.s8 %v3934
      %v3936 = vlaneseq
      %v3937 = vshrl.u32 %v3936, 7
      %v3938 = vsub.s32 %v3935, %v3937
      %v3939 = vrot.slane %v3931, %v3938
      %v3941 = vunpack.c.l.s4 1934713408
      %v3942 = vunpack.c.0.s8 %v3941
      %v3943 = vlaneseq
      %v3944 = vshrl.u32 %v3943, 7
      %v3945 = vsub.s32 %v3942, %v3944
      %v3946 = vrot.slane %v3932, %v3945
      %v3947 = vcombine.high %v3939, 0.0
      %v3948 = vcombine.high %v3946, 0.0
      %3952 = vrot.lane.b32.xlu0 %v3847, 8
      %v3953 = vpop.permute.xlu0 %3952
      %3954 = vrot.lane.b32.xlu0 %v3915, 8
      %v3955 = vpop.permute.xlu0 %3954
      %3956 = vrot.lane.b32.xlu0 %v3947, 8
      %v3957 = vpop.permute.xlu0 %3956
      %3964 = vrot.lane.b32.xlu0 %v3848, 16
      %v3965 = vpop.permute.xlu0 %3964
      %3966 = vrot.lane.b32.xlu0 %v3916, 16
      %v3967 = vpop.permute.xlu0 %3966
      %3968 = vrot.lane.b32.xlu0 %v3946, 16
      %v3969 = vpop.permute.xlu0 %3968
      %3976 = vrot.lane.b32.xlu0 %v3849, 24
      %v3977 = vpop.permute.xlu0 %3976
      %3978 = vrot.lane.b32.xlu0 %v3917, 24
      %v3979 = vpop.permute.xlu0 %3978
      %3980 = vrot.lane.b32.xlu0 %v3948, 24
      %v3981 = vpop.permute.xlu0 %3980
      %v3985 = vsel %vm2226, %v3846, %v3953
      %v3986 = vsel %vm2226, %v3914, %v3955
      %v3987 = vsel %vm2226, %v3939, %v3957
      %vm3988 = vcmask 130048
      %v3989 = vsel %vm3988, %v3985, %v3965
      %v3990 = vsel %vm3988, %v3986, %v3967
      %v3991 = vsel %vm3988, %v3987, %v3969
      %vm3992 = vcmask 195584
      %v3993 = vsel %vm3992, %v3989, %v3977
      %v3994 = vsel %vm3992, %v3990, %v3979
      %v3995 = vsel %vm3992, %v3991, %v3981
      %v3996 = vpack.c.bf16 %v3994, %v3993
      %v3997 = vpack.c.bf16 %v3995, %v3995
      %v3998 = vld [vmem:[%s614] sm:$0xf]
      %v3999 = vld [vmem:[%s614 + $0x4] sm:$0xf]
      %v4000 = vld [vmem:[%s614 + $0x8] sm:$0xf]
      %v4001 = vld [vmem:[%s614 + $0xc] sm:$0xf]
      %v4002 = vld [vmem:[%s617] sm:$0x1]
      %v4004 = vlaneseq
      %v4005 = vshrl.u32 %v4004, 7
      %v4006 = vsub.s32 0, %v4005
      %v4007 = vrot.slane %v4002, %v4006
      %v4013 = vunpack.c.l.b16 %v3998
      %v4014 = vunpack.c.l.b16 %v3999
      %v4015 = vunpack.c.l.b16 %v4000
      %v4016 = vunpack.c.l.b16 %v4001
      %v4017 = vpack.c.b16 %v4014, %v4013
      %v4018 = vpack.c.b16 %v4016, %v4015
      %v4022 = vsel %vm663, %v3996, 0
      %v4025 = vsel %vm663, %v3997, 0
      %4027 = vmatprep.subr.bf16.mxu0 0
      %4028 = vmatpush1.bf16.msra.mxu0 0
      %4029 = vmatprep.subr.bf16.mxu0 0
      %4030 = vmatpush1.bf16.msra.mxu0 0
      %4031 = vmatprep.subr.bf16.mxu0 0
      %4032 = vmatpush1.bf16.msra.mxu0 0
      %4033 = vmatprep.subr.bf16.mxu0 0
      %4034 = vmatpush1.bf16.msra.mxu0 0
      %4035 = vmatprep.subr.bf16.mxu0 0
      %4036 = vmatpush1.bf16.msra.mxu0 0
      %4037 = vmatprep.subr.bf16.mxu0 0
      %4038 = vmatpush1.bf16.msra.mxu0 0
      %4039 = vmatprep.subr.bf16.mxu0 0
      %4040 = vmatpush1.bf16.msra.mxu0 %v4018
      %4041 = vmatprep.subr.bf16.mxu0 0
      %4042 = vmatpush1.bf16.msra.mxu0 %v4017
      %4043 = vmatprep.subr.bf16.mxu0 0
      %4044 = vmatpush2.bf16.msra.mxu0 0
      %4045 = vmatprep.subr.bf16.mxu0 0
      %4046 = vmatpush2.bf16.msra.mxu0 0
      %4047 = vmatprep.subr.bf16.mxu0 0
      %4048 = vmatpush2.bf16.msra.mxu0 0
      %4049 = vmatprep.subr.bf16.mxu0 0
      %4050 = vmatpush2.bf16.msra.mxu0 0
      %4051 = vmatprep.subr.bf16.mxu0 0
      %4052 = vmatpush2.bf16.msra.mxu0 0
      %4053 = vmatprep.subr.bf16.mxu0 0
      %4054 = vmatpush2.bf16.msra.mxu0 0
      %4055 = vmatprep.subr.bf16.mxu0 0
      %4056 = vmatpush2.bf16.msra.mxu0 0
      %4057 = vmatprep.subr.bf16.mxu0 0
      %4058 = vmatpush2.bf16.msra.mxu0 0
      %4059 = vmatprep.mubr.bf16.mxu0 0
      %4060 = vmatmul.mubr.bf16.gmra.mxu0 %v4022
      %v4061 = vpop.f32.mrf.mxu0
      %v4062 = vadd.f32 %v4007, %v4061
      %v4063 = vpop.f32.mrf.mxu0
      %v4064 = vpop.f32.mrf.mxu0
      %v4065 = vadd.f32 %v4007, %v4064
      %v4066 = vpop.f32.mrf.mxu0
      %4067 = vmatprep.mubr.bf16.mxu0 0
      %4068 = vmatmul.mubr.bf16.gmra.mxu0 %v4025
      %v4069 = vpop.f32.mrf.mxu0
      %v4070 = vadd.f32 %v4007, %v4069
      %v4071 = vpop.f32.mrf.mxu0
      %v4072 = vpop.f32.mrf.mxu0
      %v4073 = vpop.f32.mrf.mxu0
      %4074 = vdwg.mxu0
      %v4075 = vadd.f32 %v658, %v4062
      %v4076 = vadd.f32 %v659, %v4065
      %v4077 = vadd.f32 %v660, %v4070
      %v4078 = vld [vmem:[%s620] sm:$0x1]
      %v4079 = vld [vmem:[%s623] sm:$0x1]
      %v4080 = vsel %vm663, %v4075, 0.0
      %4081 = vadd.xlane.f32.xlu0 %v4080
      %v4082 = vpop.xlane.xlu0 %4081
      %v4083 = vsel %vm663, %v4076, 0.0
      %4084 = vadd.xlane.f32.xlu0 %v4083
      %v4085 = vpop.xlane.xlu0 %4084
      %v4086 = vsel %vm670, %v4077, 0.0
      %4087 = vadd.xlane.f32.xlu0 %v4086
      %v4088 = vpop.xlane.xlu0 %4087
      %v4089 = vmul.f32 %v4082, %v674
      %v4090 = vmul.f32 %v4085, %v674
      %v4091 = vmul.f32 %v4088, %v674
      %v4092 = vsub.f32 %v4075, %v4089
      %v4093 = vsub.f32 %v4076, %v4090
      %v4094 = vsub.f32 %v4077, %v4091
      %v4095 = vmul.f32 %v4092, %v4092
      %v4096 = vmul.f32 %v4093, %v4093
      %v4097 = vmul.f32 %v4094, %v4094
      %v4098 = vsel %vm663, %v4095, 0.0
      %4099 = vadd.xlane.f32.xlu0 %v4098
      %v4100 = vpop.xlane.xlu0 %4099
      %v4101 = vsel %vm663, %v4096, 0.0
      %4102 = vadd.xlane.f32.xlu0 %v4101
      %v4103 = vpop.xlane.xlu0 %4102
      %v4104 = vsel %vm670, %v4097, 0.0
      %4105 = vadd.xlane.f32.xlu0 %v4104
      %v4106 = vpop.xlane.xlu0 %4105
      %v4107 = vmul.f32 %v4100, %v674
      %v4108 = vmul.f32 %v4103, %v674
      %v4109 = vmul.f32 %v4106, %v674
      %v4110 = vadd.f32 %v4107, 1e-05
      %v4111 = vadd.f32 %v4108, 1e-05
      %v4112 = vadd.f32 %v4109, 1e-05
      %v4113 = vrsqrt.pop %v4110
      %v4114 = vrsqrt.pop %v4111
      %v4115 = vrsqrt.pop %v4112
      %v4116 = vmul.f32 %v4092, %v4113
      %v4117 = vmul.f32 %v4093, %v4114
      %v4118 = vmul.f32 %v4094, %v4115
      %v4120 = vlaneseq
      %v4121 = vshrl.u32 %v4120, 7
      %v4122 = vsub.s32 0, %v4121
      %v4123 = vrot.slane %v4078, %v4122
      %v4125 = vmul.f32 %v4116, %v4123
      %v4126 = vmul.f32 %v4117, %v4123
      %v4127 = vmul.f32 %v4118, %v4123
      %v4129 = vlaneseq
      %v4130 = vshrl.u32 %v4129, 7
      %v4131 = vsub.s32 0, %v4130
      %v4132 = vrot.slane %v4079, %v4131
      %v4134 = vadd.f32 %v4125, %v4132
      %v4135 = vadd.f32 %v4126, %v4132
      %v4136 = vadd.f32 %v4127, %v4132
      %v4137 = vpack.c.bf16 %v4135, %v4134
      %v4138 = vpack.c.bf16 %v4136, %v4136
      %v4139 = vld [vmem:[%s628] sm:$0xf]
      %v4140 = vld [vmem:[%s628 + $0x4] sm:$0xf]
      %v4141 = vld [vmem:[%s628 + $0x8] sm:$0xf]
      %v4142 = vld [vmem:[%s628 + $0xc] sm:$0xf]
      %v4143 = vld [vmem:[%s631] sm:$0x1]
      %v4145 = vlaneseq
      %v4146 = vshrl.u32 %v4145, 7
      %v4147 = vsub.s32 0, %v4146
      %v4148 = vrot.slane %v4143, %v4147
      %v4154 = vunpack.c.l.b16 %v4139
      %v4155 = vunpack.c.l.b16 %v4140
      %v4156 = vunpack.c.l.b16 %v4141
      %v4157 = vunpack.c.l.b16 %v4142
      %v4158 = vpack.c.b16 %v4155, %v4154
      %v4159 = vpack.c.b16 %v4157, %v4156
      %v4163 = vsel %vm663, %v4137, 0
      %v4166 = vsel %vm663, %v4138, 0
      %4168 = vmatprep.subr.bf16.mxu0 0
      %4169 = vmatpush1.bf16.msra.mxu0 0
      %4170 = vmatprep.subr.bf16.mxu0 0
      %4171 = vmatpush1.bf16.msra.mxu0 0
      %4172 = vmatprep.subr.bf16.mxu0 0
      %4173 = vmatpush1.bf16.msra.mxu0 0
      %4174 = vmatprep.subr.bf16.mxu0 0
      %4175 = vmatpush1.bf16.msra.mxu0 0
      %4176 = vmatprep.subr.bf16.mxu0 0
      %4177 = vmatpush1.bf16.msra.mxu0 0
      %4178 = vmatprep.subr.bf16.mxu0 0
      %4179 = vmatpush1.bf16.msra.mxu0 0
      %4180 = vmatprep.subr.bf16.mxu0 0
      %4181 = vmatpush1.bf16.msra.mxu0 %v4159
      %4182 = vmatprep.subr.bf16.mxu0 0
      %4183 = vmatpush1.bf16.msra.mxu0 %v4158
      %4184 = vmatprep.subr.bf16.mxu0 0
      %4185 = vmatpush2.bf16.msra.mxu0 0
      %4186 = vmatprep.subr.bf16.mxu0 0
      %4187 = vmatpush2.bf16.msra.mxu0 0
      %4188 = vmatprep.subr.bf16.mxu0 0
      %4189 = vmatpush2.bf16.msra.mxu0 0
      %4190 = vmatprep.subr.bf16.mxu0 0
      %4191 = vmatpush2.bf16.msra.mxu0 0
      %4192 = vmatprep.subr.bf16.mxu0 0
      %4193 = vmatpush2.bf16.msra.mxu0 0
      %4194 = vmatprep.subr.bf16.mxu0 0
      %4195 = vmatpush2.bf16.msra.mxu0 0
      %4196 = vmatprep.subr.bf16.mxu0 0
      %4197 = vmatpush2.bf16.msra.mxu0 0
      %4198 = vmatprep.subr.bf16.mxu0 0
      %4199 = vmatpush2.bf16.msra.mxu0 0
      %4200 = vmatprep.mubr.bf16.mxu0 0
      %4201 = vmatmul.mubr.bf16.gmra.mxu0 %v4163
      %v4202 = vpop.f32.mrf.mxu0
      %v4203 = vadd.f32 %v4148, %v4202
      %v4204 = vpop.f32.mrf.mxu0
      %v4205 = vpop.f32.mrf.mxu0
      %v4206 = vadd.f32 %v4148, %v4205
      %v4207 = vpop.f32.mrf.mxu0
      %4208 = vmatprep.mubr.bf16.mxu0 0
      %4209 = vmatmul.mubr.bf16.gmra.mxu0 %v4166
      %v4210 = vpop.f32.mrf.mxu0
      %v4211 = vadd.f32 %v4148, %v4210
      %v4212 = vpop.f32.mrf.mxu0
      %v4213 = vpop.f32.mrf.mxu0
      %v4214 = vpop.f32.mrf.mxu0
      %4215 = vdwg.mxu0
      %v4216 = vmul.f32 %v4203, 0.5
      %v4217 = vmul.f32 %v4206, 0.5
      %v4218 = vmul.f32 %v4211, 0.5
      %v4219 = vmul.f32 %v4203, 0.70710677
      %v4220 = vmul.f32 %v4206, 0.70710677
      %v4221 = vmul.f32 %v4211, 0.70710677
      %v4222 = verf.f32.pop %v4219
      %v4223 = verf.f32.pop %v4220
      %v4224 = verf.f32.pop %v4221
      %v4225 = vadd.f32 %v4222, 1.0
      %v4226 = vadd.f32 %v4223, 1.0
      %v4227 = vadd.f32 %v4224, 1.0
      %v4228 = vmul.f32 %v4216, %v4225
      %v4229 = vmul.f32 %v4217, %v4226
      %v4230 = vmul.f32 %v4218, %v4227
      %v4231 = vpack.c.bf16 %v4229, %v4228
      %v4232 = vpack.c.bf16 %v4230, %v4230
      %v4233 = vld [vmem:[%s636] sm:$0xf]
      %v4234 = vld [vmem:[%s636 + $0x4] sm:$0xf]
      %v4235 = vld [vmem:[%s636 + $0x8] sm:$0xf]
      %v4236 = vld [vmem:[%s636 + $0xc] sm:$0xf]
      %v4237 = vld [vmem:[%s636 + $0x10] sm:$0xf]
      %v4238 = vld [vmem:[%s636 + $0x14] sm:$0xf]
      %v4239 = vld [vmem:[%s636 + $0x18] sm:$0xf]
      %v4240 = vld [vmem:[%s636 + $0x1c] sm:$0xf]
      %v4241 = vld [vmem:[%s636 + $0x20] sm:$0xf]
      %v4242 = vld [vmem:[%s636 + $0x24] sm:$0xf]
      %v4243 = vld [vmem:[%s636 + $0x28] sm:$0xf]
      %v4244 = vld [vmem:[%s636 + $0x2c] sm:$0xf]
      %v4245 = vld [vmem:[%s636 + $0x30] sm:$0xf]
      %v4246 = vld [vmem:[%s636 + $0x34] sm:$0xf]
      %v4247 = vld [vmem:[%s636 + $0x38] sm:$0xf]
      %v4248 = vld [vmem:[%s636 + $0x3c] sm:$0xf]
      %v4249 = vld [vmem:[%s639] sm:$0x1]
      %v4251 = vlaneseq
      %v4252 = vshrl.u32 %v4251, 7
      %v4253 = vsub.s32 0, %v4252
      %v4254 = vrot.slane %v4249, %v4253
      %v4272 = vunpack.c.l.b16 %v4233
      %v4273 = vunpack.c.l.b16 %v4234
      %v4274 = vunpack.c.l.b16 %v4235
      %v4275 = vunpack.c.l.b16 %v4236
      %v4276 = vunpack.c.l.b16 %v4237
      %v4277 = vunpack.c.l.b16 %v4238
      %v4278 = vunpack.c.l.b16 %v4239
      %v4279 = vunpack.c.l.b16 %v4240
      %v4280 = vunpack.c.l.b16 %v4241
      %v4281 = vunpack.c.l.b16 %v4242
      %v4282 = vunpack.c.l.b16 %v4243
      %v4283 = vunpack.c.l.b16 %v4244
      %v4284 = vunpack.c.l.b16 %v4245
      %v4285 = vunpack.c.l.b16 %v4246
      %v4286 = vunpack.c.l.b16 %v4247
      %v4287 = vunpack.c.l.b16 %v4248
      %v4288 = vpack.c.b16 %v4273, %v4272
      %v4289 = vpack.c.b16 %v4275, %v4274
      %v4290 = vpack.c.b16 %v4277, %v4276
      %v4291 = vpack.c.b16 %v4279, %v4278
      %v4292 = vpack.c.b16 %v4281, %v4280
      %v4293 = vpack.c.b16 %v4283, %v4282
      %v4294 = vpack.c.b16 %v4285, %v4284
      %v4295 = vpack.c.b16 %v4287, %v4286
      %4304 = vmatprep.subr.bf16.mxu0 0
      %4305 = vmatpush1.bf16.msra.mxu0 %v4295
      %4306 = vmatprep.subr.bf16.mxu0 0
      %4307 = vmatpush1.bf16.msra.mxu0 %v4294
      %4308 = vmatprep.subr.bf16.mxu0 0
      %4309 = vmatpush1.bf16.msra.mxu0 %v4293
      %4310 = vmatprep.subr.bf16.mxu0 0
      %4311 = vmatpush1.bf16.msra.mxu0 %v4292
      %4312 = vmatprep.subr.bf16.mxu0 0
      %4313 = vmatpush1.bf16.msra.mxu0 %v4291
      %4314 = vmatprep.subr.bf16.mxu0 0
      %4315 = vmatpush1.bf16.msra.mxu0 %v4290
      %4316 = vmatprep.subr.bf16.mxu0 0
      %4317 = vmatpush1.bf16.msra.mxu0 %v4289
      %4318 = vmatprep.subr.bf16.mxu0 0
      %4319 = vmatpush1.bf16.msra.mxu0 %v4288
      %4320 = vmatprep.subr.bf16.mxu0 0
      %4321 = vmatpush2.bf16.msra.mxu0 0
      %4322 = vmatprep.subr.bf16.mxu0 0
      %4323 = vmatpush2.bf16.msra.mxu0 0
      %4324 = vmatprep.subr.bf16.mxu0 0
      %4325 = vmatpush2.bf16.msra.mxu0 0
      %4326 = vmatprep.subr.bf16.mxu0 0
      %4327 = vmatpush2.bf16.msra.mxu0 0
      %4328 = vmatprep.subr.bf16.mxu0 0
      %4329 = vmatpush2.bf16.msra.mxu0 0
      %4330 = vmatprep.subr.bf16.mxu0 0
      %4331 = vmatpush2.bf16.msra.mxu0 0
      %4332 = vmatprep.subr.bf16.mxu0 0
      %4333 = vmatpush2.bf16.msra.mxu0 0
      %4334 = vmatprep.subr.bf16.mxu0 0
      %4335 = vmatpush2.bf16.msra.mxu0 0
      %4336 = vmatprep.mubr.bf16.mxu0 0
      %4337 = vmatmul.mubr.bf16.gmra.mxu0 %v4231
      %v4338 = vpop.f32.mrf.mxu0
      %v4339 = vadd.f32 %v4254, %v4338
      %v4340 = vpop.f32.mrf.mxu0
      %v4341 = vpop.f32.mrf.mxu0
      %v4342 = vadd.f32 %v4254, %v4341
      %v4343 = vpop.f32.mrf.mxu0
      %4344 = vmatprep.mubr.bf16.mxu0 0
      %4345 = vmatmul.mubr.bf16.gmra.mxu0 %v4232
      %v4346 = vpop.f32.mrf.mxu0
      %v4347 = vadd.f32 %v4254, %v4346
      %v4348 = vpop.f32.mrf.mxu0
      %v4349 = vpop.f32.mrf.mxu0
      %v4350 = vpop.f32.mrf.mxu0
      %4351 = vdwg.mxu0
      %v4352 = vadd.f32 %v4075, %v4339
      %v4353 = vadd.f32 %v4076, %v4342
      %v4354 = vadd.f32 %v4077, %v4347
      %4355 = vst.msk [vmem:[#allocation2] sm:$0xff] %vm663, %v4352
      %4356 = vst.msk [vmem:[#allocation2 + $0x8] sm:$0xff] %vm663, %v4353
      %4357 = vst.msk [vmem:[#allocation2 + $0x10] sm:$0x1] %vm670, %v4354
      %p4358 = scmp.eq.s32.totalorder %s29, 1
      // Predicated region
      $region77: #{vit_forward.4} parent=71 // pred_check
        %p4359 = pneg %p4358
      $region78: #{vit_forward.4} parent=71 // pred_check_branch
        %4361 = sbr.rel (%p4359) target = $region80
      $region79: #{vit_forward.4} parent=71 // pred_region
        %4362 = vst.msk [vmem:[%s644] sm:$0xff] %vm663, %v4352
        %4363 = vst.msk [vmem:[%s644 + $0x8] sm:$0xff] %vm663, %v4353
        %4364 = vst.msk [vmem:[%s644 + $0x10] sm:$0x1] %vm670, %v4354
      $region80: #{vit_forward.4} parent=71 // pred_fallthru
        _
      %p4365 = scmp.lt.s32.totalorder %s28, 1
      %s4366 = scalar_select %p4365, %s28, 1
      %s4367 = smul.addr %s4366, 3
      %s4368 = smul.addr %s4367, 8
      %s4369 = scalar_lea.vmem %s13, %s4368
      // Predicated region
      $region81: #{vit_forward.4} parent=71 // pred_check
        %p4370 = pneg %p392
      $region82: #{vit_forward.4} parent=71 // pred_check_branch
        %4372 = sbr.rel (%p4370) target = $region84
      $region83: #{vit_forward.4} parent=71 // pred_region
        _
      $region84: #{vit_forward.4} parent=71 // pred_fallthru
        _
    $region72: #{vit_forward.4} parent=5 // pred_fallthru
      _
    %p4373 = scmp.le.s32.totalorder 2, %s19
    // Predicated region
    $region85: #{vit_forward.4} parent=5 // pred_check
      %p4374 = pneg %p4373
    $region86: #{vit_forward.4} parent=5 // pred_check_branch
      %4376 = sbr.rel (%p4374) target = $region88
    $region87: #{vit_forward.4} parent=5 // pred_region
      %s4377 = ssub.s32 %s19, 2
      // Predicated region
      $region89: #{vit_forward.4} parent=87 // pred_check
        %p4378 = pneg %p398
      $region90: #{vit_forward.4} parent=87 // pred_check_branch
        %4380 = sbr.rel (%p4378) target = $region92
      $region91: #{vit_forward.4} parent=87 // pred_region
        %p4381 = scmp.lt.s32.totalorder %s30, 1
        %s4382 = scalar_select %p4381, %s30, 1
        %s4383 = smul.addr %s4382, 3
        %s4384 = smul.addr %s4383, 8
        %s4385 = scalar_lea.vmem %s13, %s4384
      $region92: #{vit_forward.4} parent=87 // pred_fallthru
        _
    $region88: #{vit_forward.4} parent=5 // pred_fallthru
      _
  $region6: #{vit_forward.4} parent=0 // loop_footer
    %s23 = sadd.s32 1, %s19
  $region7: #{vit_forward.4} parent=0 // loop_footer_branch
    %18 = sbr.rel target = $region3
  $region8: #{vit_forward.4} parent=0 // loop_exit
    _

</llo_original>
